<compile_context>
chip_gen: v7x
topology: tpu7x:2x2x1
jax: 0.10.0
libtpu: 0.0.40
codegen_flags: <defaults>
</compile_context>

<pallas_src>
from functools import partial

import jax
import jax.numpy as jnp
import numpy as np
from jax import lax
from jax.experimental import pallas as pl
from jax.experimental.pallas import tpu as pltpu


# ----------------------------- Pallas kernel --------------------------------
def _detection_kernel(unroll, x_ref, wi0_ref, bi0_ref, wi1_ref, bi1_ref, wh_ref, bh_ref,
                      lw_ref, lb_ref, out_ref, gi_f_ref, gi_b_ref, seq_f_ref, seq_b_ref):
    f32 = jnp.float32
    bf16 = jnp.bfloat16
    S, bt, H = x_ref.shape
    Hd = seq_f_ref.shape[-1]
    G = 3 * Hd

    # Block-diagonal mask for the fused bidirectional recurrent dot (hoisted, computed once).
    row = lax.broadcasted_iota(jnp.int32, (2 * bt, 2 * Hd), 0)
    col = lax.broadcasted_iota(jnp.int32, (2 * bt, 2 * Hd), 1)
    mask_wide = ((row < bt) == (col < Hd)).astype(f32)     # [[1,0],[0,1]] block structure

    def run_layer(layer):
        wh_l = wh_ref[layer]                                 # (2Hd, G) bf16 = [Wh_fwd ; Wh_bwd]
        bh_sel = jnp.concatenate(                            # (2bt, G) f32, hoisted out of loop
            [jnp.broadcast_to(bh_ref[layer, 0], (bt, G)),
             jnp.broadcast_to(bh_ref[layer, 1], (bt, G))], axis=0)

        def step(i, h_wide):                                 # h_wide: (2bt, 2Hd) masked wide carry
            tf = i
            tb = S - 1 - i
            gf = gi_f_ref[tf].astype(f32)                    # dense (bt, G) time-major loads
            gb = gi_b_ref[tb].astype(f32)
            gi = jnp.concatenate([gf, gb], axis=0)           # (2bt, G) sublane concat
            # One MXU dot serves both directions (block-diagonal masked state).
            gh = jnp.dot(h_wide.astype(bf16), wh_l, preferred_element_type=f32) + bh_sel
            r = jax.nn.sigmoid(gi[:, :Hd] + gh[:, :Hd])
            z = jax.nn.sigmoid(gi[:, Hd:2 * Hd] + gh[:, Hd:2 * Hd])
            n = jnp.tanh(gi[:, 2 * Hd:] + r * gh[:, 2 * Hd:])
            h_prev = h_wide[:, :Hd] + h_wide[:, Hd:]         # other half is zero by construction
            h_new = n + z * (h_prev - n)                     # == (1-z)*n + z*h_prev
            seq_f_ref[tf] = h_new[:bt]                       # dense (bt, Hd) time-major stores
            seq_b_ref[tb] = h_new[bt:]
            # Re-mask with the hoisted mask: a single VPU pass, no per-step mask rebuild.
            return jnp.concatenate([h_new, h_new], axis=1) * mask_wide

        lax.fori_loop(0, S, step, jnp.zeros((2 * bt, 2 * Hd), f32), unroll=unroll)

    # ---- Layer 0: input projections hoisted out of the recurrence (bf16 MXU matmuls). ----
    x_bf = x_ref[...].reshape(S * bt, H)                     # already bf16, time-major
    gi_f_ref[...] = (jnp.dot(x_bf, wi0_ref[0], preferred_element_type=f32)
                     + bi0_ref[0]).reshape(S, bt, G).astype(bf16)
    gi_b_ref[...] = (jnp.dot(x_bf, wi0_ref[1], preferred_element_type=f32)
                     + bi0_ref[1]).reshape(S, bt, G).astype(bf16)
    run_layer(0)

    # ---- Layer 1: input = [fwd | bwd] of layer 0, kept as split per-direction buffers. ----
    sf = seq_f_ref[...].reshape(S * bt, Hd).astype(bf16)
    sb = seq_b_ref[...].reshape(S * bt, Hd).astype(bf16)
    gi_f_ref[...] = (jnp.dot(sf, wi1_ref[0, 0], preferred_element_type=f32)
                     + jnp.dot(sb, wi1_ref[1, 0], preferred_element_type=f32)
                     + bi1_ref[0]).reshape(S, bt, G).astype(bf16)
    gi_b_ref[...] = (jnp.dot(sf, wi1_ref[0, 1], preferred_element_type=f32)
                     + jnp.dot(sb, wi1_ref[1, 1], preferred_element_type=f32)
                     + bi1_ref[1]).reshape(S, bt, G).astype(bf16)
    run_layer(1)

    # ---- Linear(H, 1) + sigmoid: VPU multiply + lane reduction (no N=1 MXU matmul). ----
    logits_tm = (jnp.sum(seq_f_ref[...] * lw_ref[0], axis=-1)
                 + jnp.sum(seq_b_ref[...] * lw_ref[1], axis=-1)
                 + lb_ref[...])                              # (S, bt)
    out_ref[...] = jax.nn.sigmoid(logits_tm).T               # lane-dense (bt, S) block


# ----------------------------- tiling plan -----------------------------------
def _plan(B, S, H, packed):
    Hd = H // 2
    G = 3 * Hd
    vmem_cap = 64 * 1024 * 1024            # conservative default (v7x per-core VMEM)
    n_cores = 1
    try:
        info = pltpu.get_tpu_info()
        cap = int(getattr(info, "vmem_capacity_bytes", vmem_cap))
        if cap > 0:
            vmem_cap = cap
        for name in ("num_cores", "core_count", "num_tensorcores", "tensorcores_per_chip"):
            v = getattr(info, name, None)
            if isinstance(v, int) and v > 1:
                n_cores = v
                break
    except Exception:
        pass

    budget = int(0.6 * vmem_cap)
    weight_bytes = sum(int(np.prod(a.shape)) * a.dtype.itemsize for a in packed)

    def vmem_need(bt):
        gi = 2 * S * bt * G * 2                       # bf16 gate scratch (fwd + bwd)
        seq = 2 * S * bt * Hd * 4                     # f32 per-direction sequence scratch
        xio = 2 * S * bt * H * 2 + 2 * bt * S * 4     # double-buffered input/output tiles
        tmp = 2 * S * bt * G * 4                      # f32 projection temporaries
        return gi + seq + xio + tmp + weight_bytes

    b8 = -(-B // 8) * 8
    if b8 <= 8:
        bt = 8                                        # single full-extent tile
    else:
        bt = 16
        for cand in (128, 64, 32):                    # target 2*bt ~ MXU row width
            if cand <= b8 and vmem_need(cand) <= budget:
                bt = cand
                break
    b_pad = -(-B // bt) * bt
    # Multi-TensorCore chips (v7x-style): keep >= n_cores batch tiles so "parallel" can shard.
    while n_cores > 1 and b_pad // bt < n_cores and bt >= 32:
        bt //= 2
        b_pad = -(-B // bt) * bt

    vmem_limit = int(min(int(0.85 * vmem_cap), max(32 * 1024 * 1024, 2 * vmem_need(bt))))
    unroll = max(u for u in (16, 8, 4, 2, 1) if S % u == 0)
    return bt, b_pad, vmem_limit, unroll


# ----------------------------- wrapper / glue --------------------------------
@partial(jax.jit, static_argnames=("bt", "b_pad", "vmem_limit", "unroll"))
def _detection_forward(hidden_states, packed, *, bt, b_pad, vmem_limit, unroll):
    B, S, H = hidden_states.shape
    Hd = H // 2
    G = 3 * Hd

    x = hidden_states
    if b_pad != B:
        x = jnp.pad(x, ((0, b_pad - B), (0, 0), (0, 0)))
    # Time-major, bf16 input: the kernel sees (S, bt, H) blocks => dense time-indexed access.
    x_tm = jnp.transpose(x, (1, 0, 2)).astype(jnp.bfloat16)

    def full_spec(a):
        nd = a.ndim

        def imap(i):
            return (0,) * nd

        return pl.BlockSpec(a.shape, imap)

    grid = (b_pad // bt,)
    kernel = partial(_detection_kernel, unroll)

    prob2d = pl.pallas_call(
        kernel,
        out_shape=jax.ShapeDtypeStruct((b_pad, S), jnp.float32),
        grid=grid,
        in_specs=[pl.BlockSpec((S, bt, H), lambda i: (0, i, 0))]
                 + [full_spec(a) for a in packed],
        out_specs=pl.BlockSpec((bt, S), lambda i: (i, 0)),
        scratch_shapes=[
            pltpu.VMEM((S, bt, G), jnp.bfloat16),   # fwd input-gate pre-activations (time-major)
            pltpu.VMEM((S, bt, G), jnp.bfloat16),   # bwd input-gate pre-activations (time-major)
            pltpu.VMEM((S, bt, Hd), jnp.float32),   # fwd sequence outputs (reused layer 0/1)
            pltpu.VMEM((S, bt, Hd), jnp.float32),   # bwd sequence outputs (reused layer 0/1)
        ],
        compiler_params=pltpu.CompilerParams(
            dimension_semantics=("parallel",),
            vmem_limit_bytes=vmem_limit),
    )(x_tm, *packed)
    return prob2d[:B, :, None]                       # (B, S, 1)


def detection_network(hidden_states, packed):
    B, S, H = hidden_states.shape
    bt, b_pad, vmem_limit, unroll = _plan(B, S, H, packed)
    return _detection_forward(hidden_states, packed, bt=bt, b_pad=b_pad,
                              vmem_limit=vmem_limit, unroll=unroll)


# ----------------------------- params ----------------------------------------
def init_params(key, H):
    """Deterministic init matching PyTorch shapes: GRU(H, H//2, 2 layers, bidir) + Linear(H,1)."""
    Hd = H // 2
    keys = iter(jax.random.split(key, 32))
    k = 1.0 / np.sqrt(Hd)
    u = lambda shape, bound: jax.random.uniform(next(keys), shape, jnp.float32, -bound, bound)
    params = {}
    for layer in range(2):
        for suffix in ["", "_reverse"]:
            name = f"l{layer}{suffix}"
            params[f"w_ih_{name}"] = u((3 * Hd, H), k)    # gate order: r, z, n
            params[f"w_hh_{name}"] = u((3 * Hd, Hd), k)
            params[f"b_ih_{name}"] = u((3 * Hd,), k)
            params[f"b_hh_{name}"] = u((3 * Hd,), k)
    kl = 1.0 / np.sqrt(H)
    params["lin_w"] = u((1, H), kl)
    params["lin_b"] = u((1,), kl)
    return params


def pack_params(params, H):
    """Repack PyTorch-layout GRU weights into fused, kernel-friendly tensors (bf16 MXU operands)."""
    Hd = H // 2
    bf16 = jnp.bfloat16
    f32 = jnp.float32
    t = lambda w: jnp.asarray(w).T                                   # (3Hd, in) -> (in, 3Hd)

    # Layer 0 input weights / biases, per direction.
    wi0 = jnp.stack([t(params["w_ih_l0"]), t(params["w_ih_l0_reverse"])]).astype(bf16)   # (2, H, G)
    bi0 = jnp.stack([params["b_ih_l0"][None, :],
                     params["b_ih_l0_reverse"][None, :]]).astype(f32)                    # (2, 1, G)

    # Layer 1 input weights split by feature direction (rows) and gate direction.
    w1f = t(params["w_ih_l1"])                # (H, G): rows [0:Hd]=fwd features, [Hd:]=bwd features
    w1b = t(params["w_ih_l1_reverse"])        # (H, G)
    wi1 = jnp.stack([jnp.stack([w1f[:Hd], w1b[:Hd]], axis=0),
                     jnp.stack([w1f[Hd:], w1b[Hd:]], axis=0)], axis=0).astype(bf16)      # (2,2,Hd,G)
    bi1 = jnp.stack([params["b_ih_l1"][None, :],
                     params["b_ih_l1_reverse"][None, :]]).astype(f32)                    # (2, 1, G)

    # Recurrent weights: per layer, stacked block [Wh_fwd ; Wh_bwd] for the fused dot.
    wh = jnp.stack([jnp.concatenate([t(params["w_hh_l0"]), t(params["w_hh_l0_reverse"])], axis=0),
                    jnp.concatenate([t(params["w_hh_l1"]), t(params["w_hh_l1_reverse"])], axis=0)]
                   ).astype(bf16)                                                        # (2, 2Hd, G)
    bh = jnp.stack([jnp.stack([params["b_hh_l0"][None, :], params["b_hh_l0_reverse"][None, :]]),
                    jnp.stack([params["b_hh_l1"][None, :], params["b_hh_l1_reverse"][None, :]])]
                   ).astype(f32)                                                         # (2, 2, 1, G)

    lin_w = jnp.asarray(params["lin_w"]).reshape(1, H)
    lw = jnp.stack([lin_w[:, :Hd].reshape(1, 1, Hd),
                    lin_w[:, Hd:].reshape(1, 1, Hd)]).astype(f32)                        # (2, 1, 1, Hd)
    lb = jnp.asarray(params["lin_b"]).reshape(1, 1).astype(f32)
    return (wi0, bi0, wi1, bi1, wh, bh, lw, lb)


# ----------------------------- pure-JAX reference -----------------------------
def _gru_direction_ref(x, w_ih, w_hh, b_ih, b_hh, reverse):
    B, S, _ = x.shape
    Hd = w_hh.shape[1]

    def step(h, x_t):
        gi = x_t @ w_ih.T + b_ih
        gh = h @ w_hh.T + b_hh
        r = jax.nn.sigmoid(gi[:, :Hd] + gh[:, :Hd])
        z = jax.nn.sigmoid(gi[:, Hd:2 * Hd] + gh[:, Hd:2 * Hd])
        n = jnp.tanh(gi[:, 2 * Hd:] + r * gh[:, 2 * Hd:])
        h_new = (1.0 - z) * n + z * h
        return h_new, h_new

    xs = jnp.swapaxes(x, 0, 1)
    if reverse:
        xs = xs[::-1]
    _, ys = lax.scan(step, jnp.zeros((B, Hd), jnp.float32), xs)
    if reverse:
        ys = ys[::-1]
    return jnp.swapaxes(ys, 0, 1)


def detection_network_ref(x, params):
    cur = x
    for layer in range(2):
        fwd = _gru_direction_ref(cur, params[f"w_ih_l{layer}"], params[f"w_hh_l{layer}"],
                                 params[f"b_ih_l{layer}"], params[f"b_hh_l{layer}"], False)
        bwd = _gru_direction_ref(cur, params[f"w_ih_l{layer}_reverse"], params[f"w_hh_l{layer}_reverse"],
                                 params[f"b_ih_l{layer}_reverse"], params[f"b_hh_l{layer}_reverse"], True)
        cur = jnp.concatenate([fwd, bwd], axis=-1)
    logits = cur @ params["lin_w"].T + params["lin_b"]
    return jax.nn.sigmoid(logits)


# ----------------------------------- main -------------------------------------
if __name__ == "__main__":
    B, S, H = 2, 8, 32          # batch, seq, hidden_size (hidden_size // 2 = 16 per GRU direction)
    key = jax.random.PRNGKey(0)
    kx, kp = jax.random.split(key)
    hidden_states = jax.random.normal(kx, (B, S, H), jnp.float32)

    params = init_params(kp, H)
    packed = pack_params(params, H)

    prob = detection_network(hidden_states, packed)
    prob = jax.block_until_ready(prob)

    ref = detection_network_ref(hidden_states, params)
    assert prob.shape == (B, S, 1)
    # bf16 MXU operands / gate scratch => compare against the f32 reference at bf16-level tolerance.
    np.testing.assert_allclose(np.asarray(prob), np.asarray(ref), rtol=2e-2, atol=2e-2)
    print("KERNEL_OK")
</pallas_src>

<mosaic_0001>
module attributes {stable_mosaic.version = 11 : i64} {
  func.func @_detection_kernel(%arg0: i32, %arg1: memref<8x8x32xbf16, #tpu.memory_space<vmem>>, %arg2: memref<2x32x48xbf16, #tpu.memory_space<vmem>>, %arg3: memref<2x1x48xf32, #tpu.memory_space<vmem>>, %arg4: memref<2x2x16x48xbf16, #tpu.memory_space<vmem>>, %arg5: memref<2x1x48xf32, #tpu.memory_space<vmem>>, %arg6: memref<2x32x48xbf16, #tpu.memory_space<vmem>>, %arg7: memref<2x2x1x48xf32, #tpu.memory_space<vmem>>, %arg8: memref<2x1x1x16xf32, #tpu.memory_space<vmem>>, %arg9: memref<1x1xf32, #tpu.memory_space<vmem>>, %arg10: memref<8x8xf32, #tpu.memory_space<vmem>>, %arg11: memref<8x8x48xbf16, #tpu.memory_space<vmem>>, %arg12: memref<8x8x48xbf16, #tpu.memory_space<vmem>>, %arg13: memref<8x8x16xf32, #tpu.memory_space<vmem>>, %arg14: memref<8x8x16xf32, #tpu.memory_space<vmem>>) attributes {dimension_semantics = [#tpu.dimension_semantics<parallel>], iteration_bounds = array<i64: 1>, scalar_prefetch = 0 : i64, scratch_operands = 4 : i64, tpu.core_type = #tpu.core_type<tc>, window_params = [{transform_indices = @transform_0, window_bounds = array<i64: 8, 8, 32>}, {pipeline_mode = #tpu.pipeline_mode<synchronous>, transform_indices = @transform_1, window_bounds = array<i64: 2, 32, 48>}, {pipeline_mode = #tpu.pipeline_mode<synchronous>, transform_indices = @transform_2, window_bounds = array<i64: 2, 1, 48>}, {pipeline_mode = #tpu.pipeline_mode<synchronous>, transform_indices = @transform_3, window_bounds = array<i64: 2, 2, 16, 48>}, {pipeline_mode = #tpu.pipeline_mode<synchronous>, transform_indices = @transform_4, window_bounds = array<i64: 2, 1, 48>}, {pipeline_mode = #tpu.pipeline_mode<synchronous>, transform_indices = @transform_5, window_bounds = array<i64: 2, 32, 48>}, {pipeline_mode = #tpu.pipeline_mode<synchronous>, transform_indices = @transform_6, window_bounds = array<i64: 2, 2, 1, 48>}, {pipeline_mode = #tpu.pipeline_mode<synchronous>, transform_indices = @transform_7, window_bounds = array<i64: 2, 1, 1, 16>}, {pipeline_mode = #tpu.pipeline_mode<synchronous>, transform_indices = @transform_8, window_bounds = array<i64: 1, 1>}, {transform_indices = @transform_9, window_bounds = array<i64: 8, 8>}]} {
    %0 = tpu.iota {dimensions = array<i32: 0>} : vector<16x32xi32>
    %1 = tpu.iota {dimensions = array<i32: 1>} : vector<16x32xi32>
    %c8_i32 = arith.constant 8 : i32
    %2 = vector.broadcast %c8_i32 : i32 to vector<16x32xi32>
    %3 = arith.cmpi slt, %0, %2 : vector<16x32xi32>
    %c16_i32 = arith.constant 16 : i32
    %4 = vector.broadcast %c16_i32 : i32 to vector<16x32xi32>
    %5 = arith.cmpi slt, %1, %4 : vector<16x32xi32>
    %6 = arith.xori %3, %5 : vector<16x32xi1>
    %cst = arith.constant dense<true> : vector<16x32xi1>
    %7 = arith.xori %6, %cst : vector<16x32xi1>
    %8 = arith.extui %7 : vector<16x32xi1> to vector<16x32xi32>
    %9 = arith.sitofp %8 : vector<16x32xi32> to vector<16x32xf32>
    %c0 = arith.constant 0 : index
    %c0_0 = arith.constant 0 : index
    %c0_1 = arith.constant 0 : index
    %10 = vector.load %arg1[%c0, %c0_0, %c0_1] : memref<8x8x32xbf16, #tpu.memory_space<vmem>>, vector<8x8x32xbf16>
    %11 = vector.shape_cast %10 : vector<8x8x32xbf16> to vector<64x32xbf16>
    %c0_2 = arith.constant 0 : index
    %c0_3 = arith.constant 0 : index
    %c0_4 = arith.constant 0 : index
    %12 = vector.load %arg2[%c0_2, %c0_3, %c0_4] : memref<2x32x48xbf16, #tpu.memory_space<vmem>>, vector<1x32x48xbf16>
    %13 = vector.shape_cast %12 : vector<1x32x48xbf16> to vector<32x48xbf16>
    %cst_5 = arith.constant dense<0.000000e+00> : vector<64x48xf32>
    %14 = tpu.matmul %11, %13, %cst_5 {dimension_numbers = #tpu.dot_dimension_numbers<[1], [0], [0], [1], [0, 0, 1, 1], [], []>} : vector<64x32xbf16>, vector<32x48xbf16>, vector<64x48xf32> -> vector<64x48xf32>
    %c0_6 = arith.constant 0 : index
    %c0_7 = arith.constant 0 : index
    %c0_8 = arith.constant 0 : index
    %15 = vector.load %arg3[%c0_6, %c0_7, %c0_8] : memref<2x1x48xf32, #tpu.memory_space<vmem>>, vector<1x1x48xf32>
    %16 = vector.shape_cast %15 : vector<1x1x48xf32> to vector<1x48xf32>
    %17 = vector.broadcast %16 : vector<1x48xf32> to vector<64x48xf32>
    %18 = arith.addf %14, %17 : vector<64x48xf32>
    %19 = vector.shape_cast %18 : vector<64x48xf32> to vector<8x8x48xf32>
    %20 = arith.truncf %19 : vector<8x8x48xf32> to vector<8x8x48xbf16>
    %c0_9 = arith.constant 0 : index
    %c0_10 = arith.constant 0 : index
    %c0_11 = arith.constant 0 : index
    %21 = vector.load %arg11[%c0_9, %c0_10, %c0_11] : memref<8x8x48xbf16, #tpu.memory_space<vmem>>, vector<8x8x48xbf16>
    tpu.vector_store %arg11[%c0_9, %c0_10, %c0_11], %20 {strides = array<i32>} : memref<8x8x48xbf16, #tpu.memory_space<vmem>>, vector<8x8x48xbf16>,
    %c1 = arith.constant 1 : index
    %c0_12 = arith.constant 0 : index
    %c0_13 = arith.constant 0 : index
    %22 = vector.load %arg2[%c1, %c0_12, %c0_13] : memref<2x32x48xbf16, #tpu.memory_space<vmem>>, vector<1x32x48xbf16>
    %23 = vector.shape_cast %22 : vector<1x32x48xbf16> to vector<32x48xbf16>
    %cst_14 = arith.constant dense<0.000000e+00> : vector<64x48xf32>
    %24 = tpu.matmul %11, %23, %cst_14 {dimension_numbers = #tpu.dot_dimension_numbers<[1], [0], [0], [1], [0, 0, 1, 1], [], []>} : vector<64x32xbf16>, vector<32x48xbf16>, vector<64x48xf32> -> vector<64x48xf32>
    %c1_15 = arith.constant 1 : index
    %c0_16 = arith.constant 0 : index
    %c0_17 = arith.constant 0 : index
    %25 = vector.load %arg3[%c1_15, %c0_16, %c0_17] : memref<2x1x48xf32, #tpu.memory_space<vmem>>, vector<1x1x48xf32>
    %26 = vector.shape_cast %25 : vector<1x1x48xf32> to vector<1x48xf32>
    %27 = vector.broadcast %26 : vector<1x48xf32> to vector<64x48xf32>
    %28 = arith.addf %24, %27 : vector<64x48xf32>
    %29 = vector.shape_cast %28 : vector<64x48xf32> to vector<8x8x48xf32>
    %30 = arith.truncf %29 : vector<8x8x48xf32> to vector<8x8x48xbf16>
    %c0_18 = arith.constant 0 : index
    %c0_19 = arith.constant 0 : index
    %c0_20 = arith.constant 0 : index
    %31 = vector.load %arg12[%c0_18, %c0_19, %c0_20] : memref<8x8x48xbf16, #tpu.memory_space<vmem>>, vector<8x8x48xbf16>
    tpu.vector_store %arg12[%c0_18, %c0_19, %c0_20], %30 {strides = array<i32>} : memref<8x8x48xbf16, #tpu.memory_space<vmem>>, vector<8x8x48xbf16>,
    %c0_21 = arith.constant 0 : index
    %c0_22 = arith.constant 0 : index
    %c0_23 = arith.constant 0 : index
    %32 = vector.load %arg6[%c0_21, %c0_22, %c0_23] : memref<2x32x48xbf16, #tpu.memory_space<vmem>>, vector<1x32x48xbf16>
    %33 = vector.shape_cast %32 : vector<1x32x48xbf16> to vector<32x48xbf16>
    %c0_24 = arith.constant 0 : index
    %c0_25 = arith.constant 0 : index
    %c0_26 = arith.constant 0 : index
    %c0_27 = arith.constant 0 : index
    %34 = vector.load %arg7[%c0_24, %c0_25, %c0_26, %c0_27] : memref<2x2x1x48xf32, #tpu.memory_space<vmem>>, vector<1x1x1x48xf32>
    %35 = vector.shape_cast %34 : vector<1x1x1x48xf32> to vector<1x48xf32>
    %36 = vector.shape_cast %35 : vector<1x48xf32> to vector<1x48xf32>
    %37 = vector.broadcast %36 : vector<1x48xf32> to vector<8x48xf32>
    %c0_28 = arith.constant 0 : index
    %c1_29 = arith.constant 1 : index
    %c0_30 = arith.constant 0 : index
    %c0_31 = arith.constant 0 : index
    %38 = vector.load %arg7[%c0_28, %c1_29, %c0_30, %c0_31] : memref<2x2x1x48xf32, #tpu.memory_space<vmem>>, vector<1x1x1x48xf32>
    %39 = vector.shape_cast %38 : vector<1x1x1x48xf32> to vector<1x48xf32>
    %40 = vector.shape_cast %39 : vector<1x48xf32> to vector<1x48xf32>
    %41 = vector.broadcast %40 : vector<1x48xf32> to vector<8x48xf32>
    %42 = tpu.concatenate %37, %41 in 0 : vector<8x48xf32>, vector<8x48xf32> -> vector<16x48xf32>
    %cst_32 = arith.constant 0.000000e+00 : f32
    %43 = vector.broadcast %cst_32 : f32 to vector<16x32xf32>
    %c0_i32 = arith.constant 0 : i32
    %c7_i32 = arith.constant 7 : i32
    %44 = arith.subi %c7_i32, %c0_i32 : i32
    %45 = arith.index_cast %c0_i32 : i32 to index
    %c0_33 = arith.constant 0 : index
    %c0_34 = arith.constant 0 : index
    %46 = vector.load %arg11[%45, %c0_33, %c0_34] : memref<8x8x48xbf16, #tpu.memory_space<vmem>>, vector<1x8x48xbf16>
    %47 = vector.shape_cast %46 : vector<1x8x48xbf16> to vector<8x48xbf16>
    %48 = arith.extf %47 : vector<8x48xbf16> to vector<8x48xf32>
    %49 = arith.index_cast %44 : i32 to index
    %c0_35 = arith.constant 0 : index
    %c0_36 = arith.constant 0 : index
    %50 = vector.load %arg12[%49, %c0_35, %c0_36] : memref<8x8x48xbf16, #tpu.memory_space<vmem>>, vector<1x8x48xbf16>
    %51 = vector.shape_cast %50 : vector<1x8x48xbf16> to vector<8x48xbf16>
    %52 = arith.extf %51 : vector<8x48xbf16> to vector<8x48xf32>
    %53 = tpu.concatenate %48, %52 in 0 : vector<8x48xf32>, vector<8x48xf32> -> vector<16x48xf32>
    %54 = arith.truncf %43 : vector<16x32xf32> to vector<16x32xbf16>
    %cst_37 = arith.constant dense<0.000000e+00> : vector<16x48xf32>
    %55 = tpu.matmul %54, %33, %cst_37 {dimension_numbers = #tpu.dot_dimension_numbers<[1], [0], [0], [1], [0, 0, 1, 1], [], []>} : vector<16x32xbf16>, vector<32x48xbf16>, vector<16x48xf32> -> vector<16x48xf32>
    %56 = arith.addf %55, %42 : vector<16x48xf32>
    %57 = vector.extract_strided_slice %53 {offsets = [0, 0], sizes = [16, 16], strides = [1, 1]} : vector<16x48xf32> to vector<16x16xf32>
    %58 = vector.extract_strided_slice %56 {offsets = [0, 0], sizes = [16, 16], strides = [1, 1]} : vector<16x48xf32> to vector<16x16xf32>
    %59 = arith.addf %57, %58 : vector<16x16xf32>
    %60 = arith.negf %59 : vector<16x16xf32>
    %61 = math.exp %60 : vector<16x16xf32>
    %cst_38 = arith.constant 1.000000e+00 : f32
    %62 = vector.broadcast %cst_38 : f32 to vector<16x16xf32>
    %63 = arith.addf %62, %61 : vector<16x16xf32>
    %64 = arith.divf %62, %63 : vector<16x16xf32>
    %65 = vector.extract_strided_slice %53 {offsets = [0, 16], sizes = [16, 16], strides = [1, 1]} : vector<16x48xf32> to vector<16x16xf32>
    %66 = vector.extract_strided_slice %56 {offsets = [0, 16], sizes = [16, 16], strides = [1, 1]} : vector<16x48xf32> to vector<16x16xf32>
    %67 = arith.addf %65, %66 : vector<16x16xf32>
    %68 = arith.negf %67 : vector<16x16xf32>
    %69 = math.exp %68 : vector<16x16xf32>
    %cst_39 = arith.constant 1.000000e+00 : f32
    %70 = vector.broadcast %cst_39 : f32 to vector<16x16xf32>
    %71 = arith.addf %70, %69 : vector<16x16xf32>
    %72 = arith.divf %70, %71 : vector<16x16xf32>
    %73 = vector.extract_strided_slice %53 {offsets = [0, 32], sizes = [16, 16], strides = [1, 1]} : vector<16x48xf32> to vector<16x16xf32>
    %74 = vector.extract_strided_slice %56 {offsets = [0, 32], sizes = [16, 16], strides = [1, 1]} : vector<16x48xf32> to vector<16x16xf32>
    %75 = arith.mulf %64, %74 : vector<16x16xf32>
    %76 = arith.addf %73, %75 : vector<16x16xf32>
    %77 = math.tanh %76 : vector<16x16xf32>
    %78 = vector.extract_strided_slice %43 {offsets = [0, 0], sizes = [16, 16], strides = [1, 1]} : vector<16x32xf32> to vector<16x16xf32>
    %79 = vector.extract_strided_slice %43 {offsets = [0, 16], sizes = [16, 16], strides = [1, 1]} : vector<16x32xf32> to vector<16x16xf32>
    %80 = arith.addf %78, %79 : vector<16x16xf32>
    %81 = arith.subf %80, %77 : vector<16x16xf32>
    %82 = arith.mulf %72, %81 : vector<16x16xf32>
    %83 = arith.addf %77, %82 : vector<16x16xf32>
    %84 = vector.extract_strided_slice %83 {offsets = [0, 0], sizes = [8, 16], strides = [1, 1]} : vector<16x16xf32> to vector<8x16xf32>
    %85 = arith.index_cast %c0_i32 : i32 to index
    %c0_40 = arith.constant 0 : index
    %c0_41 = arith.constant 0 : index
    %86 = vector.load %arg13[%85, %c0_40, %c0_41] : memref<8x8x16xf32, #tpu.memory_space<vmem>>, vector<1x8x16xf32>
    %87 = vector.shape_cast %86 : vector<1x8x16xf32> to vector<8x16xf32>
    %88 = vector.shape_cast %84 : vector<8x16xf32> to vector<1x8x16xf32>
    tpu.vector_store %arg13[%85, %c0_40, %c0_41], %88 {strides = array<i32>} : memref<8x8x16xf32, #tpu.memory_space<vmem>>, vector<1x8x16xf32>,
    %89 = vector.extract_strided_slice %83 {offsets = [8, 0], sizes = [8, 16], strides = [1, 1]} : vector<16x16xf32> to vector<8x16xf32>
    %90 = arith.index_cast %44 : i32 to index
    %c0_42 = arith.constant 0 : index
    %c0_43 = arith.constant 0 : index
    %91 = vector.load %arg14[%90, %c0_42, %c0_43] : memref<8x8x16xf32, #tpu.memory_space<vmem>>, vector<1x8x16xf32>
    %92 = vector.shape_cast %91 : vector<1x8x16xf32> to vector<8x16xf32>
    %93 = vector.shape_cast %89 : vector<8x16xf32> to vector<1x8x16xf32>
    tpu.vector_store %arg14[%90, %c0_42, %c0_43], %93 {strides = array<i32>} : memref<8x8x16xf32, #tpu.memory_space<vmem>>, vector<1x8x16xf32>,
    %94 = tpu.concatenate %83, %83 in 1 : vector<16x16xf32>, vector<16x16xf32> -> vector<16x32xf32>
    %95 = arith.mulf %94, %9 : vector<16x32xf32>
    %c1_i32 = arith.constant 1 : i32
    %c7_i32_44 = arith.constant 7 : i32
    %96 = arith.subi %c7_i32_44, %c1_i32 : i32
    %97 = arith.index_cast %c1_i32 : i32 to index
    %c0_45 = arith.constant 0 : index
    %c0_46 = arith.constant 0 : index
    %98 = vector.load %arg11[%97, %c0_45, %c0_46] : memref<8x8x48xbf16, #tpu.memory_space<vmem>>, vector<1x8x48xbf16>
    %99 = vector.shape_cast %98 : vector<1x8x48xbf16> to vector<8x48xbf16>
    %100 = arith.extf %99 : vector<8x48xbf16> to vector<8x48xf32>
    %101 = arith.index_cast %96 : i32 to index
    %c0_47 = arith.constant 0 : index
    %c0_48 = arith.constant 0 : index
    %102 = vector.load %arg12[%101, %c0_47, %c0_48] : memref<8x8x48xbf16, #tpu.memory_space<vmem>>, vector<1x8x48xbf16>
    %103 = vector.shape_cast %102 : vector<1x8x48xbf16> to vector<8x48xbf16>
    %104 = arith.extf %103 : vector<8x48xbf16> to vector<8x48xf32>
    %105 = tpu.concatenate %100, %104 in 0 : vector<8x48xf32>, vector<8x48xf32> -> vector<16x48xf32>
    %106 = arith.truncf %95 : vector<16x32xf32> to vector<16x32xbf16>
    %cst_49 = arith.constant dense<0.000000e+00> : vector<16x48xf32>
    %107 = tpu.matmul %106, %33, %cst_49 {dimension_numbers = #tpu.dot_dimension_numbers<[1], [0], [0], [1], [0, 0, 1, 1], [], []>} : vector<16x32xbf16>, vector<32x48xbf16>, vector<16x48xf32> -> vector<16x48xf32>
    %108 = arith.addf %107, %42 : vector<16x48xf32>
    %109 = vector.extract_strided_slice %105 {offsets = [0, 0], sizes = [16, 16], strides = [1, 1]} : vector<16x48xf32> to vector<16x16xf32>
    %110 = vector.extract_strided_slice %108 {offsets = [0, 0], sizes = [16, 16], strides = [1, 1]} : vector<16x48xf32> to vector<16x16xf32>
    %111 = arith.addf %109, %110 : vector<16x16xf32>
    %112 = arith.negf %111 : vector<16x16xf32>
    %113 = math.exp %112 : vector<16x16xf32>
    %cst_50 = arith.constant 1.000000e+00 : f32
    %114 = vector.broadcast %cst_50 : f32 to vector<16x16xf32>
    %115 = arith.addf %114, %113 : vector<16x16xf32>
    %116 = arith.divf %114, %115 : vector<16x16xf32>
    %117 = vector.extract_strided_slice %105 {offsets = [0, 16], sizes = [16, 16], strides = [1, 1]} : vector<16x48xf32> to vector<16x16xf32>
    %118 = vector.extract_strided_slice %108 {offsets = [0, 16], sizes = [16, 16], strides = [1, 1]} : vector<16x48xf32> to vector<16x16xf32>
    %119 = arith.addf %117, %118 : vector<16x16xf32>
    %120 = arith.negf %119 : vector<16x16xf32>
    %121 = math.exp %120 : vector<16x16xf32>
    %cst_51 = arith.constant 1.000000e+00 : f32
    %122 = vector.broadcast %cst_51 : f32 to vector<16x16xf32>
    %123 = arith.addf %122, %121 : vector<16x16xf32>
    %124 = arith.divf %122, %123 : vector<16x16xf32>
    %125 = vector.extract_strided_slice %105 {offsets = [0, 32], sizes = [16, 16], strides = [1, 1]} : vector<16x48xf32> to vector<16x16xf32>
    %126 = vector.extract_strided_slice %108 {offsets = [0, 32], sizes = [16, 16], strides = [1, 1]} : vector<16x48xf32> to vector<16x16xf32>
    %127 = arith.mulf %116, %126 : vector<16x16xf32>
    %128 = arith.addf %125, %127 : vector<16x16xf32>
    %129 = math.tanh %128 : vector<16x16xf32>
    %130 = vector.extract_strided_slice %95 {offsets = [0, 0], sizes = [16, 16], strides = [1, 1]} : vector<16x32xf32> to vector<16x16xf32>
    %131 = vector.extract_strided_slice %95 {offsets = [0, 16], sizes = [16, 16], strides = [1, 1]} : vector<16x32xf32> to vector<16x16xf32>
    %132 = arith.addf %130, %131 : vector<16x16xf32>
    %133 = arith.subf %132, %129 : vector<16x16xf32>
    %134 = arith.mulf %124, %133 : vector<16x16xf32>
    %135 = arith.addf %129, %134 : vector<16x16xf32>
    %136 = vector.extract_strided_slice %135 {offsets = [0, 0], sizes = [8, 16], strides = [1, 1]} : vector<16x16xf32> to vector<8x16xf32>
    %137 = arith.index_cast %c1_i32 : i32 to index
    %c0_52 = arith.constant 0 : index
    %c0_53 = arith.constant 0 : index
    %138 = vector.load %arg13[%137, %c0_52, %c0_53] : memref<8x8x16xf32, #tpu.memory_space<vmem>>, vector<1x8x16xf32>
    %139 = vector.shape_cast %138 : vector<1x8x16xf32> to vector<8x16xf32>
    %140 = vector.shape_cast %136 : vector<8x16xf32> to vector<1x8x16xf32>
    tpu.vector_store %arg13[%137, %c0_52, %c0_53], %140 {strides = array<i32>} : memref<8x8x16xf32, #tpu.memory_space<vmem>>, vector<1x8x16xf32>,
    %141 = vector.extract_strided_slice %135 {offsets = [8, 0], sizes = [8, 16], strides = [1, 1]} : vector<16x16xf32> to vector<8x16xf32>
    %142 = arith.index_cast %96 : i32 to index
    %c0_54 = arith.constant 0 : index
    %c0_55 = arith.constant 0 : index
    %143 = vector.load %arg14[%142, %c0_54, %c0_55] : memref<8x8x16xf32, #tpu.memory_space<vmem>>, vector<1x8x16xf32>
    %144 = vector.shape_cast %143 : vector<1x8x16xf32> to vector<8x16xf32>
    %145 = vector.shape_cast %141 : vector<8x16xf32> to vector<1x8x16xf32>
    tpu.vector_store %arg14[%142, %c0_54, %c0_55], %145 {strides = array<i32>} : memref<8x8x16xf32, #tpu.memory_space<vmem>>, vector<1x8x16xf32>,
    %146 = tpu.concatenate %135, %135 in 1 : vector<16x16xf32>, vector<16x16xf32> -> vector<16x32xf32>
    %147 = arith.mulf %146, %9 : vector<16x32xf32>
    %c2_i32 = arith.constant 2 : i32
    %c7_i32_56 = arith.constant 7 : i32
    %148 = arith.subi %c7_i32_56, %c2_i32 : i32
    %149 = arith.index_cast %c2_i32 : i32 to index
    %c0_57 = arith.constant 0 : index
    %c0_58 = arith.constant 0 : index
    %150 = vector.load %arg11[%149, %c0_57, %c0_58] : memref<8x8x48xbf16, #tpu.memory_space<vmem>>, vector<1x8x48xbf16>
    %151 = vector.shape_cast %150 : vector<1x8x48xbf16> to vector<8x48xbf16>
    %152 = arith.extf %151 : vector<8x48xbf16> to vector<8x48xf32>
    %153 = arith.index_cast %148 : i32 to index
    %c0_59 = arith.constant 0 : index
    %c0_60 = arith.constant 0 : index
    %154 = vector.load %arg12[%153, %c0_59, %c0_60] : memref<8x8x48xbf16, #tpu.memory_space<vmem>>, vector<1x8x48xbf16>
    %155 = vector.shape_cast %154 : vector<1x8x48xbf16> to vector<8x48xbf16>
    %156 = arith.extf %155 : vector<8x48xbf16> to vector<8x48xf32>
    %157 = tpu.concatenate %152, %156 in 0 : vector<8x48xf32>, vector<8x48xf32> -> vector<16x48xf32>
    %158 = arith.truncf %147 : vector<16x32xf32> to vector<16x32xbf16>
    %cst_61 = arith.constant dense<0.000000e+00> : vector<16x48xf32>
    %159 = tpu.matmul %158, %33, %cst_61 {dimension_numbers = #tpu.dot_dimension_numbers<[1], [0], [0], [1], [0, 0, 1, 1], [], []>} : vector<16x32xbf16>, vector<32x48xbf16>, vector<16x48xf32> -> vector<16x48xf32>
    %160 = arith.addf %159, %42 : vector<16x48xf32>
    %161 = vector.extract_strided_slice %157 {offsets = [0, 0], sizes = [16, 16], strides = [1, 1]} : vector<16x48xf32> to vector<16x16xf32>
    %162 = vector.extract_strided_slice %160 {offsets = [0, 0], sizes = [16, 16], strides = [1, 1]} : vector<16x48xf32> to vector<16x16xf32>
    %163 = arith.addf %161, %162 : vector<16x16xf32>
    %164 = arith.negf %163 : vector<16x16xf32>
    %165 = math.exp %164 : vector<16x16xf32>
    %cst_62 = arith.constant 1.000000e+00 : f32
    %166 = vector.broadcast %cst_62 : f32 to vector<16x16xf32>
    %167 = arith.addf %166, %165 : vector<16x16xf32>
    %168 = arith.divf %166, %167 : vector<16x16xf32>
    %169 = vector.extract_strided_slice %157 {offsets = [0, 16], sizes = [16, 16], strides = [1, 1]} : vector<16x48xf32> to vector<16x16xf32>
    %170 = vector.extract_strided_slice %160 {offsets = [0, 16], sizes = [16, 16], strides = [1, 1]} : vector<16x48xf32> to vector<16x16xf32>
    %171 = arith.addf %169, %170 : vector<16x16xf32>
    %172 = arith.negf %171 : vector<16x16xf32>
    %173 = math.exp %172 : vector<16x16xf32>
    %cst_63 = arith.constant 1.000000e+00 : f32
    %174 = vector.broadcast %cst_63 : f32 to vector<16x16xf32>
    %175 = arith.addf %174, %173 : vector<16x16xf32>
    %176 = arith.divf %174, %175 : vector<16x16xf32>
    %177 = vector.extract_strided_slice %157 {offsets = [0, 32], sizes = [16, 16], strides = [1, 1]} : vector<16x48xf32> to vector<16x16xf32>
    %178 = vector.extract_strided_slice %160 {offsets = [0, 32], sizes = [16, 16], strides = [1, 1]} : vector<16x48xf32> to vector<16x16xf32>
    %179 = arith.mulf %168, %178 : vector<16x16xf32>
    %180 = arith.addf %177, %179 : vector<16x16xf32>
    %181 = math.tanh %180 : vector<16x16xf32>
    %182 = vector.extract_strided_slice %147 {offsets = [0, 0], sizes = [16, 16], strides = [1, 1]} : vector<16x32xf32> to vector<16x16xf32>
    %183 = vector.extract_strided_slice %147 {offsets = [0, 16], sizes = [16, 16], strides = [1, 1]} : vector<16x32xf32> to vector<16x16xf32>
    %184 = arith.addf %182, %183 : vector<16x16xf32>
    %185 = arith.subf %184, %181 : vector<16x16xf32>
    %186 = arith.mulf %176, %185 : vector<16x16xf32>
    %187 = arith.addf %181, %186 : vector<16x16xf32>
    %188 = vector.extract_strided_slice %187 {offsets = [0, 0], sizes = [8, 16], strides = [1, 1]} : vector<16x16xf32> to vector<8x16xf32>
    %189 = arith.index_cast %c2_i32 : i32 to index
    %c0_64 = arith.constant 0 : index
    %c0_65 = arith.constant 0 : index
    %190 = vector.load %arg13[%189, %c0_64, %c0_65] : memref<8x8x16xf32, #tpu.memory_space<vmem>>, vector<1x8x16xf32>
    %191 = vector.shape_cast %190 : vector<1x8x16xf32> to vector<8x16xf32>
    %192 = vector.shape_cast %188 : vector<8x16xf32> to vector<1x8x16xf32>
    tpu.vector_store %arg13[%189, %c0_64, %c0_65], %192 {strides = array<i32>} : memref<8x8x16xf32, #tpu.memory_space<vmem>>, vector<1x8x16xf32>,
    %193 = vector.extract_strided_slice %187 {offsets = [8, 0], sizes = [8, 16], strides = [1, 1]} : vector<16x16xf32> to vector<8x16xf32>
    %194 = arith.index_cast %148 : i32 to index
    %c0_66 = arith.constant 0 : index
    %c0_67 = arith.constant 0 : index
    %195 = vector.load %arg14[%194, %c0_66, %c0_67] : memref<8x8x16xf32, #tpu.memory_space<vmem>>, vector<1x8x16xf32>
    %196 = vector.shape_cast %195 : vector<1x8x16xf32> to vector<8x16xf32>
    %197 = vector.shape_cast %193 : vector<8x16xf32> to vector<1x8x16xf32>
    tpu.vector_store %arg14[%194, %c0_66, %c0_67], %197 {strides = array<i32>} : memref<8x8x16xf32, #tpu.memory_space<vmem>>, vector<1x8x16xf32>,
    %198 = tpu.concatenate %187, %187 in 1 : vector<16x16xf32>, vector<16x16xf32> -> vector<16x32xf32>
    %199 = arith.mulf %198, %9 : vector<16x32xf32>
    %c3_i32 = arith.constant 3 : i32
    %c7_i32_68 = arith.constant 7 : i32
    %200 = arith.subi %c7_i32_68, %c3_i32 : i32
    %201 = arith.index_cast %c3_i32 : i32 to index
    %c0_69 = arith.constant 0 : index
    %c0_70 = arith.constant 0 : index
    %202 = vector.load %arg11[%201, %c0_69, %c0_70] : memref<8x8x48xbf16, #tpu.memory_space<vmem>>, vector<1x8x48xbf16>
    %203 = vector.shape_cast %202 : vector<1x8x48xbf16> to vector<8x48xbf16>
    %204 = arith.extf %203 : vector<8x48xbf16> to vector<8x48xf32>
    %205 = arith.index_cast %200 : i32 to index
    %c0_71 = arith.constant 0 : index
    %c0_72 = arith.constant 0 : index
    %206 = vector.load %arg12[%205, %c0_71, %c0_72] : memref<8x8x48xbf16, #tpu.memory_space<vmem>>, vector<1x8x48xbf16>
    %207 = vector.shape_cast %206 : vector<1x8x48xbf16> to vector<8x48xbf16>
    %208 = arith.extf %207 : vector<8x48xbf16> to vector<8x48xf32>
    %209 = tpu.concatenate %204, %208 in 0 : vector<8x48xf32>, vector<8x48xf32> -> vector<16x48xf32>
    %210 = arith.truncf %199 : vector<16x32xf32> to vector<16x32xbf16>
    %cst_73 = arith.constant dense<0.000000e+00> : vector<16x48xf32>
    %211 = tpu.matmul %210, %33, %cst_73 {dimension_numbers = #tpu.dot_dimension_numbers<[1], [0], [0], [1], [0, 0, 1, 1], [], []>} : vector<16x32xbf16>, vector<32x48xbf16>, vector<16x48xf32> -> vector<16x48xf32>
    %212 = arith.addf %211, %42 : vector<16x48xf32>
    %213 = vector.extract_strided_slice %209 {offsets = [0, 0], sizes = [16, 16], strides = [1, 1]} : vector<16x48xf32> to vector<16x16xf32>
    %214 = vector.extract_strided_slice %212 {offsets = [0, 0], sizes = [16, 16], strides = [1, 1]} : vector<16x48xf32> to vector<16x16xf32>
    %215 = arith.addf %213, %214 : vector<16x16xf32>
    %216 = arith.negf %215 : vector<16x16xf32>
    %217 = math.exp %216 : vector<16x16xf32>
    %cst_74 = arith.constant 1.000000e+00 : f32
    %218 = vector.broadcast %cst_74 : f32 to vector<16x16xf32>
    %219 = arith.addf %218, %217 : vector<16x16xf32>
    %220 = arith.divf %218, %219 : vector<16x16xf32>
    %221 = vector.extract_strided_slice %209 {offsets = [0, 16], sizes = [16, 16], strides = [1, 1]} : vector<16x48xf32> to vector<16x16xf32>
    %222 = vector.extract_strided_slice %212 {offsets = [0, 16], sizes = [16, 16], strides = [1, 1]} : vector<16x48xf32> to vector<16x16xf32>
    %223 = arith.addf %221, %222 : vector<16x16xf32>
    %224 = arith.negf %223 : vector<16x16xf32>
    %225 = math.exp %224 : vector<16x16xf32>
    %cst_75 = arith.constant 1.000000e+00 : f32
    %226 = vector.broadcast %cst_75 : f32 to vector<16x16xf32>
    %227 = arith.addf %226, %225 : vector<16x16xf32>
    %228 = arith.divf %226, %227 : vector<16x16xf32>
    %229 = vector.extract_strided_slice %209 {offsets = [0, 32], sizes = [16, 16], strides = [1, 1]} : vector<16x48xf32> to vector<16x16xf32>
    %230 = vector.extract_strided_slice %212 {offsets = [0, 32], sizes = [16, 16], strides = [1, 1]} : vector<16x48xf32> to vector<16x16xf32>
    %231 = arith.mulf %220, %230 : vector<16x16xf32>
    %232 = arith.addf %229, %231 : vector<16x16xf32>
    %233 = math.tanh %232 : vector<16x16xf32>
    %234 = vector.extract_strided_slice %199 {offsets = [0, 0], sizes = [16, 16], strides = [1, 1]} : vector<16x32xf32> to vector<16x16xf32>
    %235 = vector.extract_strided_slice %199 {offsets = [0, 16], sizes = [16, 16], strides = [1, 1]} : vector<16x32xf32> to vector<16x16xf32>
    %236 = arith.addf %234, %235 : vector<16x16xf32>
    %237 = arith.subf %236, %233 : vector<16x16xf32>
    %238 = arith.mulf %228, %237 : vector<16x16xf32>
    %239 = arith.addf %233, %238 : vector<16x16xf32>
    %240 = vector.extract_strided_slice %239 {offsets = [0, 0], sizes = [8, 16], strides = [1, 1]} : vector<16x16xf32> to vector<8x16xf32>
    %241 = arith.index_cast %c3_i32 : i32 to index
    %c0_76 = arith.constant 0 : index
    %c0_77 = arith.constant 0 : index
    %242 = vector.load %arg13[%241, %c0_76, %c0_77] : memref<8x8x16xf32, #tpu.memory_space<vmem>>, vector<1x8x16xf32>
    %243 = vector.shape_cast %242 : vector<1x8x16xf32> to vector<8x16xf32>
    %244 = vector.shape_cast %240 : vector<8x16xf32> to vector<1x8x16xf32>
    tpu.vector_store %arg13[%241, %c0_76, %c0_77], %244 {strides = array<i32>} : memref<8x8x16xf32, #tpu.memory_space<vmem>>, vector<1x8x16xf32>,
    %245 = vector.extract_strided_slice %239 {offsets = [8, 0], sizes = [8, 16], strides = [1, 1]} : vector<16x16xf32> to vector<8x16xf32>
    %246 = arith.index_cast %200 : i32 to index
    %c0_78 = arith.constant 0 : index
    %c0_79 = arith.constant 0 : index
    %247 = vector.load %arg14[%246, %c0_78, %c0_79] : memref<8x8x16xf32, #tpu.memory_space<vmem>>, vector<1x8x16xf32>
    %248 = vector.shape_cast %247 : vector<1x8x16xf32> to vector<8x16xf32>
    %249 = vector.shape_cast %245 : vector<8x16xf32> to vector<1x8x16xf32>
    tpu.vector_store %arg14[%246, %c0_78, %c0_79], %249 {strides = array<i32>} : memref<8x8x16xf32, #tpu.memory_space<vmem>>, vector<1x8x16xf32>,
    %250 = tpu.concatenate %239, %239 in 1 : vector<16x16xf32>, vector<16x16xf32> -> vector<16x32xf32>
    %251 = arith.mulf %250, %9 : vector<16x32xf32>
    %c4_i32 = arith.constant 4 : i32
    %c7_i32_80 = arith.constant 7 : i32
    %252 = arith.subi %c7_i32_80, %c4_i32 : i32
    %253 = arith.index_cast %c4_i32 : i32 to index
    %c0_81 = arith.constant 0 : index
    %c0_82 = arith.constant 0 : index
    %254 = vector.load %arg11[%253, %c0_81, %c0_82] : memref<8x8x48xbf16, #tpu.memory_space<vmem>>, vector<1x8x48xbf16>
    %255 = vector.shape_cast %254 : vector<1x8x48xbf16> to vector<8x48xbf16>
    %256 = arith.extf %255 : vector<8x48xbf16> to vector<8x48xf32>
    %257 = arith.index_cast %252 : i32 to index
    %c0_83 = arith.constant 0 : index
    %c0_84 = arith.constant 0 : index
    %258 = vector.load %arg12[%257, %c0_83, %c0_84] : memref<8x8x48xbf16, #tpu.memory_space<vmem>>, vector<1x8x48xbf16>
    %259 = vector.shape_cast %258 : vector<1x8x48xbf16> to vector<8x48xbf16>
    %260 = arith.extf %259 : vector<8x48xbf16> to vector<8x48xf32>
    %261 = tpu.concatenate %256, %260 in 0 : vector<8x48xf32>, vector<8x48xf32> -> vector<16x48xf32>
    %262 = arith.truncf %251 : vector<16x32xf32> to vector<16x32xbf16>
    %cst_85 = arith.constant dense<0.000000e+00> : vector<16x48xf32>
    %263 = tpu.matmul %262, %33, %cst_85 {dimension_numbers = #tpu.dot_dimension_numbers<[1], [0], [0], [1], [0, 0, 1, 1], [], []>} : vector<16x32xbf16>, vector<32x48xbf16>, vector<16x48xf32> -> vector<16x48xf32>
    %264 = arith.addf %263, %42 : vector<16x48xf32>
    %265 = vector.extract_strided_slice %261 {offsets = [0, 0], sizes = [16, 16], strides = [1, 1]} : vector<16x48xf32> to vector<16x16xf32>
    %266 = vector.extract_strided_slice %264 {offsets = [0, 0], sizes = [16, 16], strides = [1, 1]} : vector<16x48xf32> to vector<16x16xf32>
    %267 = arith.addf %265, %266 : vector<16x16xf32>
    %268 = arith.negf %267 : vector<16x16xf32>
    %269 = math.exp %268 : vector<16x16xf32>
    %cst_86 = arith.constant 1.000000e+00 : f32
    %270 = vector.broadcast %cst_86 : f32 to vector<16x16xf32>
    %271 = arith.addf %270, %269 : vector<16x16xf32>
    %272 = arith.divf %270, %271 : vector<16x16xf32>
    %273 = vector.extract_strided_slice %261 {offsets = [0, 16], sizes = [16, 16], strides = [1, 1]} : vector<16x48xf32> to vector<16x16xf32>
    %274 = vector.extract_strided_slice %264 {offsets = [0, 16], sizes = [16, 16], strides = [1, 1]} : vector<16x48xf32> to vector<16x16xf32>
    %275 = arith.addf %273, %274 : vector<16x16xf32>
    %276 = arith.negf %275 : vector<16x16xf32>
    %277 = math.exp %276 : vector<16x16xf32>
    %cst_87 = arith.constant 1.000000e+00 : f32
    %278 = vector.broadcast %cst_87 : f32 to vector<16x16xf32>
    %279 = arith.addf %278, %277 : vector<16x16xf32>
    %280 = arith.divf %278, %279 : vector<16x16xf32>
    %281 = vector.extract_strided_slice %261 {offsets = [0, 32], sizes = [16, 16], strides = [1, 1]} : vector<16x48xf32> to vector<16x16xf32>
    %282 = vector.extract_strided_slice %264 {offsets = [0, 32], sizes = [16, 16], strides = [1, 1]} : vector<16x48xf32> to vector<16x16xf32>
    %283 = arith.mulf %272, %282 : vector<16x16xf32>
    %284 = arith.addf %281, %283 : vector<16x16xf32>
    %285 = math.tanh %284 : vector<16x16xf32>
    %286 = vector.extract_strided_slice %251 {offsets = [0, 0], sizes = [16, 16], strides = [1, 1]} : vector<16x32xf32> to vector<16x16xf32>
    %287 = vector.extract_strided_slice %251 {offsets = [0, 16], sizes = [16, 16], strides = [1, 1]} : vector<16x32xf32> to vector<16x16xf32>
    %288 = arith.addf %286, %287 : vector<16x16xf32>
    %289 = arith.subf %288, %285 : vector<16x16xf32>
    %290 = arith.mulf %280, %289 : vector<16x16xf32>
    %291 = arith.addf %285, %290 : vector<16x16xf32>
    %292 = vector.extract_strided_slice %291 {offsets = [0, 0], sizes = [8, 16], strides = [1, 1]} : vector<16x16xf32> to vector<8x16xf32>
    %293 = arith.index_cast %c4_i32 : i32 to index
    %c0_88 = arith.constant 0 : index
    %c0_89 = arith.constant 0 : index
    %294 = vector.load %arg13[%293, %c0_88, %c0_89] : memref<8x8x16xf32, #tpu.memory_space<vmem>>, vector<1x8x16xf32>
    %295 = vector.shape_cast %294 : vector<1x8x16xf32> to vector<8x16xf32>
    %296 = vector.shape_cast %292 : vector<8x16xf32> to vector<1x8x16xf32>
    tpu.vector_store %arg13[%293, %c0_88, %c0_89], %296 {strides = array<i32>} : memref<8x8x16xf32, #tpu.memory_space<vmem>>, vector<1x8x16xf32>,
    %297 = vector.extract_strided_slice %291 {offsets = [8, 0], sizes = [8, 16], strides = [1, 1]} : vector<16x16xf32> to vector<8x16xf32>
    %298 = arith.index_cast %252 : i32 to index
    %c0_90 = arith.constant 0 : index
    %c0_91 = arith.constant 0 : index
    %299 = vector.load %arg14[%298, %c0_90, %c0_91] : memref<8x8x16xf32, #tpu.memory_space<vmem>>, vector<1x8x16xf32>
    %300 = vector.shape_cast %299 : vector<1x8x16xf32> to vector<8x16xf32>
    %301 = vector.shape_cast %297 : vector<8x16xf32> to vector<1x8x16xf32>
    tpu.vector_store %arg14[%298, %c0_90, %c0_91], %301 {strides = array<i32>} : memref<8x8x16xf32, #tpu.memory_space<vmem>>, vector<1x8x16xf32>,
    %302 = tpu.concatenate %291, %291 in 1 : vector<16x16xf32>, vector<16x16xf32> -> vector<16x32xf32>
    %303 = arith.mulf %302, %9 : vector<16x32xf32>
    %c5_i32 = arith.constant 5 : i32
    %c7_i32_92 = arith.constant 7 : i32
    %304 = arith.subi %c7_i32_92, %c5_i32 : i32
    %305 = arith.index_cast %c5_i32 : i32 to index
    %c0_93 = arith.constant 0 : index
    %c0_94 = arith.constant 0 : index
    %306 = vector.load %arg11[%305, %c0_93, %c0_94] : memref<8x8x48xbf16, #tpu.memory_space<vmem>>, vector<1x8x48xbf16>
    %307 = vector.shape_cast %306 : vector<1x8x48xbf16> to vector<8x48xbf16>
    %308 = arith.extf %307 : vector<8x48xbf16> to vector<8x48xf32>
    %309 = arith.index_cast %304 : i32 to index
    %c0_95 = arith.constant 0 : index
    %c0_96 = arith.constant 0 : index
    %310 = vector.load %arg12[%309, %c0_95, %c0_96] : memref<8x8x48xbf16, #tpu.memory_space<vmem>>, vector<1x8x48xbf16>
    %311 = vector.shape_cast %310 : vector<1x8x48xbf16> to vector<8x48xbf16>
    %312 = arith.extf %311 : vector<8x48xbf16> to vector<8x48xf32>
    %313 = tpu.concatenate %308, %312 in 0 : vector<8x48xf32>, vector<8x48xf32> -> vector<16x48xf32>
    %314 = arith.truncf %303 : vector<16x32xf32> to vector<16x32xbf16>
    %cst_97 = arith.constant dense<0.000000e+00> : vector<16x48xf32>
    %315 = tpu.matmul %314, %33, %cst_97 {dimension_numbers = #tpu.dot_dimension_numbers<[1], [0], [0], [1], [0, 0, 1, 1], [], []>} : vector<16x32xbf16>, vector<32x48xbf16>, vector<16x48xf32> -> vector<16x48xf32>
    %316 = arith.addf %315, %42 : vector<16x48xf32>
    %317 = vector.extract_strided_slice %313 {offsets = [0, 0], sizes = [16, 16], strides = [1, 1]} : vector<16x48xf32> to vector<16x16xf32>
    %318 = vector.extract_strided_slice %316 {offsets = [0, 0], sizes = [16, 16], strides = [1, 1]} : vector<16x48xf32> to vector<16x16xf32>
    %319 = arith.addf %317, %318 : vector<16x16xf32>
    %320 = arith.negf %319 : vector<16x16xf32>
    %321 = math.exp %320 : vector<16x16xf32>
    %cst_98 = arith.constant 1.000000e+00 : f32
    %322 = vector.broadcast %cst_98 : f32 to vector<16x16xf32>
    %323 = arith.addf %322, %321 : vector<16x16xf32>
    %324 = arith.divf %322, %323 : vector<16x16xf32>
    %325 = vector.extract_strided_slice %313 {offsets = [0, 16], sizes = [16, 16], strides = [1, 1]} : vector<16x48xf32> to vector<16x16xf32>
    %326 = vector.extract_strided_slice %316 {offsets = [0, 16], sizes = [16, 16], strides = [1, 1]} : vector<16x48xf32> to vector<16x16xf32>
    %327 = arith.addf %325, %326 : vector<16x16xf32>
    %328 = arith.negf %327 : vector<16x16xf32>
    %329 = math.exp %328 : vector<16x16xf32>
    %cst_99 = arith.constant 1.000000e+00 : f32
    %330 = vector.broadcast %cst_99 : f32 to vector<16x16xf32>
    %331 = arith.addf %330, %329 : vector<16x16xf32>
    %332 = arith.divf %330, %331 : vector<16x16xf32>
    %333 = vector.extract_strided_slice %313 {offsets = [0, 32], sizes = [16, 16], strides = [1, 1]} : vector<16x48xf32> to vector<16x16xf32>
    %334 = vector.extract_strided_slice %316 {offsets = [0, 32], sizes = [16, 16], strides = [1, 1]} : vector<16x48xf32> to vector<16x16xf32>
    %335 = arith.mulf %324, %334 : vector<16x16xf32>
    %336 = arith.addf %333, %335 : vector<16x16xf32>
    %337 = math.tanh %336 : vector<16x16xf32>
    %338 = vector.extract_strided_slice %303 {offsets = [0, 0], sizes = [16, 16], strides = [1, 1]} : vector<16x32xf32> to vector<16x16xf32>
    %339 = vector.extract_strided_slice %303 {offsets = [0, 16], sizes = [16, 16], strides = [1, 1]} : vector<16x32xf32> to vector<16x16xf32>
    %340 = arith.addf %338, %339 : vector<16x16xf32>
    %341 = arith.subf %340, %337 : vector<16x16xf32>
    %342 = arith.mulf %332, %341 : vector<16x16xf32>
    %343 = arith.addf %337, %342 : vector<16x16xf32>
    %344 = vector.extract_strided_slice %343 {offsets = [0, 0], sizes = [8, 16], strides = [1, 1]} : vector<16x16xf32> to vector<8x16xf32>
    %345 = arith.index_cast %c5_i32 : i32 to index
    %c0_100 = arith.constant 0 : index
    %c0_101 = arith.constant 0 : index
    %346 = vector.load %arg13[%345, %c0_100, %c0_101] : memref<8x8x16xf32, #tpu.memory_space<vmem>>, vector<1x8x16xf32>
    %347 = vector.shape_cast %346 : vector<1x8x16xf32> to vector<8x16xf32>
    %348 = vector.shape_cast %344 : vector<8x16xf32> to vector<1x8x16xf32>
    tpu.vector_store %arg13[%345, %c0_100, %c0_101], %348 {strides = array<i32>} : memref<8x8x16xf32, #tpu.memory_space<vmem>>, vector<1x8x16xf32>,
    %349 = vector.extract_strided_slice %343 {offsets = [8, 0], sizes = [8, 16], strides = [1, 1]} : vector<16x16xf32> to vector<8x16xf32>
    %350 = arith.index_cast %304 : i32 to index
    %c0_102 = arith.constant 0 : index
    %c0_103 = arith.constant 0 : index
    %351 = vector.load %arg14[%350, %c0_102, %c0_103] : memref<8x8x16xf32, #tpu.memory_space<vmem>>, vector<1x8x16xf32>
    %352 = vector.shape_cast %351 : vector<1x8x16xf32> to vector<8x16xf32>
    %353 = vector.shape_cast %349 : vector<8x16xf32> to vector<1x8x16xf32>
    tpu.vector_store %arg14[%350, %c0_102, %c0_103], %353 {strides = array<i32>} : memref<8x8x16xf32, #tpu.memory_space<vmem>>, vector<1x8x16xf32>,
    %354 = tpu.concatenate %343, %343 in 1 : vector<16x16xf32>, vector<16x16xf32> -> vector<16x32xf32>
    %355 = arith.mulf %354, %9 : vector<16x32xf32>
    %c6_i32 = arith.constant 6 : i32
    %c7_i32_104 = arith.constant 7 : i32
    %356 = arith.subi %c7_i32_104, %c6_i32 : i32
    %357 = arith.index_cast %c6_i32 : i32 to index
    %c0_105 = arith.constant 0 : index
    %c0_106 = arith.constant 0 : index
    %358 = vector.load %arg11[%357, %c0_105, %c0_106] : memref<8x8x48xbf16, #tpu.memory_space<vmem>>, vector<1x8x48xbf16>
    %359 = vector.shape_cast %358 : vector<1x8x48xbf16> to vector<8x48xbf16>
    %360 = arith.extf %359 : vector<8x48xbf16> to vector<8x48xf32>
    %361 = arith.index_cast %356 : i32 to index
    %c0_107 = arith.constant 0 : index
    %c0_108 = arith.constant 0 : index
    %362 = vector.load %arg12[%361, %c0_107, %c0_108] : memref<8x8x48xbf16, #tpu.memory_space<vmem>>, vector<1x8x48xbf16>
    %363 = vector.shape_cast %362 : vector<1x8x48xbf16> to vector<8x48xbf16>
    %364 = arith.extf %363 : vector<8x48xbf16> to vector<8x48xf32>
    %365 = tpu.concatenate %360, %364 in 0 : vector<8x48xf32>, vector<8x48xf32> -> vector<16x48xf32>
    %366 = arith.truncf %355 : vector<16x32xf32> to vector<16x32xbf16>
    %cst_109 = arith.constant dense<0.000000e+00> : vector<16x48xf32>
    %367 = tpu.matmul %366, %33, %cst_109 {dimension_numbers = #tpu.dot_dimension_numbers<[1], [0], [0], [1], [0, 0, 1, 1], [], []>} : vector<16x32xbf16>, vector<32x48xbf16>, vector<16x48xf32> -> vector<16x48xf32>
    %368 = arith.addf %367, %42 : vector<16x48xf32>
    %369 = vector.extract_strided_slice %365 {offsets = [0, 0], sizes = [16, 16], strides = [1, 1]} : vector<16x48xf32> to vector<16x16xf32>
    %370 = vector.extract_strided_slice %368 {offsets = [0, 0], sizes = [16, 16], strides = [1, 1]} : vector<16x48xf32> to vector<16x16xf32>
    %371 = arith.addf %369, %370 : vector<16x16xf32>
    %372 = arith.negf %371 : vector<16x16xf32>
    %373 = math.exp %372 : vector<16x16xf32>
    %cst_110 = arith.constant 1.000000e+00 : f32
    %374 = vector.broadcast %cst_110 : f32 to vector<16x16xf32>
    %375 = arith.addf %374, %373 : vector<16x16xf32>
    %376 = arith.divf %374, %375 : vector<16x16xf32>
    %377 = vector.extract_strided_slice %365 {offsets = [0, 16], sizes = [16, 16], strides = [1, 1]} : vector<16x48xf32> to vector<16x16xf32>
    %378 = vector.extract_strided_slice %368 {offsets = [0, 16], sizes = [16, 16], strides = [1, 1]} : vector<16x48xf32> to vector<16x16xf32>
    %379 = arith.addf %377, %378 : vector<16x16xf32>
    %380 = arith.negf %379 : vector<16x16xf32>
    %381 = math.exp %380 : vector<16x16xf32>
    %cst_111 = arith.constant 1.000000e+00 : f32
    %382 = vector.broadcast %cst_111 : f32 to vector<16x16xf32>
    %383 = arith.addf %382, %381 : vector<16x16xf32>
    %384 = arith.divf %382, %383 : vector<16x16xf32>
    %385 = vector.extract_strided_slice %365 {offsets = [0, 32], sizes = [16, 16], strides = [1, 1]} : vector<16x48xf32> to vector<16x16xf32>
    %386 = vector.extract_strided_slice %368 {offsets = [0, 32], sizes = [16, 16], strides = [1, 1]} : vector<16x48xf32> to vector<16x16xf32>
    %387 = arith.mulf %376, %386 : vector<16x16xf32>
    %388 = arith.addf %385, %387 : vector<16x16xf32>
    %389 = math.tanh %388 : vector<16x16xf32>
    %390 = vector.extract_strided_slice %355 {offsets = [0, 0], sizes = [16, 16], strides = [1, 1]} : vector<16x32xf32> to vector<16x16xf32>
    %391 = vector.extract_strided_slice %355 {offsets = [0, 16], sizes = [16, 16], strides = [1, 1]} : vector<16x32xf32> to vector<16x16xf32>
    %392 = arith.addf %390, %391 : vector<16x16xf32>
    %393 = arith.subf %392, %389 : vector<16x16xf32>
    %394 = arith.mulf %384, %393 : vector<16x16xf32>
    %395 = arith.addf %389, %394 : vector<16x16xf32>
    %396 = vector.extract_strided_slice %395 {offsets = [0, 0], sizes = [8, 16], strides = [1, 1]} : vector<16x16xf32> to vector<8x16xf32>
    %397 = arith.index_cast %c6_i32 : i32 to index
    %c0_112 = arith.constant 0 : index
    %c0_113 = arith.constant 0 : index
    %398 = vector.load %arg13[%397, %c0_112, %c0_113] : memref<8x8x16xf32, #tpu.memory_space<vmem>>, vector<1x8x16xf32>
    %399 = vector.shape_cast %398 : vector<1x8x16xf32> to vector<8x16xf32>
    %400 = vector.shape_cast %396 : vector<8x16xf32> to vector<1x8x16xf32>
    tpu.vector_store %arg13[%397, %c0_112, %c0_113], %400 {strides = array<i32>} : memref<8x8x16xf32, #tpu.memory_space<vmem>>, vector<1x8x16xf32>,
    %401 = vector.extract_strided_slice %395 {offsets = [8, 0], sizes = [8, 16], strides = [1, 1]} : vector<16x16xf32> to vector<8x16xf32>
    %402 = arith.index_cast %356 : i32 to index
    %c0_114 = arith.constant 0 : index
    %c0_115 = arith.constant 0 : index
    %403 = vector.load %arg14[%402, %c0_114, %c0_115] : memref<8x8x16xf32, #tpu.memory_space<vmem>>, vector<1x8x16xf32>
    %404 = vector.shape_cast %403 : vector<1x8x16xf32> to vector<8x16xf32>
    %405 = vector.shape_cast %401 : vector<8x16xf32> to vector<1x8x16xf32>
    tpu.vector_store %arg14[%402, %c0_114, %c0_115], %405 {strides = array<i32>} : memref<8x8x16xf32, #tpu.memory_space<vmem>>, vector<1x8x16xf32>,
    %406 = tpu.concatenate %395, %395 in 1 : vector<16x16xf32>, vector<16x16xf32> -> vector<16x32xf32>
    %407 = arith.mulf %406, %9 : vector<16x32xf32>
    %c7_i32_116 = arith.constant 7 : i32
    %c7_i32_117 = arith.constant 7 : i32
    %408 = arith.subi %c7_i32_117, %c7_i32_116 : i32
    %409 = arith.index_cast %c7_i32_116 : i32 to index
    %c0_118 = arith.constant 0 : index
    %c0_119 = arith.constant 0 : index
    %410 = vector.load %arg11[%409, %c0_118, %c0_119] : memref<8x8x48xbf16, #tpu.memory_space<vmem>>, vector<1x8x48xbf16>
    %411 = vector.shape_cast %410 : vector<1x8x48xbf16> to vector<8x48xbf16>
    %412 = arith.extf %411 : vector<8x48xbf16> to vector<8x48xf32>
    %413 = arith.index_cast %408 : i32 to index
    %c0_120 = arith.constant 0 : index
    %c0_121 = arith.constant 0 : index
    %414 = vector.load %arg12[%413, %c0_120, %c0_121] : memref<8x8x48xbf16, #tpu.memory_space<vmem>>, vector<1x8x48xbf16>
    %415 = vector.shape_cast %414 : vector<1x8x48xbf16> to vector<8x48xbf16>
    %416 = arith.extf %415 : vector<8x48xbf16> to vector<8x48xf32>
    %417 = tpu.concatenate %412, %416 in 0 : vector<8x48xf32>, vector<8x48xf32> -> vector<16x48xf32>
    %418 = arith.truncf %407 : vector<16x32xf32> to vector<16x32xbf16>
    %cst_122 = arith.constant dense<0.000000e+00> : vector<16x48xf32>
    %419 = tpu.matmul %418, %33, %cst_122 {dimension_numbers = #tpu.dot_dimension_numbers<[1], [0], [0], [1], [0, 0, 1, 1], [], []>} : vector<16x32xbf16>, vector<32x48xbf16>, vector<16x48xf32> -> vector<16x48xf32>
    %420 = arith.addf %419, %42 : vector<16x48xf32>
    %421 = vector.extract_strided_slice %417 {offsets = [0, 0], sizes = [16, 16], strides = [1, 1]} : vector<16x48xf32> to vector<16x16xf32>
    %422 = vector.extract_strided_slice %420 {offsets = [0, 0], sizes = [16, 16], strides = [1, 1]} : vector<16x48xf32> to vector<16x16xf32>
    %423 = arith.addf %421, %422 : vector<16x16xf32>
    %424 = arith.negf %423 : vector<16x16xf32>
    %425 = math.exp %424 : vector<16x16xf32>
    %cst_123 = arith.constant 1.000000e+00 : f32
    %426 = vector.broadcast %cst_123 : f32 to vector<16x16xf32>
    %427 = arith.addf %426, %425 : vector<16x16xf32>
    %428 = arith.divf %426, %427 : vector<16x16xf32>
    %429 = vector.extract_strided_slice %417 {offsets = [0, 16], sizes = [16, 16], strides = [1, 1]} : vector<16x48xf32> to vector<16x16xf32>
    %430 = vector.extract_strided_slice %420 {offsets = [0, 16], sizes = [16, 16], strides = [1, 1]} : vector<16x48xf32> to vector<16x16xf32>
    %431 = arith.addf %429, %430 : vector<16x16xf32>
    %432 = arith.negf %431 : vector<16x16xf32>
    %433 = math.exp %432 : vector<16x16xf32>
    %cst_124 = arith.constant 1.000000e+00 : f32
    %434 = vector.broadcast %cst_124 : f32 to vector<16x16xf32>
    %435 = arith.addf %434, %433 : vector<16x16xf32>
    %436 = arith.divf %434, %435 : vector<16x16xf32>
    %437 = vector.extract_strided_slice %417 {offsets = [0, 32], sizes = [16, 16], strides = [1, 1]} : vector<16x48xf32> to vector<16x16xf32>
    %438 = vector.extract_strided_slice %420 {offsets = [0, 32], sizes = [16, 16], strides = [1, 1]} : vector<16x48xf32> to vector<16x16xf32>
    %439 = arith.mulf %428, %438 : vector<16x16xf32>
    %440 = arith.addf %437, %439 : vector<16x16xf32>
    %441 = math.tanh %440 : vector<16x16xf32>
    %442 = vector.extract_strided_slice %407 {offsets = [0, 0], sizes = [16, 16], strides = [1, 1]} : vector<16x32xf32> to vector<16x16xf32>
    %443 = vector.extract_strided_slice %407 {offsets = [0, 16], sizes = [16, 16], strides = [1, 1]} : vector<16x32xf32> to vector<16x16xf32>
    %444 = arith.addf %442, %443 : vector<16x16xf32>
    %445 = arith.subf %444, %441 : vector<16x16xf32>
    %446 = arith.mulf %436, %445 : vector<16x16xf32>
    %447 = arith.addf %441, %446 : vector<16x16xf32>
    %448 = vector.extract_strided_slice %447 {offsets = [0, 0], sizes = [8, 16], strides = [1, 1]} : vector<16x16xf32> to vector<8x16xf32>
    %449 = arith.index_cast %c7_i32_116 : i32 to index
    %c0_125 = arith.constant 0 : index
    %c0_126 = arith.constant 0 : index
    %450 = vector.load %arg13[%449, %c0_125, %c0_126] : memref<8x8x16xf32, #tpu.memory_space<vmem>>, vector<1x8x16xf32>
    %451 = vector.shape_cast %450 : vector<1x8x16xf32> to vector<8x16xf32>
    %452 = vector.shape_cast %448 : vector<8x16xf32> to vector<1x8x16xf32>
    tpu.vector_store %arg13[%449, %c0_125, %c0_126], %452 {strides = array<i32>} : memref<8x8x16xf32, #tpu.memory_space<vmem>>, vector<1x8x16xf32>,
    %453 = vector.extract_strided_slice %447 {offsets = [8, 0], sizes = [8, 16], strides = [1, 1]} : vector<16x16xf32> to vector<8x16xf32>
    %454 = arith.index_cast %408 : i32 to index
    %c0_127 = arith.constant 0 : index
    %c0_128 = arith.constant 0 : index
    %455 = vector.load %arg14[%454, %c0_127, %c0_128] : memref<8x8x16xf32, #tpu.memory_space<vmem>>, vector<1x8x16xf32>
    %456 = vector.shape_cast %455 : vector<1x8x16xf32> to vector<8x16xf32>
    %457 = vector.shape_cast %453 : vector<8x16xf32> to vector<1x8x16xf32>
    tpu.vector_store %arg14[%454, %c0_127, %c0_128], %457 {strides = array<i32>} : memref<8x8x16xf32, #tpu.memory_space<vmem>>, vector<1x8x16xf32>,
    %458 = tpu.concatenate %447, %447 in 1 : vector<16x16xf32>, vector<16x16xf32> -> vector<16x32xf32>
    %459 = arith.mulf %458, %9 : vector<16x32xf32>
    %c8_i32_129 = arith.constant 8 : i32
    %c0_130 = arith.constant 0 : index
    %c0_131 = arith.constant 0 : index
    %c0_132 = arith.constant 0 : index
    %460 = vector.load %arg13[%c0_130, %c0_131, %c0_132] : memref<8x8x16xf32, #tpu.memory_space<vmem>>, vector<8x8x16xf32>
    %461 = vector.shape_cast %460 : vector<8x8x16xf32> to vector<64x16xf32>
    %462 = arith.truncf %461 : vector<64x16xf32> to vector<64x16xbf16>
    %c0_133 = arith.constant 0 : index
    %c0_134 = arith.constant 0 : index
    %c0_135 = arith.constant 0 : index
    %463 = vector.load %arg14[%c0_133, %c0_134, %c0_135] : memref<8x8x16xf32, #tpu.memory_space<vmem>>, vector<8x8x16xf32>
    %464 = vector.shape_cast %463 : vector<8x8x16xf32> to vector<64x16xf32>
    %465 = arith.truncf %464 : vector<64x16xf32> to vector<64x16xbf16>
    %c0_136 = arith.constant 0 : index
    %c0_137 = arith.constant 0 : index
    %c0_138 = arith.constant 0 : index
    %c0_139 = arith.constant 0 : index
    %466 = vector.load %arg4[%c0_136, %c0_137, %c0_138, %c0_139] : memref<2x2x16x48xbf16, #tpu.memory_space<vmem>>, vector<1x1x16x48xbf16>
    %467 = vector.shape_cast %466 : vector<1x1x16x48xbf16> to vector<16x48xbf16>
    %cst_140 = arith.constant dense<0.000000e+00> : vector<64x48xf32>
    %468 = tpu.matmul %462, %467, %cst_140 {dimension_numbers = #tpu.dot_dimension_numbers<[1], [0], [0], [1], [0, 0, 1, 1], [], []>} : vector<64x16xbf16>, vector<16x48xbf16>, vector<64x48xf32> -> vector<64x48xf32>
    %c1_141 = arith.constant 1 : index
    %c0_142 = arith.constant 0 : index
    %c0_143 = arith.constant 0 : index
    %c0_144 = arith.constant 0 : index
    %469 = vector.load %arg4[%c1_141, %c0_142, %c0_143, %c0_144] : memref<2x2x16x48xbf16, #tpu.memory_space<vmem>>, vector<1x1x16x48xbf16>
    %470 = vector.shape_cast %469 : vector<1x1x16x48xbf16> to vector<16x48xbf16>
    %cst_145 = arith.constant dense<0.000000e+00> : vector<64x48xf32>
    %471 = tpu.matmul %465, %470, %cst_145 {dimension_numbers = #tpu.dot_dimension_numbers<[1], [0], [0], [1], [0, 0, 1, 1], [], []>} : vector<64x16xbf16>, vector<16x48xbf16>, vector<64x48xf32> -> vector<64x48xf32>
    %472 = arith.addf %468, %471 : vector<64x48xf32>
    %c0_146 = arith.constant 0 : index
    %c0_147 = arith.constant 0 : index
    %c0_148 = arith.constant 0 : index
    %473 = vector.load %arg5[%c0_146, %c0_147, %c0_148] : memref<2x1x48xf32, #tpu.memory_space<vmem>>, vector<1x1x48xf32>
    %474 = vector.shape_cast %473 : vector<1x1x48xf32> to vector<1x48xf32>
    %475 = vector.broadcast %474 : vector<1x48xf32> to vector<64x48xf32>
    %476 = arith.addf %472, %475 : vector<64x48xf32>
    %477 = vector.shape_cast %476 : vector<64x48xf32> to vector<8x8x48xf32>
    %478 = arith.truncf %477 : vector<8x8x48xf32> to vector<8x8x48xbf16>
    %c0_149 = arith.constant 0 : index
    %c0_150 = arith.constant 0 : index
    %c0_151 = arith.constant 0 : index
    %479 = vector.load %arg11[%c0_149, %c0_150, %c0_151] : memref<8x8x48xbf16, #tpu.memory_space<vmem>>, vector<8x8x48xbf16>
    tpu.vector_store %arg11[%c0_149, %c0_150, %c0_151], %478 {strides = array<i32>} : memref<8x8x48xbf16, #tpu.memory_space<vmem>>, vector<8x8x48xbf16>,
    %c0_152 = arith.constant 0 : index
    %c1_153 = arith.constant 1 : index
    %c0_154 = arith.constant 0 : index
    %c0_155 = arith.constant 0 : index
    %480 = vector.load %arg4[%c0_152, %c1_153, %c0_154, %c0_155] : memref<2x2x16x48xbf16, #tpu.memory_space<vmem>>, vector<1x1x16x48xbf16>
    %481 = vector.shape_cast %480 : vector<1x1x16x48xbf16> to vector<16x48xbf16>
    %cst_156 = arith.constant dense<0.000000e+00> : vector<64x48xf32>
    %482 = tpu.matmul %462, %481, %cst_156 {dimension_numbers = #tpu.dot_dimension_numbers<[1], [0], [0], [1], [0, 0, 1, 1], [], []>} : vector<64x16xbf16>, vector<16x48xbf16>, vector<64x48xf32> -> vector<64x48xf32>
    %c1_157 = arith.constant 1 : index
    %c1_158 = arith.constant 1 : index
    %c0_159 = arith.constant 0 : index
    %c0_160 = arith.constant 0 : index
    %483 = vector.load %arg4[%c1_157, %c1_158, %c0_159, %c0_160] : memref<2x2x16x48xbf16, #tpu.memory_space<vmem>>, vector<1x1x16x48xbf16>
    %484 = vector.shape_cast %483 : vector<1x1x16x48xbf16> to vector<16x48xbf16>
    %cst_161 = arith.constant dense<0.000000e+00> : vector<64x48xf32>
    %485 = tpu.matmul %465, %484, %cst_161 {dimension_numbers = #tpu.dot_dimension_numbers<[1], [0], [0], [1], [0, 0, 1, 1], [], []>} : vector<64x16xbf16>, vector<16x48xbf16>, vector<64x48xf32> -> vector<64x48xf32>
    %486 = arith.addf %482, %485 : vector<64x48xf32>
    %c1_162 = arith.constant 1 : index
    %c0_163 = arith.constant 0 : index
    %c0_164 = arith.constant 0 : index
    %487 = vector.load %arg5[%c1_162, %c0_163, %c0_164] : memref<2x1x48xf32, #tpu.memory_space<vmem>>, vector<1x1x48xf32>
    %488 = vector.shape_cast %487 : vector<1x1x48xf32> to vector<1x48xf32>
    %489 = vector.broadcast %488 : vector<1x48xf32> to vector<64x48xf32>
    %490 = arith.addf %486, %489 : vector<64x48xf32>
    %491 = vector.shape_cast %490 : vector<64x48xf32> to vector<8x8x48xf32>
    %492 = arith.truncf %491 : vector<8x8x48xf32> to vector<8x8x48xbf16>
    %c0_165 = arith.constant 0 : index
    %c0_166 = arith.constant 0 : index
    %c0_167 = arith.constant 0 : index
    %493 = vector.load %arg12[%c0_165, %c0_166, %c0_167] : memref<8x8x48xbf16, #tpu.memory_space<vmem>>, vector<8x8x48xbf16>
    tpu.vector_store %arg12[%c0_165, %c0_166, %c0_167], %492 {strides = array<i32>} : memref<8x8x48xbf16, #tpu.memory_space<vmem>>, vector<8x8x48xbf16>,
    %c1_168 = arith.constant 1 : index
    %c0_169 = arith.constant 0 : index
    %c0_170 = arith.constant 0 : index
    %494 = vector.load %arg6[%c1_168, %c0_169, %c0_170] : memref<2x32x48xbf16, #tpu.memory_space<vmem>>, vector<1x32x48xbf16>
    %495 = vector.shape_cast %494 : vector<1x32x48xbf16> to vector<32x48xbf16>
    %c1_171 = arith.constant 1 : index
    %c0_172 = arith.constant 0 : index
    %c0_173 = arith.constant 0 : index
    %c0_174 = arith.constant 0 : index
    %496 = vector.load %arg7[%c1_171, %c0_172, %c0_173, %c0_174] : memref<2x2x1x48xf32, #tpu.memory_space<vmem>>, vector<1x1x1x48xf32>
    %497 = vector.shape_cast %496 : vector<1x1x1x48xf32> to vector<1x48xf32>
    %498 = vector.shape_cast %497 : vector<1x48xf32> to vector<1x48xf32>
    %499 = vector.broadcast %498 : vector<1x48xf32> to vector<8x48xf32>
    %c1_175 = arith.constant 1 : index
    %c1_176 = arith.constant 1 : index
    %c0_177 = arith.constant 0 : index
    %c0_178 = arith.constant 0 : index
    %500 = vector.load %arg7[%c1_175, %c1_176, %c0_177, %c0_178] : memref<2x2x1x48xf32, #tpu.memory_space<vmem>>, vector<1x1x1x48xf32>
    %501 = vector.shape_cast %500 : vector<1x1x1x48xf32> to vector<1x48xf32>
    %502 = vector.shape_cast %501 : vector<1x48xf32> to vector<1x48xf32>
    %503 = vector.broadcast %502 : vector<1x48xf32> to vector<8x48xf32>
    %504 = tpu.concatenate %499, %503 in 0 : vector<8x48xf32>, vector<8x48xf32> -> vector<16x48xf32>
    %cst_179 = arith.constant 0.000000e+00 : f32
    %505 = vector.broadcast %cst_179 : f32 to vector<16x32xf32>
    %c0_i32_180 = arith.constant 0 : i32
    %c7_i32_181 = arith.constant 7 : i32
    %506 = arith.subi %c7_i32_181, %c0_i32_180 : i32
    %507 = arith.index_cast %c0_i32_180 : i32 to index
    %c0_182 = arith.constant 0 : index
    %c0_183 = arith.constant 0 : index
    %508 = vector.load %arg11[%507, %c0_182, %c0_183] : memref<8x8x48xbf16, #tpu.memory_space<vmem>>, vector<1x8x48xbf16>
    %509 = vector.shape_cast %508 : vector<1x8x48xbf16> to vector<8x48xbf16>
    %510 = arith.extf %509 : vector<8x48xbf16> to vector<8x48xf32>
    %511 = arith.index_cast %506 : i32 to index
    %c0_184 = arith.constant 0 : index
    %c0_185 = arith.constant 0 : index
    %512 = vector.load %arg12[%511, %c0_184, %c0_185] : memref<8x8x48xbf16, #tpu.memory_space<vmem>>, vector<1x8x48xbf16>
    %513 = vector.shape_cast %512 : vector<1x8x48xbf16> to vector<8x48xbf16>
    %514 = arith.extf %513 : vector<8x48xbf16> to vector<8x48xf32>
    %515 = tpu.concatenate %510, %514 in 0 : vector<8x48xf32>, vector<8x48xf32> -> vector<16x48xf32>
    %516 = arith.truncf %505 : vector<16x32xf32> to vector<16x32xbf16>
    %cst_186 = arith.constant dense<0.000000e+00> : vector<16x48xf32>
    %517 = tpu.matmul %516, %495, %cst_186 {dimension_numbers = #tpu.dot_dimension_numbers<[1], [0], [0], [1], [0, 0, 1, 1], [], []>} : vector<16x32xbf16>, vector<32x48xbf16>, vector<16x48xf32> -> vector<16x48xf32>
    %518 = arith.addf %517, %504 : vector<16x48xf32>
    %519 = vector.extract_strided_slice %515 {offsets = [0, 0], sizes = [16, 16], strides = [1, 1]} : vector<16x48xf32> to vector<16x16xf32>
    %520 = vector.extract_strided_slice %518 {offsets = [0, 0], sizes = [16, 16], strides = [1, 1]} : vector<16x48xf32> to vector<16x16xf32>
    %521 = arith.addf %519, %520 : vector<16x16xf32>
    %522 = arith.negf %521 : vector<16x16xf32>
    %523 = math.exp %522 : vector<16x16xf32>
    %cst_187 = arith.constant 1.000000e+00 : f32
    %524 = vector.broadcast %cst_187 : f32 to vector<16x16xf32>
    %525 = arith.addf %524, %523 : vector<16x16xf32>
    %526 = arith.divf %524, %525 : vector<16x16xf32>
    %527 = vector.extract_strided_slice %515 {offsets = [0, 16], sizes = [16, 16], strides = [1, 1]} : vector<16x48xf32> to vector<16x16xf32>
    %528 = vector.extract_strided_slice %518 {offsets = [0, 16], sizes = [16, 16], strides = [1, 1]} : vector<16x48xf32> to vector<16x16xf32>
    %529 = arith.addf %527, %528 : vector<16x16xf32>
    %530 = arith.negf %529 : vector<16x16xf32>
    %531 = math.exp %530 : vector<16x16xf32>
    %cst_188 = arith.constant 1.000000e+00 : f32
    %532 = vector.broadcast %cst_188 : f32 to vector<16x16xf32>
    %533 = arith.addf %532, %531 : vector<16x16xf32>
    %534 = arith.divf %532, %533 : vector<16x16xf32>
    %535 = vector.extract_strided_slice %515 {offsets = [0, 32], sizes = [16, 16], strides = [1, 1]} : vector<16x48xf32> to vector<16x16xf32>
    %536 = vector.extract_strided_slice %518 {offsets = [0, 32], sizes = [16, 16], strides = [1, 1]} : vector<16x48xf32> to vector<16x16xf32>
    %537 = arith.mulf %526, %536 : vector<16x16xf32>
    %538 = arith.addf %535, %537 : vector<16x16xf32>
    %539 = math.tanh %538 : vector<16x16xf32>
    %540 = vector.extract_strided_slice %505 {offsets = [0, 0], sizes = [16, 16], strides = [1, 1]} : vector<16x32xf32> to vector<16x16xf32>
    %541 = vector.extract_strided_slice %505 {offsets = [0, 16], sizes = [16, 16], strides = [1, 1]} : vector<16x32xf32> to vector<16x16xf32>
    %542 = arith.addf %540, %541 : vector<16x16xf32>
    %543 = arith.subf %542, %539 : vector<16x16xf32>
    %544 = arith.mulf %534, %543 : vector<16x16xf32>
    %545 = arith.addf %539, %544 : vector<16x16xf32>
    %546 = vector.extract_strided_slice %545 {offsets = [0, 0], sizes = [8, 16], strides = [1, 1]} : vector<16x16xf32> to vector<8x16xf32>
    %547 = arith.index_cast %c0_i32_180 : i32 to index
    %c0_189 = arith.constant 0 : index
    %c0_190 = arith.constant 0 : index
    %548 = vector.load %arg13[%547, %c0_189, %c0_190] : memref<8x8x16xf32, #tpu.memory_space<vmem>>, vector<1x8x16xf32>
    %549 = vector.shape_cast %548 : vector<1x8x16xf32> to vector<8x16xf32>
    %550 = vector.shape_cast %546 : vector<8x16xf32> to vector<1x8x16xf32>
    tpu.vector_store %arg13[%547, %c0_189, %c0_190], %550 {strides = array<i32>} : memref<8x8x16xf32, #tpu.memory_space<vmem>>, vector<1x8x16xf32>,
    %551 = vector.extract_strided_slice %545 {offsets = [8, 0], sizes = [8, 16], strides = [1, 1]} : vector<16x16xf32> to vector<8x16xf32>
    %552 = arith.index_cast %506 : i32 to index
    %c0_191 = arith.constant 0 : index
    %c0_192 = arith.constant 0 : index
    %553 = vector.load %arg14[%552, %c0_191, %c0_192] : memref<8x8x16xf32, #tpu.memory_space<vmem>>, vector<1x8x16xf32>
    %554 = vector.shape_cast %553 : vector<1x8x16xf32> to vector<8x16xf32>
    %555 = vector.shape_cast %551 : vector<8x16xf32> to vector<1x8x16xf32>
    tpu.vector_store %arg14[%552, %c0_191, %c0_192], %555 {strides = array<i32>} : memref<8x8x16xf32, #tpu.memory_space<vmem>>, vector<1x8x16xf32>,
    %556 = tpu.concatenate %545, %545 in 1 : vector<16x16xf32>, vector<16x16xf32> -> vector<16x32xf32>
    %557 = arith.mulf %556, %9 : vector<16x32xf32>
    %c1_i32_193 = arith.constant 1 : i32
    %c7_i32_194 = arith.constant 7 : i32
    %558 = arith.subi %c7_i32_194, %c1_i32_193 : i32
    %559 = arith.index_cast %c1_i32_193 : i32 to index
    %c0_195 = arith.constant 0 : index
    %c0_196 = arith.constant 0 : index
    %560 = vector.load %arg11[%559, %c0_195, %c0_196] : memref<8x8x48xbf16, #tpu.memory_space<vmem>>, vector<1x8x48xbf16>
    %561 = vector.shape_cast %560 : vector<1x8x48xbf16> to vector<8x48xbf16>
    %562 = arith.extf %561 : vector<8x48xbf16> to vector<8x48xf32>
    %563 = arith.index_cast %558 : i32 to index
    %c0_197 = arith.constant 0 : index
    %c0_198 = arith.constant 0 : index
    %564 = vector.load %arg12[%563, %c0_197, %c0_198] : memref<8x8x48xbf16, #tpu.memory_space<vmem>>, vector<1x8x48xbf16>
    %565 = vector.shape_cast %564 : vector<1x8x48xbf16> to vector<8x48xbf16>
    %566 = arith.extf %565 : vector<8x48xbf16> to vector<8x48xf32>
    %567 = tpu.concatenate %562, %566 in 0 : vector<8x48xf32>, vector<8x48xf32> -> vector<16x48xf32>
    %568 = arith.truncf %557 : vector<16x32xf32> to vector<16x32xbf16>
    %cst_199 = arith.constant dense<0.000000e+00> : vector<16x48xf32>
    %569 = tpu.matmul %568, %495, %cst_199 {dimension_numbers = #tpu.dot_dimension_numbers<[1], [0], [0], [1], [0, 0, 1, 1], [], []>} : vector<16x32xbf16>, vector<32x48xbf16>, vector<16x48xf32> -> vector<16x48xf32>
    %570 = arith.addf %569, %504 : vector<16x48xf32>
    %571 = vector.extract_strided_slice %567 {offsets = [0, 0], sizes = [16, 16], strides = [1, 1]} : vector<16x48xf32> to vector<16x16xf32>
    %572 = vector.extract_strided_slice %570 {offsets = [0, 0], sizes = [16, 16], strides = [1, 1]} : vector<16x48xf32> to vector<16x16xf32>
    %573 = arith.addf %571, %572 : vector<16x16xf32>
    %574 = arith.negf %573 : vector<16x16xf32>
    %575 = math.exp %574 : vector<16x16xf32>
    %cst_200 = arith.constant 1.000000e+00 : f32
    %576 = vector.broadcast %cst_200 : f32 to vector<16x16xf32>
    %577 = arith.addf %576, %575 : vector<16x16xf32>
    %578 = arith.divf %576, %577 : vector<16x16xf32>
    %579 = vector.extract_strided_slice %567 {offsets = [0, 16], sizes = [16, 16], strides = [1, 1]} : vector<16x48xf32> to vector<16x16xf32>
    %580 = vector.extract_strided_slice %570 {offsets = [0, 16], sizes = [16, 16], strides = [1, 1]} : vector<16x48xf32> to vector<16x16xf32>
    %581 = arith.addf %579, %580 : vector<16x16xf32>
    %582 = arith.negf %581 : vector<16x16xf32>
    %583 = math.exp %582 : vector<16x16xf32>
    %cst_201 = arith.constant 1.000000e+00 : f32
    %584 = vector.broadcast %cst_201 : f32 to vector<16x16xf32>
    %585 = arith.addf %584, %583 : vector<16x16xf32>
    %586 = arith.divf %584, %585 : vector<16x16xf32>
    %587 = vector.extract_strided_slice %567 {offsets = [0, 32], sizes = [16, 16], strides = [1, 1]} : vector<16x48xf32> to vector<16x16xf32>
    %588 = vector.extract_strided_slice %570 {offsets = [0, 32], sizes = [16, 16], strides = [1, 1]} : vector<16x48xf32> to vector<16x16xf32>
    %589 = arith.mulf %578, %588 : vector<16x16xf32>
    %590 = arith.addf %587, %589 : vector<16x16xf32>
    %591 = math.tanh %590 : vector<16x16xf32>
    %592 = vector.extract_strided_slice %557 {offsets = [0, 0], sizes = [16, 16], strides = [1, 1]} : vector<16x32xf32> to vector<16x16xf32>
    %593 = vector.extract_strided_slice %557 {offsets = [0, 16], sizes = [16, 16], strides = [1, 1]} : vector<16x32xf32> to vector<16x16xf32>
    %594 = arith.addf %592, %593 : vector<16x16xf32>
    %595 = arith.subf %594, %591 : vector<16x16xf32>
    %596 = arith.mulf %586, %595 : vector<16x16xf32>
    %597 = arith.addf %591, %596 : vector<16x16xf32>
    %598 = vector.extract_strided_slice %597 {offsets = [0, 0], sizes = [8, 16], strides = [1, 1]} : vector<16x16xf32> to vector<8x16xf32>
    %599 = arith.index_cast %c1_i32_193 : i32 to index
    %c0_202 = arith.constant 0 : index
    %c0_203 = arith.constant 0 : index
    %600 = vector.load %arg13[%599, %c0_202, %c0_203] : memref<8x8x16xf32, #tpu.memory_space<vmem>>, vector<1x8x16xf32>
    %601 = vector.shape_cast %600 : vector<1x8x16xf32> to vector<8x16xf32>
    %602 = vector.shape_cast %598 : vector<8x16xf32> to vector<1x8x16xf32>
    tpu.vector_store %arg13[%599, %c0_202, %c0_203], %602 {strides = array<i32>} : memref<8x8x16xf32, #tpu.memory_space<vmem>>, vector<1x8x16xf32>,
    %603 = vector.extract_strided_slice %597 {offsets = [8, 0], sizes = [8, 16], strides = [1, 1]} : vector<16x16xf32> to vector<8x16xf32>
    %604 = arith.index_cast %558 : i32 to index
    %c0_204 = arith.constant 0 : index
    %c0_205 = arith.constant 0 : index
    %605 = vector.load %arg14[%604, %c0_204, %c0_205] : memref<8x8x16xf32, #tpu.memory_space<vmem>>, vector<1x8x16xf32>
    %606 = vector.shape_cast %605 : vector<1x8x16xf32> to vector<8x16xf32>
    %607 = vector.shape_cast %603 : vector<8x16xf32> to vector<1x8x16xf32>
    tpu.vector_store %arg14[%604, %c0_204, %c0_205], %607 {strides = array<i32>} : memref<8x8x16xf32, #tpu.memory_space<vmem>>, vector<1x8x16xf32>,
    %608 = tpu.concatenate %597, %597 in 1 : vector<16x16xf32>, vector<16x16xf32> -> vector<16x32xf32>
    %609 = arith.mulf %608, %9 : vector<16x32xf32>
    %c2_i32_206 = arith.constant 2 : i32
    %c7_i32_207 = arith.constant 7 : i32
    %610 = arith.subi %c7_i32_207, %c2_i32_206 : i32
    %611 = arith.index_cast %c2_i32_206 : i32 to index
    %c0_208 = arith.constant 0 : index
    %c0_209 = arith.constant 0 : index
    %612 = vector.load %arg11[%611, %c0_208, %c0_209] : memref<8x8x48xbf16, #tpu.memory_space<vmem>>, vector<1x8x48xbf16>
    %613 = vector.shape_cast %612 : vector<1x8x48xbf16> to vector<8x48xbf16>
    %614 = arith.extf %613 : vector<8x48xbf16> to vector<8x48xf32>
    %615 = arith.index_cast %610 : i32 to index
    %c0_210 = arith.constant 0 : index
    %c0_211 = arith.constant 0 : index
    %616 = vector.load %arg12[%615, %c0_210, %c0_211] : memref<8x8x48xbf16, #tpu.memory_space<vmem>>, vector<1x8x48xbf16>
    %617 = vector.shape_cast %616 : vector<1x8x48xbf16> to vector<8x48xbf16>
    %618 = arith.extf %617 : vector<8x48xbf16> to vector<8x48xf32>
    %619 = tpu.concatenate %614, %618 in 0 : vector<8x48xf32>, vector<8x48xf32> -> vector<16x48xf32>
    %620 = arith.truncf %609 : vector<16x32xf32> to vector<16x32xbf16>
    %cst_212 = arith.constant dense<0.000000e+00> : vector<16x48xf32>
    %621 = tpu.matmul %620, %495, %cst_212 {dimension_numbers = #tpu.dot_dimension_numbers<[1], [0], [0], [1], [0, 0, 1, 1], [], []>} : vector<16x32xbf16>, vector<32x48xbf16>, vector<16x48xf32> -> vector<16x48xf32>
    %622 = arith.addf %621, %504 : vector<16x48xf32>
    %623 = vector.extract_strided_slice %619 {offsets = [0, 0], sizes = [16, 16], strides = [1, 1]} : vector<16x48xf32> to vector<16x16xf32>
    %624 = vector.extract_strided_slice %622 {offsets = [0, 0], sizes = [16, 16], strides = [1, 1]} : vector<16x48xf32> to vector<16x16xf32>
    %625 = arith.addf %623, %624 : vector<16x16xf32>
    %626 = arith.negf %625 : vector<16x16xf32>
    %627 = math.exp %626 : vector<16x16xf32>
    %cst_213 = arith.constant 1.000000e+00 : f32
    %628 = vector.broadcast %cst_213 : f32 to vector<16x16xf32>
    %629 = arith.addf %628, %627 : vector<16x16xf32>
    %630 = arith.divf %628, %629 : vector<16x16xf32>
    %631 = vector.extract_strided_slice %619 {offsets = [0, 16], sizes = [16, 16], strides = [1, 1]} : vector<16x48xf32> to vector<16x16xf32>
    %632 = vector.extract_strided_slice %622 {offsets = [0, 16], sizes = [16, 16], strides = [1, 1]} : vector<16x48xf32> to vector<16x16xf32>
    %633 = arith.addf %631, %632 : vector<16x16xf32>
    %634 = arith.negf %633 : vector<16x16xf32>
    %635 = math.exp %634 : vector<16x16xf32>
    %cst_214 = arith.constant 1.000000e+00 : f32
    %636 = vector.broadcast %cst_214 : f32 to vector<16x16xf32>
    %637 = arith.addf %636, %635 : vector<16x16xf32>
    %638 = arith.divf %636, %637 : vector<16x16xf32>
    %639 = vector.extract_strided_slice %619 {offsets = [0, 32], sizes = [16, 16], strides = [1, 1]} : vector<16x48xf32> to vector<16x16xf32>
    %640 = vector.extract_strided_slice %622 {offsets = [0, 32], sizes = [16, 16], strides = [1, 1]} : vector<16x48xf32> to vector<16x16xf32>
    %641 = arith.mulf %630, %640 : vector<16x16xf32>
    %642 = arith.addf %639, %641 : vector<16x16xf32>
    %643 = math.tanh %642 : vector<16x16xf32>
    %644 = vector.extract_strided_slice %609 {offsets = [0, 0], sizes = [16, 16], strides = [1, 1]} : vector<16x32xf32> to vector<16x16xf32>
    %645 = vector.extract_strided_slice %609 {offsets = [0, 16], sizes = [16, 16], strides = [1, 1]} : vector<16x32xf32> to vector<16x16xf32>
    %646 = arith.addf %644, %645 : vector<16x16xf32>
    %647 = arith.subf %646, %643 : vector<16x16xf32>
    %648 = arith.mulf %638, %647 : vector<16x16xf32>
    %649 = arith.addf %643, %648 : vector<16x16xf32>
    %650 = vector.extract_strided_slice %649 {offsets = [0, 0], sizes = [8, 16], strides = [1, 1]} : vector<16x16xf32> to vector<8x16xf32>
    %651 = arith.index_cast %c2_i32_206 : i32 to index
    %c0_215 = arith.constant 0 : index
    %c0_216 = arith.constant 0 : index
    %652 = vector.load %arg13[%651, %c0_215, %c0_216] : memref<8x8x16xf32, #tpu.memory_space<vmem>>, vector<1x8x16xf32>
    %653 = vector.shape_cast %652 : vector<1x8x16xf32> to vector<8x16xf32>
    %654 = vector.shape_cast %650 : vector<8x16xf32> to vector<1x8x16xf32>
    tpu.vector_store %arg13[%651, %c0_215, %c0_216], %654 {strides = array<i32>} : memref<8x8x16xf32, #tpu.memory_space<vmem>>, vector<1x8x16xf32>,
    %655 = vector.extract_strided_slice %649 {offsets = [8, 0], sizes = [8, 16], strides = [1, 1]} : vector<16x16xf32> to vector<8x16xf32>
    %656 = arith.index_cast %610 : i32 to index
    %c0_217 = arith.constant 0 : index
    %c0_218 = arith.constant 0 : index
    %657 = vector.load %arg14[%656, %c0_217, %c0_218] : memref<8x8x16xf32, #tpu.memory_space<vmem>>, vector<1x8x16xf32>
    %658 = vector.shape_cast %657 : vector<1x8x16xf32> to vector<8x16xf32>
    %659 = vector.shape_cast %655 : vector<8x16xf32> to vector<1x8x16xf32>
    tpu.vector_store %arg14[%656, %c0_217, %c0_218], %659 {strides = array<i32>} : memref<8x8x16xf32, #tpu.memory_space<vmem>>, vector<1x8x16xf32>,
    %660 = tpu.concatenate %649, %649 in 1 : vector<16x16xf32>, vector<16x16xf32> -> vector<16x32xf32>
    %661 = arith.mulf %660, %9 : vector<16x32xf32>
    %c3_i32_219 = arith.constant 3 : i32
    %c7_i32_220 = arith.constant 7 : i32
    %662 = arith.subi %c7_i32_220, %c3_i32_219 : i32
    %663 = arith.index_cast %c3_i32_219 : i32 to index
    %c0_221 = arith.constant 0 : index
    %c0_222 = arith.constant 0 : index
    %664 = vector.load %arg11[%663, %c0_221, %c0_222] : memref<8x8x48xbf16, #tpu.memory_space<vmem>>, vector<1x8x48xbf16>
    %665 = vector.shape_cast %664 : vector<1x8x48xbf16> to vector<8x48xbf16>
    %666 = arith.extf %665 : vector<8x48xbf16> to vector<8x48xf32>
    %667 = arith.index_cast %662 : i32 to index
    %c0_223 = arith.constant 0 : index
    %c0_224 = arith.constant 0 : index
    %668 = vector.load %arg12[%667, %c0_223, %c0_224] : memref<8x8x48xbf16, #tpu.memory_space<vmem>>, vector<1x8x48xbf16>
    %669 = vector.shape_cast %668 : vector<1x8x48xbf16> to vector<8x48xbf16>
    %670 = arith.extf %669 : vector<8x48xbf16> to vector<8x48xf32>
    %671 = tpu.concatenate %666, %670 in 0 : vector<8x48xf32>, vector<8x48xf32> -> vector<16x48xf32>
    %672 = arith.truncf %661 : vector<16x32xf32> to vector<16x32xbf16>
    %cst_225 = arith.constant dense<0.000000e+00> : vector<16x48xf32>
    %673 = tpu.matmul %672, %495, %cst_225 {dimension_numbers = #tpu.dot_dimension_numbers<[1], [0], [0], [1], [0, 0, 1, 1], [], []>} : vector<16x32xbf16>, vector<32x48xbf16>, vector<16x48xf32> -> vector<16x48xf32>
    %674 = arith.addf %673, %504 : vector<16x48xf32>
    %675 = vector.extract_strided_slice %671 {offsets = [0, 0], sizes = [16, 16], strides = [1, 1]} : vector<16x48xf32> to vector<16x16xf32>
    %676 = vector.extract_strided_slice %674 {offsets = [0, 0], sizes = [16, 16], strides = [1, 1]} : vector<16x48xf32> to vector<16x16xf32>
    %677 = arith.addf %675, %676 : vector<16x16xf32>
    %678 = arith.negf %677 : vector<16x16xf32>
    %679 = math.exp %678 : vector<16x16xf32>
    %cst_226 = arith.constant 1.000000e+00 : f32
    %680 = vector.broadcast %cst_226 : f32 to vector<16x16xf32>
    %681 = arith.addf %680, %679 : vector<16x16xf32>
    %682 = arith.divf %680, %681 : vector<16x16xf32>
    %683 = vector.extract_strided_slice %671 {offsets = [0, 16], sizes = [16, 16], strides = [1, 1]} : vector<16x48xf32> to vector<16x16xf32>
    %684 = vector.extract_strided_slice %674 {offsets = [0, 16], sizes = [16, 16], strides = [1, 1]} : vector<16x48xf32> to vector<16x16xf32>
    %685 = arith.addf %683, %684 : vector<16x16xf32>
    %686 = arith.negf %685 : vector<16x16xf32>
    %687 = math.exp %686 : vector<16x16xf32>
    %cst_227 = arith.constant 1.000000e+00 : f32
    %688 = vector.broadcast %cst_227 : f32 to vector<16x16xf32>
    %689 = arith.addf %688, %687 : vector<16x16xf32>
    %690 = arith.divf %688, %689 : vector<16x16xf32>
    %691 = vector.extract_strided_slice %671 {offsets = [0, 32], sizes = [16, 16], strides = [1, 1]} : vector<16x48xf32> to vector<16x16xf32>
    %692 = vector.extract_strided_slice %674 {offsets = [0, 32], sizes = [16, 16], strides = [1, 1]} : vector<16x48xf32> to vector<16x16xf32>
    %693 = arith.mulf %682, %692 : vector<16x16xf32>
    %694 = arith.addf %691, %693 : vector<16x16xf32>
    %695 = math.tanh %694 : vector<16x16xf32>
    %696 = vector.extract_strided_slice %661 {offsets = [0, 0], sizes = [16, 16], strides = [1, 1]} : vector<16x32xf32> to vector<16x16xf32>
    %697 = vector.extract_strided_slice %661 {offsets = [0, 16], sizes = [16, 16], strides = [1, 1]} : vector<16x32xf32> to vector<16x16xf32>
    %698 = arith.addf %696, %697 : vector<16x16xf32>
    %699 = arith.subf %698, %695 : vector<16x16xf32>
    %700 = arith.mulf %690, %699 : vector<16x16xf32>
    %701 = arith.addf %695, %700 : vector<16x16xf32>
    %702 = vector.extract_strided_slice %701 {offsets = [0, 0], sizes = [8, 16], strides = [1, 1]} : vector<16x16xf32> to vector<8x16xf32>
    %703 = arith.index_cast %c3_i32_219 : i32 to index
    %c0_228 = arith.constant 0 : index
    %c0_229 = arith.constant 0 : index
    %704 = vector.load %arg13[%703, %c0_228, %c0_229] : memref<8x8x16xf32, #tpu.memory_space<vmem>>, vector<1x8x16xf32>
    %705 = vector.shape_cast %704 : vector<1x8x16xf32> to vector<8x16xf32>
    %706 = vector.shape_cast %702 : vector<8x16xf32> to vector<1x8x16xf32>
    tpu.vector_store %arg13[%703, %c0_228, %c0_229], %706 {strides = array<i32>} : memref<8x8x16xf32, #tpu.memory_space<vmem>>, vector<1x8x16xf32>,
    %707 = vector.extract_strided_slice %701 {offsets = [8, 0], sizes = [8, 16], strides = [1, 1]} : vector<16x16xf32> to vector<8x16xf32>
    %708 = arith.index_cast %662 : i32 to index
    %c0_230 = arith.constant 0 : index
    %c0_231 = arith.constant 0 : index
    %709 = vector.load %arg14[%708, %c0_230, %c0_231] : memref<8x8x16xf32, #tpu.memory_space<vmem>>, vector<1x8x16xf32>
    %710 = vector.shape_cast %709 : vector<1x8x16xf32> to vector<8x16xf32>
    %711 = vector.shape_cast %707 : vector<8x16xf32> to vector<1x8x16xf32>
    tpu.vector_store %arg14[%708, %c0_230, %c0_231], %711 {strides = array<i32>} : memref<8x8x16xf32, #tpu.memory_space<vmem>>, vector<1x8x16xf32>,
    %712 = tpu.concatenate %701, %701 in 1 : vector<16x16xf32>, vector<16x16xf32> -> vector<16x32xf32>
    %713 = arith.mulf %712, %9 : vector<16x32xf32>
    %c4_i32_232 = arith.constant 4 : i32
    %c7_i32_233 = arith.constant 7 : i32
    %714 = arith.subi %c7_i32_233, %c4_i32_232 : i32
    %715 = arith.index_cast %c4_i32_232 : i32 to index
    %c0_234 = arith.constant 0 : index
    %c0_235 = arith.constant 0 : index
    %716 = vector.load %arg11[%715, %c0_234, %c0_235] : memref<8x8x48xbf16, #tpu.memory_space<vmem>>, vector<1x8x48xbf16>
    %717 = vector.shape_cast %716 : vector<1x8x48xbf16> to vector<8x48xbf16>
    %718 = arith.extf %717 : vector<8x48xbf16> to vector<8x48xf32>
    %719 = arith.index_cast %714 : i32 to index
    %c0_236 = arith.constant 0 : index
    %c0_237 = arith.constant 0 : index
    %720 = vector.load %arg12[%719, %c0_236, %c0_237] : memref<8x8x48xbf16, #tpu.memory_space<vmem>>, vector<1x8x48xbf16>
    %721 = vector.shape_cast %720 : vector<1x8x48xbf16> to vector<8x48xbf16>
    %722 = arith.extf %721 : vector<8x48xbf16> to vector<8x48xf32>
    %723 = tpu.concatenate %718, %722 in 0 : vector<8x48xf32>, vector<8x48xf32> -> vector<16x48xf32>
    %724 = arith.truncf %713 : vector<16x32xf32> to vector<16x32xbf16>
    %cst_238 = arith.constant dense<0.000000e+00> : vector<16x48xf32>
    %725 = tpu.matmul %724, %495, %cst_238 {dimension_numbers = #tpu.dot_dimension_numbers<[1], [0], [0], [1], [0, 0, 1, 1], [], []>} : vector<16x32xbf16>, vector<32x48xbf16>, vector<16x48xf32> -> vector<16x48xf32>
    %726 = arith.addf %725, %504 : vector<16x48xf32>
    %727 = vector.extract_strided_slice %723 {offsets = [0, 0], sizes = [16, 16], strides = [1, 1]} : vector<16x48xf32> to vector<16x16xf32>
    %728 = vector.extract_strided_slice %726 {offsets = [0, 0], sizes = [16, 16], strides = [1, 1]} : vector<16x48xf32> to vector<16x16xf32>
    %729 = arith.addf %727, %728 : vector<16x16xf32>
    %730 = arith.negf %729 : vector<16x16xf32>
    %731 = math.exp %730 : vector<16x16xf32>
    %cst_239 = arith.constant 1.000000e+00 : f32
    %732 = vector.broadcast %cst_239 : f32 to vector<16x16xf32>
    %733 = arith.addf %732, %731 : vector<16x16xf32>
    %734 = arith.divf %732, %733 : vector<16x16xf32>
    %735 = vector.extract_strided_slice %723 {offsets = [0, 16], sizes = [16, 16], strides = [1, 1]} : vector<16x48xf32> to vector<16x16xf32>
    %736 = vector.extract_strided_slice %726 {offsets = [0, 16], sizes = [16, 16], strides = [1, 1]} : vector<16x48xf32> to vector<16x16xf32>
    %737 = arith.addf %735, %736 : vector<16x16xf32>
    %738 = arith.negf %737 : vector<16x16xf32>
    %739 = math.exp %738 : vector<16x16xf32>
    %cst_240 = arith.constant 1.000000e+00 : f32
    %740 = vector.broadcast %cst_240 : f32 to vector<16x16xf32>
    %741 = arith.addf %740, %739 : vector<16x16xf32>
    %742 = arith.divf %740, %741 : vector<16x16xf32>
    %743 = vector.extract_strided_slice %723 {offsets = [0, 32], sizes = [16, 16], strides = [1, 1]} : vector<16x48xf32> to vector<16x16xf32>
    %744 = vector.extract_strided_slice %726 {offsets = [0, 32], sizes = [16, 16], strides = [1, 1]} : vector<16x48xf32> to vector<16x16xf32>
    %745 = arith.mulf %734, %744 : vector<16x16xf32>
    %746 = arith.addf %743, %745 : vector<16x16xf32>
    %747 = math.tanh %746 : vector<16x16xf32>
    %748 = vector.extract_strided_slice %713 {offsets = [0, 0], sizes = [16, 16], strides = [1, 1]} : vector<16x32xf32> to vector<16x16xf32>
    %749 = vector.extract_strided_slice %713 {offsets = [0, 16], sizes = [16, 16], strides = [1, 1]} : vector<16x32xf32> to vector<16x16xf32>
    %750 = arith.addf %748, %749 : vector<16x16xf32>
    %751 = arith.subf %750, %747 : vector<16x16xf32>
    %752 = arith.mulf %742, %751 : vector<16x16xf32>
    %753 = arith.addf %747, %752 : vector<16x16xf32>
    %754 = vector.extract_strided_slice %753 {offsets = [0, 0], sizes = [8, 16], strides = [1, 1]} : vector<16x16xf32> to vector<8x16xf32>
    %755 = arith.index_cast %c4_i32_232 : i32 to index
    %c0_241 = arith.constant 0 : index
    %c0_242 = arith.constant 0 : index
    %756 = vector.load %arg13[%755, %c0_241, %c0_242] : memref<8x8x16xf32, #tpu.memory_space<vmem>>, vector<1x8x16xf32>
    %757 = vector.shape_cast %756 : vector<1x8x16xf32> to vector<8x16xf32>
    %758 = vector.shape_cast %754 : vector<8x16xf32> to vector<1x8x16xf32>
    tpu.vector_store %arg13[%755, %c0_241, %c0_242], %758 {strides = array<i32>} : memref<8x8x16xf32, #tpu.memory_space<vmem>>, vector<1x8x16xf32>,
    %759 = vector.extract_strided_slice %753 {offsets = [8, 0], sizes = [8, 16], strides = [1, 1]} : vector<16x16xf32> to vector<8x16xf32>
    %760 = arith.index_cast %714 : i32 to index
    %c0_243 = arith.constant 0 : index
    %c0_244 = arith.constant 0 : index
    %761 = vector.load %arg14[%760, %c0_243, %c0_244] : memref<8x8x16xf32, #tpu.memory_space<vmem>>, vector<1x8x16xf32>
    %762 = vector.shape_cast %761 : vector<1x8x16xf32> to vector<8x16xf32>
    %763 = vector.shape_cast %759 : vector<8x16xf32> to vector<1x8x16xf32>
    tpu.vector_store %arg14[%760, %c0_243, %c0_244], %763 {strides = array<i32>} : memref<8x8x16xf32, #tpu.memory_space<vmem>>, vector<1x8x16xf32>,
    %764 = tpu.concatenate %753, %753 in 1 : vector<16x16xf32>, vector<16x16xf32> -> vector<16x32xf32>
    %765 = arith.mulf %764, %9 : vector<16x32xf32>
    %c5_i32_245 = arith.constant 5 : i32
    %c7_i32_246 = arith.constant 7 : i32
    %766 = arith.subi %c7_i32_246, %c5_i32_245 : i32
    %767 = arith.index_cast %c5_i32_245 : i32 to index
    %c0_247 = arith.constant 0 : index
    %c0_248 = arith.constant 0 : index
    %768 = vector.load %arg11[%767, %c0_247, %c0_248] : memref<8x8x48xbf16, #tpu.memory_space<vmem>>, vector<1x8x48xbf16>
    %769 = vector.shape_cast %768 : vector<1x8x48xbf16> to vector<8x48xbf16>
    %770 = arith.extf %769 : vector<8x48xbf16> to vector<8x48xf32>
    %771 = arith.index_cast %766 : i32 to index
    %c0_249 = arith.constant 0 : index
    %c0_250 = arith.constant 0 : index
    %772 = vector.load %arg12[%771, %c0_249, %c0_250] : memref<8x8x48xbf16, #tpu.memory_space<vmem>>, vector<1x8x48xbf16>
    %773 = vector.shape_cast %772 : vector<1x8x48xbf16> to vector<8x48xbf16>
    %774 = arith.extf %773 : vector<8x48xbf16> to vector<8x48xf32>
    %775 = tpu.concatenate %770, %774 in 0 : vector<8x48xf32>, vector<8x48xf32> -> vector<16x48xf32>
    %776 = arith.truncf %765 : vector<16x32xf32> to vector<16x32xbf16>
    %cst_251 = arith.constant dense<0.000000e+00> : vector<16x48xf32>
    %777 = tpu.matmul %776, %495, %cst_251 {dimension_numbers = #tpu.dot_dimension_numbers<[1], [0], [0], [1], [0, 0, 1, 1], [], []>} : vector<16x32xbf16>, vector<32x48xbf16>, vector<16x48xf32> -> vector<16x48xf32>
    %778 = arith.addf %777, %504 : vector<16x48xf32>
    %779 = vector.extract_strided_slice %775 {offsets = [0, 0], sizes = [16, 16], strides = [1, 1]} : vector<16x48xf32> to vector<16x16xf32>
    %780 = vector.extract_strided_slice %778 {offsets = [0, 0], sizes = [16, 16], strides = [1, 1]} : vector<16x48xf32> to vector<16x16xf32>
    %781 = arith.addf %779, %780 : vector<16x16xf32>
    %782 = arith.negf %781 : vector<16x16xf32>
    %783 = math.exp %782 : vector<16x16xf32>
    %cst_252 = arith.constant 1.000000e+00 : f32
    %784 = vector.broadcast %cst_252 : f32 to vector<16x16xf32>
    %785 = arith.addf %784, %783 : vector<16x16xf32>
    %786 = arith.divf %784, %785 : vector<16x16xf32>
    %787 = vector.extract_strided_slice %775 {offsets = [0, 16], sizes = [16, 16], strides = [1, 1]} : vector<16x48xf32> to vector<16x16xf32>
    %788 = vector.extract_strided_slice %778 {offsets = [0, 16], sizes = [16, 16], strides = [1, 1]} : vector<16x48xf32> to vector<16x16xf32>
    %789 = arith.addf %787, %788 : vector<16x16xf32>
    %790 = arith.negf %789 : vector<16x16xf32>
    %791 = math.exp %790 : vector<16x16xf32>
    %cst_253 = arith.constant 1.000000e+00 : f32
    %792 = vector.broadcast %cst_253 : f32 to vector<16x16xf32>
    %793 = arith.addf %792, %791 : vector<16x16xf32>
    %794 = arith.divf %792, %793 : vector<16x16xf32>
    %795 = vector.extract_strided_slice %775 {offsets = [0, 32], sizes = [16, 16], strides = [1, 1]} : vector<16x48xf32> to vector<16x16xf32>
    %796 = vector.extract_strided_slice %778 {offsets = [0, 32], sizes = [16, 16], strides = [1, 1]} : vector<16x48xf32> to vector<16x16xf32>
    %797 = arith.mulf %786, %796 : vector<16x16xf32>
    %798 = arith.addf %795, %797 : vector<16x16xf32>
    %799 = math.tanh %798 : vector<16x16xf32>
    %800 = vector.extract_strided_slice %765 {offsets = [0, 0], sizes = [16, 16], strides = [1, 1]} : vector<16x32xf32> to vector<16x16xf32>
    %801 = vector.extract_strided_slice %765 {offsets = [0, 16], sizes = [16, 16], strides = [1, 1]} : vector<16x32xf32> to vector<16x16xf32>
    %802 = arith.addf %800, %801 : vector<16x16xf32>
    %803 = arith.subf %802, %799 : vector<16x16xf32>
    %804 = arith.mulf %794, %803 : vector<16x16xf32>
    %805 = arith.addf %799, %804 : vector<16x16xf32>
    %806 = vector.extract_strided_slice %805 {offsets = [0, 0], sizes = [8, 16], strides = [1, 1]} : vector<16x16xf32> to vector<8x16xf32>
    %807 = arith.index_cast %c5_i32_245 : i32 to index
    %c0_254 = arith.constant 0 : index
    %c0_255 = arith.constant 0 : index
    %808 = vector.load %arg13[%807, %c0_254, %c0_255] : memref<8x8x16xf32, #tpu.memory_space<vmem>>, vector<1x8x16xf32>
    %809 = vector.shape_cast %808 : vector<1x8x16xf32> to vector<8x16xf32>
    %810 = vector.shape_cast %806 : vector<8x16xf32> to vector<1x8x16xf32>
    tpu.vector_store %arg13[%807, %c0_254, %c0_255], %810 {strides = array<i32>} : memref<8x8x16xf32, #tpu.memory_space<vmem>>, vector<1x8x16xf32>,
    %811 = vector.extract_strided_slice %805 {offsets = [8, 0], sizes = [8, 16], strides = [1, 1]} : vector<16x16xf32> to vector<8x16xf32>
    %812 = arith.index_cast %766 : i32 to index
    %c0_256 = arith.constant 0 : index
    %c0_257 = arith.constant 0 : index
    %813 = vector.load %arg14[%812, %c0_256, %c0_257] : memref<8x8x16xf32, #tpu.memory_space<vmem>>, vector<1x8x16xf32>
    %814 = vector.shape_cast %813 : vector<1x8x16xf32> to vector<8x16xf32>
    %815 = vector.shape_cast %811 : vector<8x16xf32> to vector<1x8x16xf32>
    tpu.vector_store %arg14[%812, %c0_256, %c0_257], %815 {strides = array<i32>} : memref<8x8x16xf32, #tpu.memory_space<vmem>>, vector<1x8x16xf32>,
    %816 = tpu.concatenate %805, %805 in 1 : vector<16x16xf32>, vector<16x16xf32> -> vector<16x32xf32>
    %817 = arith.mulf %816, %9 : vector<16x32xf32>
    %c6_i32_258 = arith.constant 6 : i32
    %c7_i32_259 = arith.constant 7 : i32
    %818 = arith.subi %c7_i32_259, %c6_i32_258 : i32
    %819 = arith.index_cast %c6_i32_258 : i32 to index
    %c0_260 = arith.constant 0 : index
    %c0_261 = arith.constant 0 : index
    %820 = vector.load %arg11[%819, %c0_260, %c0_261] : memref<8x8x48xbf16, #tpu.memory_space<vmem>>, vector<1x8x48xbf16>
    %821 = vector.shape_cast %820 : vector<1x8x48xbf16> to vector<8x48xbf16>
    %822 = arith.extf %821 : vector<8x48xbf16> to vector<8x48xf32>
    %823 = arith.index_cast %818 : i32 to index
    %c0_262 = arith.constant 0 : index
    %c0_263 = arith.constant 0 : index
    %824 = vector.load %arg12[%823, %c0_262, %c0_263] : memref<8x8x48xbf16, #tpu.memory_space<vmem>>, vector<1x8x48xbf16>
    %825 = vector.shape_cast %824 : vector<1x8x48xbf16> to vector<8x48xbf16>
    %826 = arith.extf %825 : vector<8x48xbf16> to vector<8x48xf32>
    %827 = tpu.concatenate %822, %826 in 0 : vector<8x48xf32>, vector<8x48xf32> -> vector<16x48xf32>
    %828 = arith.truncf %817 : vector<16x32xf32> to vector<16x32xbf16>
    %cst_264 = arith.constant dense<0.000000e+00> : vector<16x48xf32>
    %829 = tpu.matmul %828, %495, %cst_264 {dimension_numbers = #tpu.dot_dimension_numbers<[1], [0], [0], [1], [0, 0, 1, 1], [], []>} : vector<16x32xbf16>, vector<32x48xbf16>, vector<16x48xf32> -> vector<16x48xf32>
    %830 = arith.addf %829, %504 : vector<16x48xf32>
    %831 = vector.extract_strided_slice %827 {offsets = [0, 0], sizes = [16, 16], strides = [1, 1]} : vector<16x48xf32> to vector<16x16xf32>
    %832 = vector.extract_strided_slice %830 {offsets = [0, 0], sizes = [16, 16], strides = [1, 1]} : vector<16x48xf32> to vector<16x16xf32>
    %833 = arith.addf %831, %832 : vector<16x16xf32>
    %834 = arith.negf %833 : vector<16x16xf32>
    %835 = math.exp %834 : vector<16x16xf32>
    %cst_265 = arith.constant 1.000000e+00 : f32
    %836 = vector.broadcast %cst_265 : f32 to vector<16x16xf32>
    %837 = arith.addf %836, %835 : vector<16x16xf32>
    %838 = arith.divf %836, %837 : vector<16x16xf32>
    %839 = vector.extract_strided_slice %827 {offsets = [0, 16], sizes = [16, 16], strides = [1, 1]} : vector<16x48xf32> to vector<16x16xf32>
    %840 = vector.extract_strided_slice %830 {offsets = [0, 16], sizes = [16, 16], strides = [1, 1]} : vector<16x48xf32> to vector<16x16xf32>
    %841 = arith.addf %839, %840 : vector<16x16xf32>
    %842 = arith.negf %841 : vector<16x16xf32>
    %843 = math.exp %842 : vector<16x16xf32>
    %cst_266 = arith.constant 1.000000e+00 : f32
    %844 = vector.broadcast %cst_266 : f32 to vector<16x16xf32>
    %845 = arith.addf %844, %843 : vector<16x16xf32>
    %846 = arith.divf %844, %845 : vector<16x16xf32>
    %847 = vector.extract_strided_slice %827 {offsets = [0, 32], sizes = [16, 16], strides = [1, 1]} : vector<16x48xf32> to vector<16x16xf32>
    %848 = vector.extract_strided_slice %830 {offsets = [0, 32], sizes = [16, 16], strides = [1, 1]} : vector<16x48xf32> to vector<16x16xf32>
    %849 = arith.mulf %838, %848 : vector<16x16xf32>
    %850 = arith.addf %847, %849 : vector<16x16xf32>
    %851 = math.tanh %850 : vector<16x16xf32>
    %852 = vector.extract_strided_slice %817 {offsets = [0, 0], sizes = [16, 16], strides = [1, 1]} : vector<16x32xf32> to vector<16x16xf32>
    %853 = vector.extract_strided_slice %817 {offsets = [0, 16], sizes = [16, 16], strides = [1, 1]} : vector<16x32xf32> to vector<16x16xf32>
    %854 = arith.addf %852, %853 : vector<16x16xf32>
    %855 = arith.subf %854, %851 : vector<16x16xf32>
    %856 = arith.mulf %846, %855 : vector<16x16xf32>
    %857 = arith.addf %851, %856 : vector<16x16xf32>
    %858 = vector.extract_strided_slice %857 {offsets = [0, 0], sizes = [8, 16], strides = [1, 1]} : vector<16x16xf32> to vector<8x16xf32>
    %859 = arith.index_cast %c6_i32_258 : i32 to index
    %c0_267 = arith.constant 0 : index
    %c0_268 = arith.constant 0 : index
    %860 = vector.load %arg13[%859, %c0_267, %c0_268] : memref<8x8x16xf32, #tpu.memory_space<vmem>>, vector<1x8x16xf32>
    %861 = vector.shape_cast %860 : vector<1x8x16xf32> to vector<8x16xf32>
    %862 = vector.shape_cast %858 : vector<8x16xf32> to vector<1x8x16xf32>
    tpu.vector_store %arg13[%859, %c0_267, %c0_268], %862 {strides = array<i32>} : memref<8x8x16xf32, #tpu.memory_space<vmem>>, vector<1x8x16xf32>,
    %863 = vector.extract_strided_slice %857 {offsets = [8, 0], sizes = [8, 16], strides = [1, 1]} : vector<16x16xf32> to vector<8x16xf32>
    %864 = arith.index_cast %818 : i32 to index
    %c0_269 = arith.constant 0 : index
    %c0_270 = arith.constant 0 : index
    %865 = vector.load %arg14[%864, %c0_269, %c0_270] : memref<8x8x16xf32, #tpu.memory_space<vmem>>, vector<1x8x16xf32>
    %866 = vector.shape_cast %865 : vector<1x8x16xf32> to vector<8x16xf32>
    %867 = vector.shape_cast %863 : vector<8x16xf32> to vector<1x8x16xf32>
    tpu.vector_store %arg14[%864, %c0_269, %c0_270], %867 {strides = array<i32>} : memref<8x8x16xf32, #tpu.memory_space<vmem>>, vector<1x8x16xf32>,
    %868 = tpu.concatenate %857, %857 in 1 : vector<16x16xf32>, vector<16x16xf32> -> vector<16x32xf32>
    %869 = arith.mulf %868, %9 : vector<16x32xf32>
    %c7_i32_271 = arith.constant 7 : i32
    %c7_i32_272 = arith.constant 7 : i32
    %870 = arith.subi %c7_i32_272, %c7_i32_271 : i32
    %871 = arith.index_cast %c7_i32_271 : i32 to index
    %c0_273 = arith.constant 0 : index
    %c0_274 = arith.constant 0 : index
    %872 = vector.load %arg11[%871, %c0_273, %c0_274] : memref<8x8x48xbf16, #tpu.memory_space<vmem>>, vector<1x8x48xbf16>
    %873 = vector.shape_cast %872 : vector<1x8x48xbf16> to vector<8x48xbf16>
    %874 = arith.extf %873 : vector<8x48xbf16> to vector<8x48xf32>
    %875 = arith.index_cast %870 : i32 to index
    %c0_275 = arith.constant 0 : index
    %c0_276 = arith.constant 0 : index
    %876 = vector.load %arg12[%875, %c0_275, %c0_276] : memref<8x8x48xbf16, #tpu.memory_space<vmem>>, vector<1x8x48xbf16>
    %877 = vector.shape_cast %876 : vector<1x8x48xbf16> to vector<8x48xbf16>
    %878 = arith.extf %877 : vector<8x48xbf16> to vector<8x48xf32>
    %879 = tpu.concatenate %874, %878 in 0 : vector<8x48xf32>, vector<8x48xf32> -> vector<16x48xf32>
    %880 = arith.truncf %869 : vector<16x32xf32> to vector<16x32xbf16>
    %cst_277 = arith.constant dense<0.000000e+00> : vector<16x48xf32>
    %881 = tpu.matmul %880, %495, %cst_277 {dimension_numbers = #tpu.dot_dimension_numbers<[1], [0], [0], [1], [0, 0, 1, 1], [], []>} : vector<16x32xbf16>, vector<32x48xbf16>, vector<16x48xf32> -> vector<16x48xf32>
    %882 = arith.addf %881, %504 : vector<16x48xf32>
    %883 = vector.extract_strided_slice %879 {offsets = [0, 0], sizes = [16, 16], strides = [1, 1]} : vector<16x48xf32> to vector<16x16xf32>
    %884 = vector.extract_strided_slice %882 {offsets = [0, 0], sizes = [16, 16], strides = [1, 1]} : vector<16x48xf32> to vector<16x16xf32>
    %885 = arith.addf %883, %884 : vector<16x16xf32>
    %886 = arith.negf %885 : vector<16x16xf32>
    %887 = math.exp %886 : vector<16x16xf32>
    %cst_278 = arith.constant 1.000000e+00 : f32
    %888 = vector.broadcast %cst_278 : f32 to vector<16x16xf32>
    %889 = arith.addf %888, %887 : vector<16x16xf32>
    %890 = arith.divf %888, %889 : vector<16x16xf32>
    %891 = vector.extract_strided_slice %879 {offsets = [0, 16], sizes = [16, 16], strides = [1, 1]} : vector<16x48xf32> to vector<16x16xf32>
    %892 = vector.extract_strided_slice %882 {offsets = [0, 16], sizes = [16, 16], strides = [1, 1]} : vector<16x48xf32> to vector<16x16xf32>
    %893 = arith.addf %891, %892 : vector<16x16xf32>
    %894 = arith.negf %893 : vector<16x16xf32>
    %895 = math.exp %894 : vector<16x16xf32>
    %cst_279 = arith.constant 1.000000e+00 : f32
    %896 = vector.broadcast %cst_279 : f32 to vector<16x16xf32>
    %897 = arith.addf %896, %895 : vector<16x16xf32>
    %898 = arith.divf %896, %897 : vector<16x16xf32>
    %899 = vector.extract_strided_slice %879 {offsets = [0, 32], sizes = [16, 16], strides = [1, 1]} : vector<16x48xf32> to vector<16x16xf32>
    %900 = vector.extract_strided_slice %882 {offsets = [0, 32], sizes = [16, 16], strides = [1, 1]} : vector<16x48xf32> to vector<16x16xf32>
    %901 = arith.mulf %890, %900 : vector<16x16xf32>
    %902 = arith.addf %899, %901 : vector<16x16xf32>
    %903 = math.tanh %902 : vector<16x16xf32>
    %904 = vector.extract_strided_slice %869 {offsets = [0, 0], sizes = [16, 16], strides = [1, 1]} : vector<16x32xf32> to vector<16x16xf32>
    %905 = vector.extract_strided_slice %869 {offsets = [0, 16], sizes = [16, 16], strides = [1, 1]} : vector<16x32xf32> to vector<16x16xf32>
    %906 = arith.addf %904, %905 : vector<16x16xf32>
    %907 = arith.subf %906, %903 : vector<16x16xf32>
    %908 = arith.mulf %898, %907 : vector<16x16xf32>
    %909 = arith.addf %903, %908 : vector<16x16xf32>
    %910 = vector.extract_strided_slice %909 {offsets = [0, 0], sizes = [8, 16], strides = [1, 1]} : vector<16x16xf32> to vector<8x16xf32>
    %911 = arith.index_cast %c7_i32_271 : i32 to index
    %c0_280 = arith.constant 0 : index
    %c0_281 = arith.constant 0 : index
    %912 = vector.load %arg13[%911, %c0_280, %c0_281] : memref<8x8x16xf32, #tpu.memory_space<vmem>>, vector<1x8x16xf32>
    %913 = vector.shape_cast %912 : vector<1x8x16xf32> to vector<8x16xf32>
    %914 = vector.shape_cast %910 : vector<8x16xf32> to vector<1x8x16xf32>
    tpu.vector_store %arg13[%911, %c0_280, %c0_281], %914 {strides = array<i32>} : memref<8x8x16xf32, #tpu.memory_space<vmem>>, vector<1x8x16xf32>,
    %915 = vector.extract_strided_slice %909 {offsets = [8, 0], sizes = [8, 16], strides = [1, 1]} : vector<16x16xf32> to vector<8x16xf32>
    %916 = arith.index_cast %870 : i32 to index
    %c0_282 = arith.constant 0 : index
    %c0_283 = arith.constant 0 : index
    %917 = vector.load %arg14[%916, %c0_282, %c0_283] : memref<8x8x16xf32, #tpu.memory_space<vmem>>, vector<1x8x16xf32>
    %918 = vector.shape_cast %917 : vector<1x8x16xf32> to vector<8x16xf32>
    %919 = vector.shape_cast %915 : vector<8x16xf32> to vector<1x8x16xf32>
    tpu.vector_store %arg14[%916, %c0_282, %c0_283], %919 {strides = array<i32>} : memref<8x8x16xf32, #tpu.memory_space<vmem>>, vector<1x8x16xf32>,
    %920 = tpu.concatenate %909, %909 in 1 : vector<16x16xf32>, vector<16x16xf32> -> vector<16x32xf32>
    %921 = arith.mulf %920, %9 : vector<16x32xf32>
    %c8_i32_284 = arith.constant 8 : i32
    %c0_285 = arith.constant 0 : index
    %c0_286 = arith.constant 0 : index
    %c0_287 = arith.constant 0 : index
    %922 = vector.load %arg13[%c0_285, %c0_286, %c0_287] : memref<8x8x16xf32, #tpu.memory_space<vmem>>, vector<8x8x16xf32>
    %c0_288 = arith.constant 0 : index
    %c0_289 = arith.constant 0 : index
    %c0_290 = arith.constant 0 : index
    %c0_291 = arith.constant 0 : index
    %923 = vector.load %arg8[%c0_288, %c0_289, %c0_290, %c0_291] : memref<2x1x1x16xf32, #tpu.memory_space<vmem>>, vector<1x1x1x16xf32>
    %924 = vector.shape_cast %923 : vector<1x1x1x16xf32> to vector<1x1x16xf32>
    %925 = vector.broadcast %924 : vector<1x1x16xf32> to vector<8x8x16xf32>
    %926 = arith.mulf %922, %925 : vector<8x8x16xf32>
    %cst_292 = arith.constant dense<0.000000e+00> : vector<8x8xf32>
    %927 = vector.multi_reduction <add>, %926, %cst_292 [2] : vector<8x8x16xf32> to vector<8x8xf32>
    %c0_293 = arith.constant 0 : index
    %c0_294 = arith.constant 0 : index
    %c0_295 = arith.constant 0 : index
    %928 = vector.load %arg14[%c0_293, %c0_294, %c0_295] : memref<8x8x16xf32, #tpu.memory_space<vmem>>, vector<8x8x16xf32>
    %c1_296 = arith.constant 1 : index
    %c0_297 = arith.constant 0 : index
    %c0_298 = arith.constant 0 : index
    %c0_299 = arith.constant 0 : index
    %929 = vector.load %arg8[%c1_296, %c0_297, %c0_298, %c0_299] : memref<2x1x1x16xf32, #tpu.memory_space<vmem>>, vector<1x1x1x16xf32>
    %930 = vector.shape_cast %929 : vector<1x1x1x16xf32> to vector<1x1x16xf32>
    %931 = vector.broadcast %930 : vector<1x1x16xf32> to vector<8x8x16xf32>
    %932 = arith.mulf %928, %931 : vector<8x8x16xf32>
    %cst_300 = arith.constant dense<0.000000e+00> : vector<8x8xf32>
    %933 = vector.multi_reduction <add>, %932, %cst_300 [2] : vector<8x8x16xf32> to vector<8x8xf32>
    %934 = arith.addf %927, %933 : vector<8x8xf32>
    %c0_301 = arith.constant 0 : index
    %c0_302 = arith.constant 0 : index
    %935 = vector.load %arg9[%c0_301, %c0_302] : memref<1x1xf32, #tpu.memory_space<vmem>>, vector<1x1xf32>
    %936 = vector.broadcast %935 : vector<1x1xf32> to vector<8x8xf32>
    %937 = arith.addf %934, %936 : vector<8x8xf32>
    %938 = arith.negf %937 : vector<8x8xf32>
    %939 = math.exp %938 : vector<8x8xf32>
    %cst_303 = arith.constant 1.000000e+00 : f32
    %940 = vector.broadcast %cst_303 : f32 to vector<8x8xf32>
    %941 = arith.addf %940, %939 : vector<8x8xf32>
    %942 = arith.divf %940, %941 : vector<8x8xf32>
    %943 = tpu.transpose %942, [1, 0] : vector<8x8xf32> -> vector<8x8xf32>
    %c0_304 = arith.constant 0 : index
    %c0_305 = arith.constant 0 : index
    %944 = vector.load %arg10[%c0_304, %c0_305] : memref<8x8xf32, #tpu.memory_space<vmem>>, vector<8x8xf32>
    tpu.vector_store %arg10[%c0_304, %c0_305], %943 {strides = array<i32>} : memref<8x8xf32, #tpu.memory_space<vmem>>, vector<8x8xf32>,
    return
  }
  func.func @transform_0(%arg0: i32) -> (i32, i32, i32) {
    %c0_i32 = arith.constant 0 : i32
    %c0_i32_0 = arith.constant 0 : i32
    %c0_i32_1 = arith.constant 0 : i32
    return %c0_i32, %arg0, %c0_i32_0 : i32, i32, i32
  }
  func.func @transform_1(%arg0: i32) -> (i32, i32, i32) {
    %c0_i32 = arith.constant 0 : i32
    %c0_i32_0 = arith.constant 0 : i32
    %c0_i32_1 = arith.constant 0 : i32
    %c0_i32_2 = arith.constant 0 : i32
    return %c0_i32, %c0_i32_0, %c0_i32_1 : i32, i32, i32
  }
  func.func @transform_2(%arg0: i32) -> (i32, i32, i32) {
    %c0_i32 = arith.constant 0 : i32
    %c0_i32_0 = arith.constant 0 : i32
    %c0_i32_1 = arith.constant 0 : i32
    %c0_i32_2 = arith.constant 0 : i32
    return %c0_i32, %c0_i32_0, %c0_i32_1 : i32, i32, i32
  }
  func.func @transform_3(%arg0: i32) -> (i32, i32, i32, i32) {
    %c0_i32 = arith.constant 0 : i32
    %c0_i32_0 = arith.constant 0 : i32
    %c0_i32_1 = arith.constant 0 : i32
    %c0_i32_2 = arith.constant 0 : i32
    %c0_i32_3 = arith.constant 0 : i32
    return %c0_i32, %c0_i32_0, %c0_i32_1, %c0_i32_2 : i32, i32, i32, i32
  }
  func.func @transform_4(%arg0: i32) -> (i32, i32, i32) {
    %c0_i32 = arith.constant 0 : i32
    %c0_i32_0 = arith.constant 0 : i32
    %c0_i32_1 = arith.constant 0 : i32
    %c0_i32_2 = arith.constant 0 : i32
    return %c0_i32, %c0_i32_0, %c0_i32_1 : i32, i32, i32
  }
  func.func @transform_5(%arg0: i32) -> (i32, i32, i32) {
    %c0_i32 = arith.constant 0 : i32
    %c0_i32_0 = arith.constant 0 : i32
    %c0_i32_1 = arith.constant 0 : i32
    %c0_i32_2 = arith.constant 0 : i32
    return %c0_i32, %c0_i32_0, %c0_i32_1 : i32, i32, i32
  }
  func.func @transform_6(%arg0: i32) -> (i32, i32, i32, i32) {
    %c0_i32 = arith.constant 0 : i32
    %c0_i32_0 = arith.constant 0 : i32
    %c0_i32_1 = arith.constant 0 : i32
    %c0_i32_2 = arith.constant 0 : i32
    %c0_i32_3 = arith.constant 0 : i32
    return %c0_i32, %c0_i32_0, %c0_i32_1, %c0_i32_2 : i32, i32, i32, i32
  }
  func.func @transform_7(%arg0: i32) -> (i32, i32, i32, i32) {
    %c0_i32 = arith.constant 0 : i32
    %c0_i32_0 = arith.constant 0 : i32
    %c0_i32_1 = arith.constant 0 : i32
    %c0_i32_2 = arith.constant 0 : i32
    %c0_i32_3 = arith.constant 0 : i32
    return %c0_i32, %c0_i32_0, %c0_i32_1, %c0_i32_2 : i32, i32, i32, i32
  }
  func.func @transform_8(%arg0: i32) -> (i32, i32) {
    %c0_i32 = arith.constant 0 : i32
    %c0_i32_0 = arith.constant 0 : i32
    %c0_i32_1 = arith.constant 0 : i32
    return %c0_i32, %c0_i32_0 : i32, i32
  }
  func.func @transform_9(%arg0: i32) -> (i32, i32) {
    %c0_i32 = arith.constant 0 : i32
    %c0_i32_0 = arith.constant 0 : i32
    return %arg0, %c0_i32 : i32, i32
  }
}

</mosaic_0001>

<llo_original>
// kernel: _detection_forward.1
$region0: #{_detection_forward.1}
  #allocation0 [shape = 'u32[]', space=smem, size = 0x4, offset = 0x4, fixed_abs, tag = 'smem constant byte address 0x4 - core index']
  #allocation1 [shape = 'u32[144,128]{1,0:T(1,128)}', space=vmem, size = 0x12000, scoped, tag = 'internal scratch']
  #allocation2 [shape = 'bf16[8,8,48]{2,1,0:T(8,128)(2,1)}', space=vmem, size = 0x4000, scoped, tag = 'scratch operand']
  #allocation3 [shape = 'bf16[8,8,48]{2,1,0:T(8,128)(2,1)}', space=vmem, size = 0x4000, scoped, tag = 'scratch operand']
  #allocation4 [shape = 'f32[8,8,16]{2,1,0:T(8,128)}', space=vmem, size = 0x8000, scoped, tag = 'scratch operand']
  #allocation5 [shape = 'f32[8,8,16]{2,1,0:T(8,128)}', space=vmem, size = 0x8000, scoped, tag = 'scratch operand']
  #allocation6 [shape = 'f32[1,1]{1,0:T(1,128)S(1)}', space=vmem, size = 0x200, scoped, tag = 'scoped memory for _detection_forward.1']
  %s0 = inlined_call_operand.vmem [shape: bf16[8,8,32], index: 0, kind: input, shape index: {}]
  %s1 = inlined_call_operand.vmem [shape: bf16[2,32,48], index: 1, kind: input, shape index: {}]
  %s2 = inlined_call_operand.vmem [shape: f32[2,1,48], index: 2, kind: input, shape index: {}]
  %s3 = inlined_call_operand.vmem [shape: bf16[2,2,16,48], index: 3, kind: input, shape index: {}]
  %s4 = inlined_call_operand.vmem [shape: f32[2,1,48], index: 4, kind: input, shape index: {}]
  %s5 = inlined_call_operand.hbm [shape: bf16[2,32,48], index: 5, kind: input, shape index: {}]
  %s6 = inlined_call_operand.vmem [shape: f32[2,2,1,48], index: 6, kind: input, shape index: {}]
  %s7 = inlined_call_operand.vmem [shape: f32[2,1,1,16], index: 7, kind: input, shape index: {}]
  %s8 = inlined_call_operand.<no memory space> [shape: f32[1,1], index: 8, kind: input, shape index: {}]
  %s9 = inlined_call_operand.vmem [shape: f32[8,8], index: 9, kind: output, shape index: {}]
  %s10 = sld [smem:[#allocation0]]
  $region50: #{_detection_forward.1} parent=0
    _
  %s12 = ssub.s32 1, %s10
  %s13 = scalar_select 0, %s12, %s10
  %v14 = vstv %s8
  %15 = vst [vmem:[#allocation6] sm:$0x1] %v14
  $region1: #{_detection_forward.1} parent=0
    #allocation7 [shape = 'u8[16384]{0}', space=vmem, size = 0x4000, scoped, tag = 'input window, operand 5, single buffered']
    #allocation8 [shape = 's32[1]{0}', space=sflag, size = 0x4, scoped, tag = 'scoped memory for _detection_forward.1']
    %16 = vsyncpa [#allocation8], 0
    // Predicated region
    $region2: #{_detection_forward.1} parent=1 // pred_check
      _
    $region3: #{_detection_forward.1} parent=1 // pred_check_branch
      %18 = sbr.rel (0) target = $region5
    $region4: #{_detection_forward.1} parent=1 // pred_region
      _
    $region5: #{_detection_forward.1} parent=1 // pred_fallthru
      _
    // Predicated region
    $region6: #{_detection_forward.1} parent=1 // pred_check
      _
    $region7: #{_detection_forward.1} parent=1 // pred_check_branch
      %20 = sbr.rel (0) target = $region9
    $region8: #{_detection_forward.1} parent=1 // pred_region
      _
    $region9: #{_detection_forward.1} parent=1 // pred_fallthru
      _
    // Predicated region
    $region10: #{_detection_forward.1} parent=1 // pred_check
      _
    $region11: #{_detection_forward.1} parent=1 // pred_check_branch
      %22 = sbr.rel (0) target = $region13
    $region12: #{_detection_forward.1} parent=1 // pred_region
      _
    $region13: #{_detection_forward.1} parent=1 // pred_fallthru
      _
    // Predicated region
    $region14: #{_detection_forward.1} parent=1 // pred_check
      _
    $region15: #{_detection_forward.1} parent=1 // pred_check_branch
      %24 = sbr.rel (0) target = $region17
    $region16: #{_detection_forward.1} parent=1 // pred_region
      _
    $region17: #{_detection_forward.1} parent=1 // pred_fallthru
      _
    // Predicated region
    $region18: #{_detection_forward.1} parent=1 // pred_check
      _
    $region19: #{_detection_forward.1} parent=1 // pred_check_branch
      %26 = sbr.rel (0) target = $region21
    $region20: #{_detection_forward.1} parent=1 // pred_region
      _
    $region21: #{_detection_forward.1} parent=1 // pred_fallthru
      _
    // Predicated region
    $region22: #{_detection_forward.1} parent=1 // pred_check
      _
    $region23: #{_detection_forward.1} parent=1 // pred_check_branch
      %28 = sbr.rel (0) target = $region25
    $region24: #{_detection_forward.1} parent=1 // pred_region
      %s30 = ssub.s32 512, 512
      %31 = vsyncadd [#allocation8], %s30
      %s32 = sshll.u32 [#allocation7], 4
      %s33 = int_to_ptr.vmem [resolvable:$true] %s32
      %38 = dma.hbm_to_vmem [thread:$0]  %s5, 512, %s33, [#allocation8], 64, 64, 4
    $region25: #{_detection_forward.1} parent=1 // pred_fallthru
      _
    // Predicated region
    $region26: #{_detection_forward.1} parent=1 // pred_check
      _
    $region27: #{_detection_forward.1} parent=1 // pred_check_branch
      %40 = sbr.rel (0) target = $region29
    $region28: #{_detection_forward.1} parent=1 // pred_region
      _
    $region29: #{_detection_forward.1} parent=1 // pred_fallthru
      _
    // Predicated region
    $region30: #{_detection_forward.1} parent=1 // pred_check
      _
    $region31: #{_detection_forward.1} parent=1 // pred_check_branch
      %42 = sbr.rel (0) target = $region33
    $region32: #{_detection_forward.1} parent=1 // pred_region
      _
    $region33: #{_detection_forward.1} parent=1 // pred_fallthru
      _
    // Predicated region
    $region34: #{_detection_forward.1} parent=1 // pred_check
      _
    $region35: #{_detection_forward.1} parent=1 // pred_check_branch
      %44 = sbr.rel (0) target = $region37
    $region36: #{_detection_forward.1} parent=1 // pred_region
      _
    $region37: #{_detection_forward.1} parent=1 // pred_fallthru
      _
    // Predicated region
    $region38: #{_detection_forward.1} parent=1 // pred_check
      _
    $region39: #{_detection_forward.1} parent=1 // pred_check_branch
      %46 = sbr.rel (0) target = $region41
    $region40: #{_detection_forward.1} parent=1 // pred_region
      %47 = dma.done [#allocation8], 512
    $region41: #{_detection_forward.1} parent=1 // pred_fallthru
      _
    %v49 = vlaneseq
    %v50 = vshrl.u32 %v49, 7
    %v51 = vadd.s32 %v50, 8
    %v52 = vlaneseq
    %v53 = vand.u32 %v52, 127
    %vm54 = vcmp.lt.s32.totalorder %v50, 8
    %vm55 = vcmp.lt.s32.totalorder %v51, 8
    %vm56 = vcmp.lt.s32.totalorder %v53, 16
    %vm57 = vmxor %vm54, %vm56
    %vm58 = vmxor %vm55, %vm56
    %vm59 = vmxor %vm57, 1
    %vm60 = vmxor %vm58, 1
    %v61 = vsel %vm59, 1, 0
    %v62 = vsel %vm60, 1, 0
    %v63 = vcvt.s32.f32 %v61
    %v64 = vcvt.s32.f32 %v62
    %v65 = vld [vmem:[%s0] sm:$0xf]
    %v66 = vld [vmem:[%s0 + $0x4] sm:$0xf]
    %v67 = vld [vmem:[%s0 + $0x8] sm:$0xf]
    %v68 = vld [vmem:[%s0 + $0xc] sm:$0xf]
    %v69 = vld [vmem:[%s0 + $0x10] sm:$0xf]
    %v70 = vld [vmem:[%s0 + $0x14] sm:$0xf]
    %v71 = vld [vmem:[%s0 + $0x18] sm:$0xf]
    %v72 = vld [vmem:[%s0 + $0x1c] sm:$0xf]
    %v73 = vld [vmem:[%s1] sm:$0xf]
    %v74 = vld [vmem:[%s1 + $0x4] sm:$0xf]
    %v75 = vld [vmem:[%s1 + $0x8] sm:$0xf]
    %v76 = vld [vmem:[%s1 + $0xc] sm:$0xf]
    %v77 = vld [vmem:[%s2] sm:$0x1]
    %v79 = vlaneseq
    %v80 = vshrl.u32 %v79, 7
    %v81 = vsub.s32 0, %v80
    %v82 = vrot.slane %v77, %v81
    %v92 = vunpack.c.l.b16 %v65
    %v93 = vunpack.c.l.b16 %v66
    %v94 = vunpack.c.l.b16 %v67
    %v95 = vunpack.c.l.b16 %v68
    %v96 = vunpack.c.l.b16 %v69
    %v97 = vunpack.c.l.b16 %v70
    %v98 = vunpack.c.l.b16 %v71
    %v99 = vunpack.c.l.b16 %v72
    %v100 = vpack.c.b16 %v93, %v92
    %v101 = vpack.c.b16 %v95, %v94
    %v102 = vpack.c.b16 %v97, %v96
    %v103 = vpack.c.b16 %v99, %v98
    %v108 = vunpack.c.l.b16 %v73
    %v109 = vunpack.c.l.b16 %v74
    %v110 = vunpack.c.l.b16 %v75
    %v111 = vunpack.c.l.b16 %v76
    %v112 = vpack.c.b16 %v109, %v108
    %v113 = vpack.c.b16 %v111, %v110
    %vm116 = vcmask 261120
    %v118 = vsel %vm116, %v100, 0
    %v121 = vsel %vm116, %v101, 0
    %v124 = vsel %vm116, %v102, 0
    %v127 = vsel %vm116, %v103, 0
    %129 = vmatprep.subr.bf16.mxu0 0
    %130 = vmatpush1.bf16.msra.mxu0 %v112
    %131 = vmatprep.subr.bf16.mxu0 0
    %132 = vmatpush1.bf16.msra.mxu0 %v113
    %133 = vmatprep.subr.bf16.mxu0 0
    %134 = vmatpush1.bf16.msra.mxu0 0
    %135 = vmatprep.subr.bf16.mxu0 0
    %136 = vmatpush1.bf16.msra.mxu0 0
    %137 = vmatprep.subr.bf16.mxu0 0
    %138 = vmatpush1.bf16.msra.mxu0 0
    %139 = vmatprep.subr.bf16.mxu0 0
    %140 = vmatpush1.bf16.msra.mxu0 0
    %141 = vmatprep.subr.bf16.mxu0 0
    %142 = vmatpush1.bf16.msra.mxu0 0
    %143 = vmatprep.subr.bf16.mxu0 0
    %144 = vmatpush1.bf16.msra.mxu0 0
    %145 = vmatprep.subr.bf16.mxu0 0
    %146 = vmatpush1.bf16.msra.mxu0 0
    %147 = vmatprep.subr.bf16.mxu0 0
    %148 = vmatpush1.bf16.msra.mxu0 0
    %149 = vmatprep.subr.bf16.mxu0 0
    %150 = vmatpush1.bf16.msra.mxu0 0
    %151 = vmatprep.subr.bf16.mxu0 0
    %152 = vmatpush1.bf16.msra.mxu0 0
    %153 = vmatprep.subr.bf16.mxu0 0
    %154 = vmatpush1.bf16.msra.mxu0 0
    %155 = vmatprep.subr.bf16.mxu0 0
    %156 = vmatpush1.bf16.msra.mxu0 0
    %157 = vmatprep.subr.bf16.mxu0 0
    %158 = vmatpush1.bf16.msra.mxu0 0
    %159 = vmatprep.subr.bf16.mxu0 0
    %160 = vmatpush1.bf16.msra.mxu0 0
    %161 = vmatprep.mubr.bf16.mxu0 0
    %162 = vmatmul.mubr.bf16.gmra.mrb[0].mxu0 %v118
    %v163 = vpop.f32.mrb[0].mxu0
    %v164 = vadd.f32 %v82, %v163
    %v165 = vpop.f32.mrb[0].mxu0
    %v166 = vpop.f32.mrb[0].mxu0
    %v167 = vadd.f32 %v82, %v166
    %v168 = vpop.f32.mrb[0].mxu0
    %169 = vmatprep.mubr.bf16.mxu0 0
    %170 = vmatmul.mubr.bf16.gmra.mrb[0].mxu0 %v121
    %v171 = vpop.f32.mrb[0].mxu0
    %v172 = vadd.f32 %v82, %v171
    %v173 = vpop.f32.mrb[0].mxu0
    %v174 = vpop.f32.mrb[0].mxu0
    %v175 = vadd.f32 %v82, %v174
    %v176 = vpop.f32.mrb[0].mxu0
    %177 = vmatprep.mubr.bf16.mxu0 0
    %178 = vmatmul.mubr.bf16.gmra.mrb[0].mxu0 %v124
    %v179 = vpop.f32.mrb[0].mxu0
    %v180 = vadd.f32 %v82, %v179
    %v181 = vpop.f32.mrb[0].mxu0
    %v182 = vpop.f32.mrb[0].mxu0
    %v183 = vadd.f32 %v82, %v182
    %v184 = vpop.f32.mrb[0].mxu0
    %185 = vmatprep.mubr.bf16.mxu0 0
    %186 = vmatmul.mubr.bf16.gmra.mrb[0].mxu0 %v127
    %v187 = vpop.f32.mrb[0].mxu0
    %v188 = vadd.f32 %v82, %v187
    %v189 = vpop.f32.mrb[0].mxu0
    %v190 = vpop.f32.mrb[0].mxu0
    %v191 = vadd.f32 %v82, %v190
    %v192 = vpop.f32.mrb[0].mxu0
    %193 = vdwg.mxu0
    %v194 = vpack.c.bf16 %v164, %v164
    %v195 = vpack.c.bf16 %v167, %v167
    %v196 = vpack.c.bf16 %v172, %v172
    %v197 = vpack.c.bf16 %v175, %v175
    %v198 = vpack.c.bf16 %v180, %v180
    %v199 = vpack.c.bf16 %v183, %v183
    %v200 = vpack.c.bf16 %v188, %v188
    %v201 = vpack.c.bf16 %v191, %v191
    %vm202 = vcmask 388096
    %203 = vst.msk [vmem:[#allocation2] sm:$0xf] %vm202, %v194
    %204 = vst.msk [vmem:[#allocation2 + $0x4] sm:$0xf] %vm202, %v195
    %205 = vst.msk [vmem:[#allocation2 + $0x8] sm:$0xf] %vm202, %v196
    %206 = vst.msk [vmem:[#allocation2 + $0xc] sm:$0xf] %vm202, %v197
    %207 = vst.msk [vmem:[#allocation2 + $0x10] sm:$0xf] %vm202, %v198
    %208 = vst.msk [vmem:[#allocation2 + $0x14] sm:$0xf] %vm202, %v199
    %209 = vst.msk [vmem:[#allocation2 + $0x18] sm:$0xf] %vm202, %v200
    %210 = vst.msk [vmem:[#allocation2 + $0x1c] sm:$0xf] %vm202, %v201
    %s211 = scalar_lea.vmem %s1, 16
    %v212 = vld [vmem:[%s211] sm:$0xf]
    %v213 = vld [vmem:[%s211 + $0x4] sm:$0xf]
    %v214 = vld [vmem:[%s211 + $0x8] sm:$0xf]
    %v215 = vld [vmem:[%s211 + $0xc] sm:$0xf]
    %s216 = scalar_lea.vmem %s2, 1
    %v217 = vld [vmem:[%s216] sm:$0x1]
    %v219 = vlaneseq
    %v220 = vshrl.u32 %v219, 7
    %v221 = vsub.s32 0, %v220
    %v222 = vrot.slane %v217, %v221
    %v228 = vunpack.c.l.b16 %v212
    %v229 = vunpack.c.l.b16 %v213
    %v230 = vunpack.c.l.b16 %v214
    %v231 = vunpack.c.l.b16 %v215
    %v232 = vpack.c.b16 %v229, %v228
    %v233 = vpack.c.b16 %v231, %v230
    %236 = vmatprep.subr.bf16.mxu0 0
    %237 = vmatpush1.bf16.msra.mxu0 %v232
    %238 = vmatprep.subr.bf16.mxu0 0
    %239 = vmatpush1.bf16.msra.mxu0 %v233
    %240 = vmatprep.subr.bf16.mxu0 0
    %241 = vmatpush1.bf16.msra.mxu0 0
    %242 = vmatprep.subr.bf16.mxu0 0
    %243 = vmatpush1.bf16.msra.mxu0 0
    %244 = vmatprep.subr.bf16.mxu0 0
    %245 = vmatpush1.bf16.msra.mxu0 0
    %246 = vmatprep.subr.bf16.mxu0 0
    %247 = vmatpush1.bf16.msra.mxu0 0
    %248 = vmatprep.subr.bf16.mxu0 0
    %249 = vmatpush1.bf16.msra.mxu0 0
    %250 = vmatprep.subr.bf16.mxu0 0
    %251 = vmatpush1.bf16.msra.mxu0 0
    %252 = vmatprep.subr.bf16.mxu0 0
    %253 = vmatpush1.bf16.msra.mxu0 0
    %254 = vmatprep.subr.bf16.mxu0 0
    %255 = vmatpush1.bf16.msra.mxu0 0
    %256 = vmatprep.subr.bf16.mxu0 0
    %257 = vmatpush1.bf16.msra.mxu0 0
    %258 = vmatprep.subr.bf16.mxu0 0
    %259 = vmatpush1.bf16.msra.mxu0 0
    %260 = vmatprep.subr.bf16.mxu0 0
    %261 = vmatpush1.bf16.msra.mxu0 0
    %262 = vmatprep.subr.bf16.mxu0 0
    %263 = vmatpush1.bf16.msra.mxu0 0
    %264 = vmatprep.subr.bf16.mxu0 0
    %265 = vmatpush1.bf16.msra.mxu0 0
    %266 = vmatprep.subr.bf16.mxu0 0
    %267 = vmatpush1.bf16.msra.mxu0 0
    %268 = vmatprep.mubr.bf16.mxu0 0
    %269 = vmatmul.mubr.bf16.gmra.mrb[0].mxu0 %v118
    %v270 = vpop.f32.mrb[0].mxu0
    %v271 = vadd.f32 %v222, %v270
    %v272 = vpop.f32.mrb[0].mxu0
    %v273 = vpop.f32.mrb[0].mxu0
    %v274 = vadd.f32 %v222, %v273
    %v275 = vpop.f32.mrb[0].mxu0
    %276 = vmatprep.mubr.bf16.mxu0 0
    %277 = vmatmul.mubr.bf16.gmra.mrb[0].mxu0 %v121
    %v278 = vpop.f32.mrb[0].mxu0
    %v279 = vadd.f32 %v222, %v278
    %v280 = vpop.f32.mrb[0].mxu0
    %v281 = vpop.f32.mrb[0].mxu0
    %v282 = vadd.f32 %v222, %v281
    %v283 = vpop.f32.mrb[0].mxu0
    %284 = vmatprep.mubr.bf16.mxu0 0
    %285 = vmatmul.mubr.bf16.gmra.mrb[0].mxu0 %v124
    %v286 = vpop.f32.mrb[0].mxu0
    %v287 = vadd.f32 %v222, %v286
    %v288 = vpop.f32.mrb[0].mxu0
    %v289 = vpop.f32.mrb[0].mxu0
    %v290 = vadd.f32 %v222, %v289
    %v291 = vpop.f32.mrb[0].mxu0
    %292 = vmatprep.mubr.bf16.mxu0 0
    %293 = vmatmul.mubr.bf16.gmra.mrb[0].mxu0 %v127
    %v294 = vpop.f32.mrb[0].mxu0
    %v295 = vadd.f32 %v222, %v294
    %v296 = vpop.f32.mrb[0].mxu0
    %v297 = vpop.f32.mrb[0].mxu0
    %v298 = vadd.f32 %v222, %v297
    %v299 = vpop.f32.mrb[0].mxu0
    %300 = vdwg.mxu0
    %v301 = vpack.c.bf16 %v271, %v271
    %v302 = vpack.c.bf16 %v274, %v274
    %v303 = vpack.c.bf16 %v279, %v279
    %v304 = vpack.c.bf16 %v282, %v282
    %v305 = vpack.c.bf16 %v287, %v287
    %v306 = vpack.c.bf16 %v290, %v290
    %v307 = vpack.c.bf16 %v295, %v295
    %v308 = vpack.c.bf16 %v298, %v298
    %309 = vst.msk [vmem:[#allocation3] sm:$0xf] %vm202, %v301
    %310 = vst.msk [vmem:[#allocation3 + $0x4] sm:$0xf] %vm202, %v302
    %311 = vst.msk [vmem:[#allocation3 + $0x8] sm:$0xf] %vm202, %v303
    %312 = vst.msk [vmem:[#allocation3 + $0xc] sm:$0xf] %vm202, %v304
    %313 = vst.msk [vmem:[#allocation3 + $0x10] sm:$0xf] %vm202, %v305
    %314 = vst.msk [vmem:[#allocation3 + $0x14] sm:$0xf] %vm202, %v306
    %315 = vst.msk [vmem:[#allocation3 + $0x18] sm:$0xf] %vm202, %v307
    %316 = vst.msk [vmem:[#allocation3 + $0x1c] sm:$0xf] %vm202, %v308
    %v317 = vld [vmem:[#allocation7] sm:$0xf]
    %v318 = vld [vmem:[#allocation7 + $0x4] sm:$0xf]
    %v319 = vld [vmem:[#allocation7 + $0x8] sm:$0xf]
    %v320 = vld [vmem:[#allocation7 + $0xc] sm:$0xf]
    %v321 = vld [vmem:[%s6] sm:$0x1]
    %v323 = vlaneseq
    %v324 = vshrl.u32 %v323, 7
    %v325 = vsub.s32 0, %v324
    %v326 = vrot.slane %v321, %v325
    %s328 = scalar_lea.vmem %s6, 1
    %v329 = vld [vmem:[%s328] sm:$0x1]
    %v331 = vlaneseq
    %v332 = vshrl.u32 %v331, 7
    %v333 = vsub.s32 0, %v332
    %v334 = vrot.slane %v329, %v333
    %v336 = vld [vmem:[#allocation2] sm:$0xf]
    %v337 = vunpack.c.l.bf16 %v336
    %s338 = scalar_lea.vmem [#allocation3], 28
    %v339 = vld [vmem:[%s338] sm:$0xf]
    %v340 = vunpack.c.l.bf16 %v339
    %v345 = vunpack.c.l.b16 %v317
    %v346 = vunpack.c.l.b16 %v318
    %v347 = vunpack.c.l.b16 %v319
    %v348 = vunpack.c.l.b16 %v320
    %v349 = vpack.c.b16 %v346, %v345
    %v350 = vpack.c.b16 %v348, %v347
    %v354 = vsel %vm116, 0, 0
    %356 = vmatprep.subr.bf16.mxu0 0
    %357 = vmatpush1.bf16.msra.mxu0 %v349
    %358 = vmatprep.subr.bf16.mxu0 0
    %359 = vmatpush1.bf16.msra.mxu0 %v350
    %360 = vmatprep.subr.bf16.mxu0 0
    %361 = vmatpush1.bf16.msra.mxu0 0
    %362 = vmatprep.subr.bf16.mxu0 0
    %363 = vmatpush1.bf16.msra.mxu0 0
    %364 = vmatprep.subr.bf16.mxu0 0
    %365 = vmatpush1.bf16.msra.mxu0 0
    %366 = vmatprep.subr.bf16.mxu0 0
    %367 = vmatpush1.bf16.msra.mxu0 0
    %368 = vmatprep.subr.bf16.mxu0 0
    %369 = vmatpush1.bf16.msra.mxu0 0
    %370 = vmatprep.subr.bf16.mxu0 0
    %371 = vmatpush1.bf16.msra.mxu0 0
    %372 = vmatprep.subr.bf16.mxu0 0
    %373 = vmatpush1.bf16.msra.mxu0 0
    %374 = vmatprep.subr.bf16.mxu0 0
    %375 = vmatpush1.bf16.msra.mxu0 0
    %376 = vmatprep.subr.bf16.mxu0 0
    %377 = vmatpush1.bf16.msra.mxu0 0
    %378 = vmatprep.subr.bf16.mxu0 0
    %379 = vmatpush1.bf16.msra.mxu0 0
    %380 = vmatprep.subr.bf16.mxu0 0
    %381 = vmatpush1.bf16.msra.mxu0 0
    %382 = vmatprep.subr.bf16.mxu0 0
    %383 = vmatpush1.bf16.msra.mxu0 0
    %384 = vmatprep.subr.bf16.mxu0 0
    %385 = vmatpush1.bf16.msra.mxu0 0
    %386 = vmatprep.subr.bf16.mxu0 0
    %387 = vmatpush1.bf16.msra.mxu0 0
    %388 = vmatprep.mubr.bf16.mxu0 0
    %389 = vmatmul.mubr.bf16.gmra.mrb[0].mxu0 %v354
    %v390 = vpop.f32.mrb[0].mxu0
    %v391 = vadd.f32 %v326, %v390
    %v392 = vpop.f32.mrb[0].mxu0
    %v393 = vpop.f32.mrb[0].mxu0
    %v394 = vadd.f32 %v334, %v393
    %v395 = vpop.f32.mrb[0].mxu0
    %396 = vdwg.mxu0
    %v397 = vadd.f32 %v337, %v391
    %v398 = vadd.f32 %v340, %v394
    %v399 = vxor.u32 %v397, 2147483648
    %v400 = vxor.u32 %v398, 2147483648
    %v401 = vmul.f32 %v399, 1.442695
    %v402 = vpow.pop %v401
    %v403 = vmul.f32 %v400, 1.442695
    %v404 = vpow.pop %v403
    %v405 = vadd.f32 %v402, 1.0
    %v406 = vadd.f32 %v404, 1.0
    %v407 = vrcp.pop %v405
    %v408 = vmul.f32 1.0, %v407
    %v409 = vrcp.pop %v406
    %v410 = vmul.f32 1.0, %v409
    %413 = vrot.lane.b32.xlu0 %v391, 96
    %v414 = vpop.permute.xlu0 %413
    %415 = vrot.lane.b32.xlu0 %v394, 96
    %v416 = vpop.permute.xlu0 %415
    %v419 = vmul.f32 %v408, %v414
    %v420 = vmul.f32 %v410, %v416
    %423 = vrot.lane.b32.xlu0 %v419, 32
    %v424 = vpop.permute.xlu0 %423
    %425 = vrot.lane.b32.xlu0 %v420, 32
    %v426 = vpop.permute.xlu0 %425
    %v429 = vadd.f32 %v337, %v424
    %v430 = vadd.f32 %v340, %v426
    %v431 = vtanh.pop %v429
    %v432 = vtanh.pop %v430
    %v433 = vsub.f32 0.0, %v431
    %v434 = vsub.f32 0.0, %v432
    %437 = vrot.lane.b32.xlu0 %v433, 112
    %v438 = vpop.permute.xlu0 %437
    %439 = vrot.lane.b32.xlu0 %v434, 112
    %v440 = vpop.permute.xlu0 %439
    %v443 = vmul.f32 %v408, %v438
    %v444 = vmul.f32 %v410, %v440
    %447 = vrot.lane.b32.xlu0 %v443, 16
    %v448 = vpop.permute.xlu0 %447
    %449 = vrot.lane.b32.xlu0 %v444, 16
    %v450 = vpop.permute.xlu0 %449
    %v453 = vadd.f32 %v431, %v448
    %v454 = vadd.f32 %v432, %v450
    %456 = vrot.lane.b32.xlu0 %v453, 96
    %v457 = vpop.permute.xlu0 %456
    %vm459 = vcmask 130048
    %460 = vst.msk [vmem:[#allocation4] sm:$0xff] %vm459, %v457
    %462 = vrot.lane.b32.xlu0 %v454, 96
    %v463 = vpop.permute.xlu0 %462
    %s465 = scalar_lea.vmem [#allocation5], 56
    %466 = vst.msk [vmem:[%s465] sm:$0xff] %vm459, %v463
    %467 = vrot.lane.b32.xlu0 %v453, 112
    %v468 = vpop.permute.xlu0 %467
    %469 = vrot.lane.b32.xlu0 %v454, 112
    %v470 = vpop.permute.xlu0 %469
    %v473 = vsel %vm459, %v457, %v468
    %v474 = vsel %vm459, %v463, %v470
    %v475 = vmul.f32 %v473, %v63
    %v476 = vmul.f32 %v474, %v64
    %s477 = scalar_lea.vmem [#allocation2], 4
    %v478 = vld [vmem:[%s477] sm:$0xf]
    %v479 = vunpack.c.l.bf16 %v478
    %s480 = scalar_lea.vmem [#allocation3], 24
    %v481 = vld [vmem:[%s480] sm:$0xf]
    %v482 = vunpack.c.l.bf16 %v481
    %v483 = vpack.c.bf16 %v476, %v475
    %v485 = vsel %vm116, %v483, 0
    %487 = vmatprep.subr.bf16.mxu0 0
    %488 = vmatpush1.bf16.msra.mxu0 %v349
    %489 = vmatprep.subr.bf16.mxu0 0
    %490 = vmatpush1.bf16.msra.mxu0 %v350
    %491 = vmatprep.subr.bf16.mxu0 0
    %492 = vmatpush1.bf16.msra.mxu0 0
    %493 = vmatprep.subr.bf16.mxu0 0
    %494 = vmatpush1.bf16.msra.mxu0 0
    %495 = vmatprep.subr.bf16.mxu0 0
    %496 = vmatpush1.bf16.msra.mxu0 0
    %497 = vmatprep.subr.bf16.mxu0 0
    %498 = vmatpush1.bf16.msra.mxu0 0
    %499 = vmatprep.subr.bf16.mxu0 0
    %500 = vmatpush1.bf16.msra.mxu0 0
    %501 = vmatprep.subr.bf16.mxu0 0
    %502 = vmatpush1.bf16.msra.mxu0 0
    %503 = vmatprep.subr.bf16.mxu0 0
    %504 = vmatpush1.bf16.msra.mxu0 0
    %505 = vmatprep.subr.bf16.mxu0 0
    %506 = vmatpush1.bf16.msra.mxu0 0
    %507 = vmatprep.subr.bf16.mxu0 0
    %508 = vmatpush1.bf16.msra.mxu0 0
    %509 = vmatprep.subr.bf16.mxu0 0
    %510 = vmatpush1.bf16.msra.mxu0 0
    %511 = vmatprep.subr.bf16.mxu0 0
    %512 = vmatpush1.bf16.msra.mxu0 0
    %513 = vmatprep.subr.bf16.mxu0 0
    %514 = vmatpush1.bf16.msra.mxu0 0
    %515 = vmatprep.subr.bf16.mxu0 0
    %516 = vmatpush1.bf16.msra.mxu0 0
    %517 = vmatprep.subr.bf16.mxu0 0
    %518 = vmatpush1.bf16.msra.mxu0 0
    %519 = vmatprep.mubr.bf16.mxu0 0
    %520 = vmatmul.mubr.bf16.gmra.mrb[0].mxu0 %v485
    %v521 = vpop.f32.mrb[0].mxu0
    %v522 = vadd.f32 %v326, %v521
    %v523 = vpop.f32.mrb[0].mxu0
    %v524 = vpop.f32.mrb[0].mxu0
    %v525 = vadd.f32 %v334, %v524
    %v526 = vpop.f32.mrb[0].mxu0
    %527 = vdwg.mxu0
    %v528 = vadd.f32 %v479, %v522
    %v529 = vadd.f32 %v482, %v525
    %v530 = vxor.u32 %v528, 2147483648
    %v531 = vxor.u32 %v529, 2147483648
    %v532 = vmul.f32 %v530, 1.442695
    %v533 = vpow.pop %v532
    %v534 = vmul.f32 %v531, 1.442695
    %v535 = vpow.pop %v534
    %v536 = vadd.f32 %v533, 1.0
    %v537 = vadd.f32 %v535, 1.0
    %v538 = vrcp.pop %v536
    %v539 = vmul.f32 1.0, %v538
    %v540 = vrcp.pop %v537
    %v541 = vmul.f32 1.0, %v540
    %544 = vrot.lane.b32.xlu0 %v522, 96
    %v545 = vpop.permute.xlu0 %544
    %546 = vrot.lane.b32.xlu0 %v525, 96
    %v547 = vpop.permute.xlu0 %546
    %v550 = vmul.f32 %v539, %v545
    %v551 = vmul.f32 %v541, %v547
    %554 = vrot.lane.b32.xlu0 %v550, 32
    %v555 = vpop.permute.xlu0 %554
    %556 = vrot.lane.b32.xlu0 %v551, 32
    %v557 = vpop.permute.xlu0 %556
    %v560 = vadd.f32 %v479, %v555
    %v561 = vadd.f32 %v482, %v557
    %v562 = vtanh.pop %v560
    %v563 = vtanh.pop %v561
    %566 = vrot.lane.b32.xlu0 %v475, 112
    %v567 = vpop.permute.xlu0 %566
    %568 = vrot.lane.b32.xlu0 %v476, 112
    %v569 = vpop.permute.xlu0 %568
    %v572 = vadd.f32 %v475, %v567
    %v573 = vadd.f32 %v476, %v569
    %576 = vrot.lane.b32.xlu0 %v562, 96
    %v577 = vpop.permute.xlu0 %576
    %578 = vrot.lane.b32.xlu0 %v563, 96
    %v579 = vpop.permute.xlu0 %578
    %v582 = vsub.f32 %v572, %v577
    %v583 = vsub.f32 %v573, %v579
    %586 = vrot.lane.b32.xlu0 %v582, 16
    %v587 = vpop.permute.xlu0 %586
    %588 = vrot.lane.b32.xlu0 %v583, 16
    %v589 = vpop.permute.xlu0 %588
    %v592 = vmul.f32 %v539, %v587
    %v593 = vmul.f32 %v541, %v589
    %596 = vrot.lane.b32.xlu0 %v592, 16
    %v597 = vpop.permute.xlu0 %596
    %598 = vrot.lane.b32.xlu0 %v593, 16
    %v599 = vpop.permute.xlu0 %598
    %v602 = vadd.f32 %v562, %v597
    %v603 = vadd.f32 %v563, %v599
    %605 = vrot.lane.b32.xlu0 %v602, 96
    %v606 = vpop.permute.xlu0 %605
    %s608 = scalar_lea.vmem [#allocation4], 8
    %609 = vst.msk [vmem:[%s608] sm:$0xff] %vm459, %v606
    %611 = vrot.lane.b32.xlu0 %v603, 96
    %v612 = vpop.permute.xlu0 %611
    %s614 = scalar_lea.vmem [#allocation5], 48
    %615 = vst.msk [vmem:[%s614] sm:$0xff] %vm459, %v612
    %616 = vrot.lane.b32.xlu0 %v602, 112
    %v617 = vpop.permute.xlu0 %616
    %618 = vrot.lane.b32.xlu0 %v603, 112
    %v619 = vpop.permute.xlu0 %618
    %v622 = vsel %vm459, %v606, %v617
    %v623 = vsel %vm459, %v612, %v619
    %v624 = vmul.f32 %v622, %v63
    %v625 = vmul.f32 %v623, %v64
    %s626 = scalar_lea.vmem [#allocation2], 8
    %v627 = vld [vmem:[%s626] sm:$0xf]
    %v628 = vunpack.c.l.bf16 %v627
    %s629 = scalar_lea.vmem [#allocation3], 20
    %v630 = vld [vmem:[%s629] sm:$0xf]
    %v631 = vunpack.c.l.bf16 %v630
    %v632 = vpack.c.bf16 %v625, %v624
    %v634 = vsel %vm116, %v632, 0
    %636 = vmatprep.subr.bf16.mxu0 0
    %637 = vmatpush1.bf16.msra.mxu0 %v349
    %638 = vmatprep.subr.bf16.mxu0 0
    %639 = vmatpush1.bf16.msra.mxu0 %v350
    %640 = vmatprep.subr.bf16.mxu0 0
    %641 = vmatpush1.bf16.msra.mxu0 0
    %642 = vmatprep.subr.bf16.mxu0 0
    %643 = vmatpush1.bf16.msra.mxu0 0
    %644 = vmatprep.subr.bf16.mxu0 0
    %645 = vmatpush1.bf16.msra.mxu0 0
    %646 = vmatprep.subr.bf16.mxu0 0
    %647 = vmatpush1.bf16.msra.mxu0 0
    %648 = vmatprep.subr.bf16.mxu0 0
    %649 = vmatpush1.bf16.msra.mxu0 0
    %650 = vmatprep.subr.bf16.mxu0 0
    %651 = vmatpush1.bf16.msra.mxu0 0
    %652 = vmatprep.subr.bf16.mxu0 0
    %653 = vmatpush1.bf16.msra.mxu0 0
    %654 = vmatprep.subr.bf16.mxu0 0
    %655 = vmatpush1.bf16.msra.mxu0 0
    %656 = vmatprep.subr.bf16.mxu0 0
    %657 = vmatpush1.bf16.msra.mxu0 0
    %658 = vmatprep.subr.bf16.mxu0 0
    %659 = vmatpush1.bf16.msra.mxu0 0
    %660 = vmatprep.subr.bf16.mxu0 0
    %661 = vmatpush1.bf16.msra.mxu0 0
    %662 = vmatprep.subr.bf16.mxu0 0
    %663 = vmatpush1.bf16.msra.mxu0 0
    %664 = vmatprep.subr.bf16.mxu0 0
    %665 = vmatpush1.bf16.msra.mxu0 0
    %666 = vmatprep.subr.bf16.mxu0 0
    %667 = vmatpush1.bf16.msra.mxu0 0
    %668 = vmatprep.mubr.bf16.mxu0 0
    %669 = vmatmul.mubr.bf16.gmra.mrb[0].mxu0 %v634
    %v670 = vpop.f32.mrb[0].mxu0
    %v671 = vadd.f32 %v326, %v670
    %v672 = vpop.f32.mrb[0].mxu0
    %v673 = vpop.f32.mrb[0].mxu0
    %v674 = vadd.f32 %v334, %v673
    %v675 = vpop.f32.mrb[0].mxu0
    %676 = vdwg.mxu0
    %v677 = vadd.f32 %v628, %v671
    %v678 = vadd.f32 %v631, %v674
    %v679 = vxor.u32 %v677, 2147483648
    %v680 = vxor.u32 %v678, 2147483648
    %v681 = vmul.f32 %v679, 1.442695
    %v682 = vpow.pop %v681
    %v683 = vmul.f32 %v680, 1.442695
    %v684 = vpow.pop %v683
    %v685 = vadd.f32 %v682, 1.0
    %v686 = vadd.f32 %v684, 1.0
    %v687 = vrcp.pop %v685
    %v688 = vmul.f32 1.0, %v687
    %v689 = vrcp.pop %v686
    %v690 = vmul.f32 1.0, %v689
    %693 = vrot.lane.b32.xlu0 %v671, 96
    %v694 = vpop.permute.xlu0 %693
    %695 = vrot.lane.b32.xlu0 %v674, 96
    %v696 = vpop.permute.xlu0 %695
    %v699 = vmul.f32 %v688, %v694
    %v700 = vmul.f32 %v690, %v696
    %703 = vrot.lane.b32.xlu0 %v699, 32
    %v704 = vpop.permute.xlu0 %703
    %705 = vrot.lane.b32.xlu0 %v700, 32
    %v706 = vpop.permute.xlu0 %705
    %v709 = vadd.f32 %v628, %v704
    %v710 = vadd.f32 %v631, %v706
    %v711 = vtanh.pop %v709
    %v712 = vtanh.pop %v710
    %715 = vrot.lane.b32.xlu0 %v624, 112
    %v716 = vpop.permute.xlu0 %715
    %717 = vrot.lane.b32.xlu0 %v625, 112
    %v718 = vpop.permute.xlu0 %717
    %v721 = vadd.f32 %v624, %v716
    %v722 = vadd.f32 %v625, %v718
    %725 = vrot.lane.b32.xlu0 %v711, 96
    %v726 = vpop.permute.xlu0 %725
    %727 = vrot.lane.b32.xlu0 %v712, 96
    %v728 = vpop.permute.xlu0 %727
    %v731 = vsub.f32 %v721, %v726
    %v732 = vsub.f32 %v722, %v728
    %735 = vrot.lane.b32.xlu0 %v731, 16
    %v736 = vpop.permute.xlu0 %735
    %737 = vrot.lane.b32.xlu0 %v732, 16
    %v738 = vpop.permute.xlu0 %737
    %v741 = vmul.f32 %v688, %v736
    %v742 = vmul.f32 %v690, %v738
    %745 = vrot.lane.b32.xlu0 %v741, 16
    %v746 = vpop.permute.xlu0 %745
    %747 = vrot.lane.b32.xlu0 %v742, 16
    %v748 = vpop.permute.xlu0 %747
    %v751 = vadd.f32 %v711, %v746
    %v752 = vadd.f32 %v712, %v748
    %754 = vrot.lane.b32.xlu0 %v751, 96
    %v755 = vpop.permute.xlu0 %754
    %s757 = scalar_lea.vmem [#allocation4], 16
    %758 = vst.msk [vmem:[%s757] sm:$0xff] %vm459, %v755
    %760 = vrot.lane.b32.xlu0 %v752, 96
    %v761 = vpop.permute.xlu0 %760
    %s763 = scalar_lea.vmem [#allocation5], 40
    %764 = vst.msk [vmem:[%s763] sm:$0xff] %vm459, %v761
    %765 = vrot.lane.b32.xlu0 %v751, 112
    %v766 = vpop.permute.xlu0 %765
    %767 = vrot.lane.b32.xlu0 %v752, 112
    %v768 = vpop.permute.xlu0 %767
    %v771 = vsel %vm459, %v755, %v766
    %v772 = vsel %vm459, %v761, %v768
    %v773 = vmul.f32 %v771, %v63
    %v774 = vmul.f32 %v772, %v64
    %s775 = scalar_lea.vmem [#allocation2], 12
    %v776 = vld [vmem:[%s775] sm:$0xf]
    %v777 = vunpack.c.l.bf16 %v776
    %s778 = scalar_lea.vmem [#allocation3], 16
    %v779 = vld [vmem:[%s778] sm:$0xf]
    %v780 = vunpack.c.l.bf16 %v779
    %v781 = vpack.c.bf16 %v774, %v773
    %v783 = vsel %vm116, %v781, 0
    %785 = vmatprep.subr.bf16.mxu0 0
    %786 = vmatpush1.bf16.msra.mxu0 %v349
    %787 = vmatprep.subr.bf16.mxu0 0
    %788 = vmatpush1.bf16.msra.mxu0 %v350
    %789 = vmatprep.subr.bf16.mxu0 0
    %790 = vmatpush1.bf16.msra.mxu0 0
    %791 = vmatprep.subr.bf16.mxu0 0
    %792 = vmatpush1.bf16.msra.mxu0 0
    %793 = vmatprep.subr.bf16.mxu0 0
    %794 = vmatpush1.bf16.msra.mxu0 0
    %795 = vmatprep.subr.bf16.mxu0 0
    %796 = vmatpush1.bf16.msra.mxu0 0
    %797 = vmatprep.subr.bf16.mxu0 0
    %798 = vmatpush1.bf16.msra.mxu0 0
    %799 = vmatprep.subr.bf16.mxu0 0
    %800 = vmatpush1.bf16.msra.mxu0 0
    %801 = vmatprep.subr.bf16.mxu0 0
    %802 = vmatpush1.bf16.msra.mxu0 0
    %803 = vmatprep.subr.bf16.mxu0 0
    %804 = vmatpush1.bf16.msra.mxu0 0
    %805 = vmatprep.subr.bf16.mxu0 0
    %806 = vmatpush1.bf16.msra.mxu0 0
    %807 = vmatprep.subr.bf16.mxu0 0
    %808 = vmatpush1.bf16.msra.mxu0 0
    %809 = vmatprep.subr.bf16.mxu0 0
    %810 = vmatpush1.bf16.msra.mxu0 0
    %811 = vmatprep.subr.bf16.mxu0 0
    %812 = vmatpush1.bf16.msra.mxu0 0
    %813 = vmatprep.subr.bf16.mxu0 0
    %814 = vmatpush1.bf16.msra.mxu0 0
    %815 = vmatprep.subr.bf16.mxu0 0
    %816 = vmatpush1.bf16.msra.mxu0 0
    %817 = vmatprep.mubr.bf16.mxu0 0
    %818 = vmatmul.mubr.bf16.gmra.mrb[0].mxu0 %v783
    %v819 = vpop.f32.mrb[0].mxu0
    %v820 = vadd.f32 %v326, %v819
    %v821 = vpop.f32.mrb[0].mxu0
    %v822 = vpop.f32.mrb[0].mxu0
    %v823 = vadd.f32 %v334, %v822
    %v824 = vpop.f32.mrb[0].mxu0
    %825 = vdwg.mxu0
    %v826 = vadd.f32 %v777, %v820
    %v827 = vadd.f32 %v780, %v823
    %v828 = vxor.u32 %v826, 2147483648
    %v829 = vxor.u32 %v827, 2147483648
    %v830 = vmul.f32 %v828, 1.442695
    %v831 = vpow.pop %v830
    %v832 = vmul.f32 %v829, 1.442695
    %v833 = vpow.pop %v832
    %v834 = vadd.f32 %v831, 1.0
    %v835 = vadd.f32 %v833, 1.0
    %v836 = vrcp.pop %v834
    %v837 = vmul.f32 1.0, %v836
    %v838 = vrcp.pop %v835
    %v839 = vmul.f32 1.0, %v838
    %842 = vrot.lane.b32.xlu0 %v820, 96
    %v843 = vpop.permute.xlu0 %842
    %844 = vrot.lane.b32.xlu0 %v823, 96
    %v845 = vpop.permute.xlu0 %844
    %v848 = vmul.f32 %v837, %v843
    %v849 = vmul.f32 %v839, %v845
    %852 = vrot.lane.b32.xlu0 %v848, 32
    %v853 = vpop.permute.xlu0 %852
    %854 = vrot.lane.b32.xlu0 %v849, 32
    %v855 = vpop.permute.xlu0 %854
    %v858 = vadd.f32 %v777, %v853
    %v859 = vadd.f32 %v780, %v855
    %v860 = vtanh.pop %v858
    %v861 = vtanh.pop %v859
    %864 = vrot.lane.b32.xlu0 %v773, 112
    %v865 = vpop.permute.xlu0 %864
    %866 = vrot.lane.b32.xlu0 %v774, 112
    %v867 = vpop.permute.xlu0 %866
    %v870 = vadd.f32 %v773, %v865
    %v871 = vadd.f32 %v774, %v867
    %874 = vrot.lane.b32.xlu0 %v860, 96
    %v875 = vpop.permute.xlu0 %874
    %876 = vrot.lane.b32.xlu0 %v861, 96
    %v877 = vpop.permute.xlu0 %876
    %v880 = vsub.f32 %v870, %v875
    %v881 = vsub.f32 %v871, %v877
    %884 = vrot.lane.b32.xlu0 %v880, 16
    %v885 = vpop.permute.xlu0 %884
    %886 = vrot.lane.b32.xlu0 %v881, 16
    %v887 = vpop.permute.xlu0 %886
    %v890 = vmul.f32 %v837, %v885
    %v891 = vmul.f32 %v839, %v887
    %894 = vrot.lane.b32.xlu0 %v890, 16
    %v895 = vpop.permute.xlu0 %894
    %896 = vrot.lane.b32.xlu0 %v891, 16
    %v897 = vpop.permute.xlu0 %896
    %v900 = vadd.f32 %v860, %v895
    %v901 = vadd.f32 %v861, %v897
    %903 = vrot.lane.b32.xlu0 %v900, 96
    %v904 = vpop.permute.xlu0 %903
    %s906 = scalar_lea.vmem [#allocation4], 24
    %907 = vst.msk [vmem:[%s906] sm:$0xff] %vm459, %v904
    %909 = vrot.lane.b32.xlu0 %v901, 96
    %v910 = vpop.permute.xlu0 %909
    %s912 = scalar_lea.vmem [#allocation5], 32
    %913 = vst.msk [vmem:[%s912] sm:$0xff] %vm459, %v910
    %914 = vrot.lane.b32.xlu0 %v900, 112
    %v915 = vpop.permute.xlu0 %914
    %916 = vrot.lane.b32.xlu0 %v901, 112
    %v917 = vpop.permute.xlu0 %916
    %v920 = vsel %vm459, %v904, %v915
    %v921 = vsel %vm459, %v910, %v917
    %v922 = vmul.f32 %v920, %v63
    %v923 = vmul.f32 %v921, %v64
    %s924 = scalar_lea.vmem [#allocation2], 16
    %v925 = vld [vmem:[%s924] sm:$0xf]
    %v926 = vunpack.c.l.bf16 %v925
    %s927 = scalar_lea.vmem [#allocation3], 12
    %v928 = vld [vmem:[%s927] sm:$0xf]
    %v929 = vunpack.c.l.bf16 %v928
    %v930 = vpack.c.bf16 %v923, %v922
    %v932 = vsel %vm116, %v930, 0
    %934 = vmatprep.subr.bf16.mxu0 0
    %935 = vmatpush1.bf16.msra.mxu0 %v349
    %936 = vmatprep.subr.bf16.mxu0 0
    %937 = vmatpush1.bf16.msra.mxu0 %v350
    %938 = vmatprep.subr.bf16.mxu0 0
    %939 = vmatpush1.bf16.msra.mxu0 0
    %940 = vmatprep.subr.bf16.mxu0 0
    %941 = vmatpush1.bf16.msra.mxu0 0
    %942 = vmatprep.subr.bf16.mxu0 0
    %943 = vmatpush1.bf16.msra.mxu0 0
    %944 = vmatprep.subr.bf16.mxu0 0
    %945 = vmatpush1.bf16.msra.mxu0 0
    %946 = vmatprep.subr.bf16.mxu0 0
    %947 = vmatpush1.bf16.msra.mxu0 0
    %948 = vmatprep.subr.bf16.mxu0 0
    %949 = vmatpush1.bf16.msra.mxu0 0
    %950 = vmatprep.subr.bf16.mxu0 0
    %951 = vmatpush1.bf16.msra.mxu0 0
    %952 = vmatprep.subr.bf16.mxu0 0
    %953 = vmatpush1.bf16.msra.mxu0 0
    %954 = vmatprep.subr.bf16.mxu0 0
    %955 = vmatpush1.bf16.msra.mxu0 0
    %956 = vmatprep.subr.bf16.mxu0 0
    %957 = vmatpush1.bf16.msra.mxu0 0
    %958 = vmatprep.subr.bf16.mxu0 0
    %959 = vmatpush1.bf16.msra.mxu0 0
    %960 = vmatprep.subr.bf16.mxu0 0
    %961 = vmatpush1.bf16.msra.mxu0 0
    %962 = vmatprep.subr.bf16.mxu0 0
    %963 = vmatpush1.bf16.msra.mxu0 0
    %964 = vmatprep.subr.bf16.mxu0 0
    %965 = vmatpush1.bf16.msra.mxu0 0
    %966 = vmatprep.mubr.bf16.mxu0 0
    %967 = vmatmul.mubr.bf16.gmra.mrb[0].mxu0 %v932
    %v968 = vpop.f32.mrb[0].mxu0
    %v969 = vadd.f32 %v326, %v968
    %v970 = vpop.f32.mrb[0].mxu0
    %v971 = vpop.f32.mrb[0].mxu0
    %v972 = vadd.f32 %v334, %v971
    %v973 = vpop.f32.mrb[0].mxu0
    %974 = vdwg.mxu0
    %v975 = vadd.f32 %v926, %v969
    %v976 = vadd.f32 %v929, %v972
    %v977 = vxor.u32 %v975, 2147483648
    %v978 = vxor.u32 %v976, 2147483648
    %v979 = vmul.f32 %v977, 1.442695
    %v980 = vpow.pop %v979
    %v981 = vmul.f32 %v978, 1.442695
    %v982 = vpow.pop %v981
    %v983 = vadd.f32 %v980, 1.0
    %v984 = vadd.f32 %v982, 1.0
    %v985 = vrcp.pop %v983
    %v986 = vmul.f32 1.0, %v985
    %v987 = vrcp.pop %v984
    %v988 = vmul.f32 1.0, %v987
    %991 = vrot.lane.b32.xlu0 %v969, 96
    %v992 = vpop.permute.xlu0 %991
    %993 = vrot.lane.b32.xlu0 %v972, 96
    %v994 = vpop.permute.xlu0 %993
    %v997 = vmul.f32 %v986, %v992
    %v998 = vmul.f32 %v988, %v994
    %1001 = vrot.lane.b32.xlu0 %v997, 32
    %v1002 = vpop.permute.xlu0 %1001
    %1003 = vrot.lane.b32.xlu0 %v998, 32
    %v1004 = vpop.permute.xlu0 %1003
    %v1007 = vadd.f32 %v926, %v1002
    %v1008 = vadd.f32 %v929, %v1004
    %v1009 = vtanh.pop %v1007
    %v1010 = vtanh.pop %v1008
    %1013 = vrot.lane.b32.xlu0 %v922, 112
    %v1014 = vpop.permute.xlu0 %1013
    %1015 = vrot.lane.b32.xlu0 %v923, 112
    %v1016 = vpop.permute.xlu0 %1015
    %v1019 = vadd.f32 %v922, %v1014
    %v1020 = vadd.f32 %v923, %v1016
    %1023 = vrot.lane.b32.xlu0 %v1009, 96
    %v1024 = vpop.permute.xlu0 %1023
    %1025 = vrot.lane.b32.xlu0 %v1010, 96
    %v1026 = vpop.permute.xlu0 %1025
    %v1029 = vsub.f32 %v1019, %v1024
    %v1030 = vsub.f32 %v1020, %v1026
    %1033 = vrot.lane.b32.xlu0 %v1029, 16
    %v1034 = vpop.permute.xlu0 %1033
    %1035 = vrot.lane.b32.xlu0 %v1030, 16
    %v1036 = vpop.permute.xlu0 %1035
    %v1039 = vmul.f32 %v986, %v1034
    %v1040 = vmul.f32 %v988, %v1036
    %1043 = vrot.lane.b32.xlu0 %v1039, 16
    %v1044 = vpop.permute.xlu0 %1043
    %1045 = vrot.lane.b32.xlu0 %v1040, 16
    %v1046 = vpop.permute.xlu0 %1045
    %v1049 = vadd.f32 %v1009, %v1044
    %v1050 = vadd.f32 %v1010, %v1046
    %1052 = vrot.lane.b32.xlu0 %v1049, 96
    %v1053 = vpop.permute.xlu0 %1052
    %s1055 = scalar_lea.vmem [#allocation4], 32
    %1056 = vst.msk [vmem:[%s1055] sm:$0xff] %vm459, %v1053
    %1058 = vrot.lane.b32.xlu0 %v1050, 96
    %v1059 = vpop.permute.xlu0 %1058
    %s1061 = scalar_lea.vmem [#allocation5], 24
    %1062 = vst.msk [vmem:[%s1061] sm:$0xff] %vm459, %v1059
    %1063 = vrot.lane.b32.xlu0 %v1049, 112
    %v1064 = vpop.permute.xlu0 %1063
    %1065 = vrot.lane.b32.xlu0 %v1050, 112
    %v1066 = vpop.permute.xlu0 %1065
    %v1069 = vsel %vm459, %v1053, %v1064
    %v1070 = vsel %vm459, %v1059, %v1066
    %v1071 = vmul.f32 %v1069, %v63
    %v1072 = vmul.f32 %v1070, %v64
    %s1073 = scalar_lea.vmem [#allocation2], 20
    %v1074 = vld [vmem:[%s1073] sm:$0xf]
    %v1075 = vunpack.c.l.bf16 %v1074
    %s1076 = scalar_lea.vmem [#allocation3], 8
    %v1077 = vld [vmem:[%s1076] sm:$0xf]
    %v1078 = vunpack.c.l.bf16 %v1077
    %v1079 = vpack.c.bf16 %v1072, %v1071
    %v1081 = vsel %vm116, %v1079, 0
    %1083 = vmatprep.subr.bf16.mxu0 0
    %1084 = vmatpush1.bf16.msra.mxu0 %v349
    %1085 = vmatprep.subr.bf16.mxu0 0
    %1086 = vmatpush1.bf16.msra.mxu0 %v350
    %1087 = vmatprep.subr.bf16.mxu0 0
    %1088 = vmatpush1.bf16.msra.mxu0 0
    %1089 = vmatprep.subr.bf16.mxu0 0
    %1090 = vmatpush1.bf16.msra.mxu0 0
    %1091 = vmatprep.subr.bf16.mxu0 0
    %1092 = vmatpush1.bf16.msra.mxu0 0
    %1093 = vmatprep.subr.bf16.mxu0 0
    %1094 = vmatpush1.bf16.msra.mxu0 0
    %1095 = vmatprep.subr.bf16.mxu0 0
    %1096 = vmatpush1.bf16.msra.mxu0 0
    %1097 = vmatprep.subr.bf16.mxu0 0
    %1098 = vmatpush1.bf16.msra.mxu0 0
    %1099 = vmatprep.subr.bf16.mxu0 0
    %1100 = vmatpush1.bf16.msra.mxu0 0
    %1101 = vmatprep.subr.bf16.mxu0 0
    %1102 = vmatpush1.bf16.msra.mxu0 0
    %1103 = vmatprep.subr.bf16.mxu0 0
    %1104 = vmatpush1.bf16.msra.mxu0 0
    %1105 = vmatprep.subr.bf16.mxu0 0
    %1106 = vmatpush1.bf16.msra.mxu0 0
    %1107 = vmatprep.subr.bf16.mxu0 0
    %1108 = vmatpush1.bf16.msra.mxu0 0
    %1109 = vmatprep.subr.bf16.mxu0 0
    %1110 = vmatpush1.bf16.msra.mxu0 0
    %1111 = vmatprep.subr.bf16.mxu0 0
    %1112 = vmatpush1.bf16.msra.mxu0 0
    %1113 = vmatprep.subr.bf16.mxu0 0
    %1114 = vmatpush1.bf16.msra.mxu0 0
    %1115 = vmatprep.mubr.bf16.mxu0 0
    %1116 = vmatmul.mubr.bf16.gmra.mrb[0].mxu0 %v1081
    %v1117 = vpop.f32.mrb[0].mxu0
    %v1118 = vadd.f32 %v326, %v1117
    %v1119 = vpop.f32.mrb[0].mxu0
    %v1120 = vpop.f32.mrb[0].mxu0
    %v1121 = vadd.f32 %v334, %v1120
    %v1122 = vpop.f32.mrb[0].mxu0
    %1123 = vdwg.mxu0
    %v1124 = vadd.f32 %v1075, %v1118
    %v1125 = vadd.f32 %v1078, %v1121
    %v1126 = vxor.u32 %v1124, 2147483648
    %v1127 = vxor.u32 %v1125, 2147483648
    %v1128 = vmul.f32 %v1126, 1.442695
    %v1129 = vpow.pop %v1128
    %v1130 = vmul.f32 %v1127, 1.442695
    %v1131 = vpow.pop %v1130
    %v1132 = vadd.f32 %v1129, 1.0
    %v1133 = vadd.f32 %v1131, 1.0
    %v1134 = vrcp.pop %v1132
    %v1135 = vmul.f32 1.0, %v1134
    %v1136 = vrcp.pop %v1133
    %v1137 = vmul.f32 1.0, %v1136
    %1140 = vrot.lane.b32.xlu0 %v1118, 96
    %v1141 = vpop.permute.xlu0 %1140
    %1142 = vrot.lane.b32.xlu0 %v1121, 96
    %v1143 = vpop.permute.xlu0 %1142
    %v1146 = vmul.f32 %v1135, %v1141
    %v1147 = vmul.f32 %v1137, %v1143
    %1150 = vrot.lane.b32.xlu0 %v1146, 32
    %v1151 = vpop.permute.xlu0 %1150
    %1152 = vrot.lane.b32.xlu0 %v1147, 32
    %v1153 = vpop.permute.xlu0 %1152
    %v1156 = vadd.f32 %v1075, %v1151
    %v1157 = vadd.f32 %v1078, %v1153
    %v1158 = vtanh.pop %v1156
    %v1159 = vtanh.pop %v1157
    %1162 = vrot.lane.b32.xlu0 %v1071, 112
    %v1163 = vpop.permute.xlu0 %1162
    %1164 = vrot.lane.b32.xlu0 %v1072, 112
    %v1165 = vpop.permute.xlu0 %1164
    %v1168 = vadd.f32 %v1071, %v1163
    %v1169 = vadd.f32 %v1072, %v1165
    %1172 = vrot.lane.b32.xlu0 %v1158, 96
    %v1173 = vpop.permute.xlu0 %1172
    %1174 = vrot.lane.b32.xlu0 %v1159, 96
    %v1175 = vpop.permute.xlu0 %1174
    %v1178 = vsub.f32 %v1168, %v1173
    %v1179 = vsub.f32 %v1169, %v1175
    %1182 = vrot.lane.b32.xlu0 %v1178, 16
    %v1183 = vpop.permute.xlu0 %1182
    %1184 = vrot.lane.b32.xlu0 %v1179, 16
    %v1185 = vpop.permute.xlu0 %1184
    %v1188 = vmul.f32 %v1135, %v1183
    %v1189 = vmul.f32 %v1137, %v1185
    %1192 = vrot.lane.b32.xlu0 %v1188, 16
    %v1193 = vpop.permute.xlu0 %1192
    %1194 = vrot.lane.b32.xlu0 %v1189, 16
    %v1195 = vpop.permute.xlu0 %1194
    %v1198 = vadd.f32 %v1158, %v1193
    %v1199 = vadd.f32 %v1159, %v1195
    %1201 = vrot.lane.b32.xlu0 %v1198, 96
    %v1202 = vpop.permute.xlu0 %1201
    %s1204 = scalar_lea.vmem [#allocation4], 40
    %1205 = vst.msk [vmem:[%s1204] sm:$0xff] %vm459, %v1202
    %1207 = vrot.lane.b32.xlu0 %v1199, 96
    %v1208 = vpop.permute.xlu0 %1207
    %s1210 = scalar_lea.vmem [#allocation5], 16
    %1211 = vst.msk [vmem:[%s1210] sm:$0xff] %vm459, %v1208
    %1212 = vrot.lane.b32.xlu0 %v1198, 112
    %v1213 = vpop.permute.xlu0 %1212
    %1214 = vrot.lane.b32.xlu0 %v1199, 112
    %v1215 = vpop.permute.xlu0 %1214
    %v1218 = vsel %vm459, %v1202, %v1213
    %v1219 = vsel %vm459, %v1208, %v1215
    %v1220 = vmul.f32 %v1218, %v63
    %v1221 = vmul.f32 %v1219, %v64
    %s1222 = scalar_lea.vmem [#allocation2], 24
    %v1223 = vld [vmem:[%s1222] sm:$0xf]
    %v1224 = vunpack.c.l.bf16 %v1223
    %s1225 = scalar_lea.vmem [#allocation3], 4
    %v1226 = vld [vmem:[%s1225] sm:$0xf]
    %v1227 = vunpack.c.l.bf16 %v1226
    %v1228 = vpack.c.bf16 %v1221, %v1220
    %v1230 = vsel %vm116, %v1228, 0
    %1232 = vmatprep.subr.bf16.mxu0 0
    %1233 = vmatpush1.bf16.msra.mxu0 %v349
    %1234 = vmatprep.subr.bf16.mxu0 0
    %1235 = vmatpush1.bf16.msra.mxu0 %v350
    %1236 = vmatprep.subr.bf16.mxu0 0
    %1237 = vmatpush1.bf16.msra.mxu0 0
    %1238 = vmatprep.subr.bf16.mxu0 0
    %1239 = vmatpush1.bf16.msra.mxu0 0
    %1240 = vmatprep.subr.bf16.mxu0 0
    %1241 = vmatpush1.bf16.msra.mxu0 0
    %1242 = vmatprep.subr.bf16.mxu0 0
    %1243 = vmatpush1.bf16.msra.mxu0 0
    %1244 = vmatprep.subr.bf16.mxu0 0
    %1245 = vmatpush1.bf16.msra.mxu0 0
    %1246 = vmatprep.subr.bf16.mxu0 0
    %1247 = vmatpush1.bf16.msra.mxu0 0
    %1248 = vmatprep.subr.bf16.mxu0 0
    %1249 = vmatpush1.bf16.msra.mxu0 0
    %1250 = vmatprep.subr.bf16.mxu0 0
    %1251 = vmatpush1.bf16.msra.mxu0 0
    %1252 = vmatprep.subr.bf16.mxu0 0
    %1253 = vmatpush1.bf16.msra.mxu0 0
    %1254 = vmatprep.subr.bf16.mxu0 0
    %1255 = vmatpush1.bf16.msra.mxu0 0
    %1256 = vmatprep.subr.bf16.mxu0 0
    %1257 = vmatpush1.bf16.msra.mxu0 0
    %1258 = vmatprep.subr.bf16.mxu0 0
    %1259 = vmatpush1.bf16.msra.mxu0 0
    %1260 = vmatprep.subr.bf16.mxu0 0
    %1261 = vmatpush1.bf16.msra.mxu0 0
    %1262 = vmatprep.subr.bf16.mxu0 0
    %1263 = vmatpush1.bf16.msra.mxu0 0
    %1264 = vmatprep.mubr.bf16.mxu0 0
    %1265 = vmatmul.mubr.bf16.gmra.mrb[0].mxu0 %v1230
    %v1266 = vpop.f32.mrb[0].mxu0
    %v1267 = vadd.f32 %v326, %v1266
    %v1268 = vpop.f32.mrb[0].mxu0
    %v1269 = vpop.f32.mrb[0].mxu0
    %v1270 = vadd.f32 %v334, %v1269
    %v1271 = vpop.f32.mrb[0].mxu0
    %1272 = vdwg.mxu0
    %v1273 = vadd.f32 %v1224, %v1267
    %v1274 = vadd.f32 %v1227, %v1270
    %v1275 = vxor.u32 %v1273, 2147483648
    %v1276 = vxor.u32 %v1274, 2147483648
    %v1277 = vmul.f32 %v1275, 1.442695
    %v1278 = vpow.pop %v1277
    %v1279 = vmul.f32 %v1276, 1.442695
    %v1280 = vpow.pop %v1279
    %v1281 = vadd.f32 %v1278, 1.0
    %v1282 = vadd.f32 %v1280, 1.0
    %v1283 = vrcp.pop %v1281
    %v1284 = vmul.f32 1.0, %v1283
    %v1285 = vrcp.pop %v1282
    %v1286 = vmul.f32 1.0, %v1285
    %1289 = vrot.lane.b32.xlu0 %v1267, 96
    %v1290 = vpop.permute.xlu0 %1289
    %1291 = vrot.lane.b32.xlu0 %v1270, 96
    %v1292 = vpop.permute.xlu0 %1291
    %v1295 = vmul.f32 %v1284, %v1290
    %v1296 = vmul.f32 %v1286, %v1292
    %1299 = vrot.lane.b32.xlu0 %v1295, 32
    %v1300 = vpop.permute.xlu0 %1299
    %1301 = vrot.lane.b32.xlu0 %v1296, 32
    %v1302 = vpop.permute.xlu0 %1301
    %v1305 = vadd.f32 %v1224, %v1300
    %v1306 = vadd.f32 %v1227, %v1302
    %v1307 = vtanh.pop %v1305
    %v1308 = vtanh.pop %v1306
    %1311 = vrot.lane.b32.xlu0 %v1220, 112
    %v1312 = vpop.permute.xlu0 %1311
    %1313 = vrot.lane.b32.xlu0 %v1221, 112
    %v1314 = vpop.permute.xlu0 %1313
    %v1317 = vadd.f32 %v1220, %v1312
    %v1318 = vadd.f32 %v1221, %v1314
    %1321 = vrot.lane.b32.xlu0 %v1307, 96
    %v1322 = vpop.permute.xlu0 %1321
    %1323 = vrot.lane.b32.xlu0 %v1308, 96
    %v1324 = vpop.permute.xlu0 %1323
    %v1327 = vsub.f32 %v1317, %v1322
    %v1328 = vsub.f32 %v1318, %v1324
    %1331 = vrot.lane.b32.xlu0 %v1327, 16
    %v1332 = vpop.permute.xlu0 %1331
    %1333 = vrot.lane.b32.xlu0 %v1328, 16
    %v1334 = vpop.permute.xlu0 %1333
    %v1337 = vmul.f32 %v1284, %v1332
    %v1338 = vmul.f32 %v1286, %v1334
    %1341 = vrot.lane.b32.xlu0 %v1337, 16
    %v1342 = vpop.permute.xlu0 %1341
    %1343 = vrot.lane.b32.xlu0 %v1338, 16
    %v1344 = vpop.permute.xlu0 %1343
    %v1347 = vadd.f32 %v1307, %v1342
    %v1348 = vadd.f32 %v1308, %v1344
    %1350 = vrot.lane.b32.xlu0 %v1347, 96
    %v1351 = vpop.permute.xlu0 %1350
    %s1353 = scalar_lea.vmem [#allocation4], 48
    %1354 = vst.msk [vmem:[%s1353] sm:$0xff] %vm459, %v1351
    %1356 = vrot.lane.b32.xlu0 %v1348, 96
    %v1357 = vpop.permute.xlu0 %1356
    %s1359 = scalar_lea.vmem [#allocation5], 8
    %1360 = vst.msk [vmem:[%s1359] sm:$0xff] %vm459, %v1357
    %1361 = vrot.lane.b32.xlu0 %v1347, 112
    %v1362 = vpop.permute.xlu0 %1361
    %1363 = vrot.lane.b32.xlu0 %v1348, 112
    %v1364 = vpop.permute.xlu0 %1363
    %v1367 = vsel %vm459, %v1351, %v1362
    %v1368 = vsel %vm459, %v1357, %v1364
    %v1369 = vmul.f32 %v1367, %v63
    %v1370 = vmul.f32 %v1368, %v64
    %s1371 = scalar_lea.vmem [#allocation2], 28
    %v1372 = vld [vmem:[%s1371] sm:$0xf]
    %v1373 = vunpack.c.l.bf16 %v1372
    %v1374 = vld [vmem:[#allocation3] sm:$0xf]
    %v1375 = vunpack.c.l.bf16 %v1374
    %v1376 = vpack.c.bf16 %v1370, %v1369
    %v1378 = vsel %vm116, %v1376, 0
    %1380 = vmatprep.subr.bf16.mxu0 0
    %1381 = vmatpush1.bf16.msra.mxu0 %v349
    %1382 = vmatprep.subr.bf16.mxu0 0
    %1383 = vmatpush1.bf16.msra.mxu0 %v350
    %1384 = vmatprep.subr.bf16.mxu0 0
    %1385 = vmatpush1.bf16.msra.mxu0 0
    %1386 = vmatprep.subr.bf16.mxu0 0
    %1387 = vmatpush1.bf16.msra.mxu0 0
    %1388 = vmatprep.subr.bf16.mxu0 0
    %1389 = vmatpush1.bf16.msra.mxu0 0
    %1390 = vmatprep.subr.bf16.mxu0 0
    %1391 = vmatpush1.bf16.msra.mxu0 0
    %1392 = vmatprep.subr.bf16.mxu0 0
    %1393 = vmatpush1.bf16.msra.mxu0 0
    %1394 = vmatprep.subr.bf16.mxu0 0
    %1395 = vmatpush1.bf16.msra.mxu0 0
    %1396 = vmatprep.subr.bf16.mxu0 0
    %1397 = vmatpush1.bf16.msra.mxu0 0
    %1398 = vmatprep.subr.bf16.mxu0 0
    %1399 = vmatpush1.bf16.msra.mxu0 0
    %1400 = vmatprep.subr.bf16.mxu0 0
    %1401 = vmatpush1.bf16.msra.mxu0 0
    %1402 = vmatprep.subr.bf16.mxu0 0
    %1403 = vmatpush1.bf16.msra.mxu0 0
    %1404 = vmatprep.subr.bf16.mxu0 0
    %1405 = vmatpush1.bf16.msra.mxu0 0
    %1406 = vmatprep.subr.bf16.mxu0 0
    %1407 = vmatpush1.bf16.msra.mxu0 0
    %1408 = vmatprep.subr.bf16.mxu0 0
    %1409 = vmatpush1.bf16.msra.mxu0 0
    %1410 = vmatprep.subr.bf16.mxu0 0
    %1411 = vmatpush1.bf16.msra.mxu0 0
    %1412 = vmatprep.mubr.bf16.mxu0 0
    %1413 = vmatmul.mubr.bf16.gmra.mrb[0].mxu0 %v1378
    %v1414 = vpop.f32.mrb[0].mxu0
    %v1415 = vadd.f32 %v326, %v1414
    %v1416 = vpop.f32.mrb[0].mxu0
    %v1417 = vpop.f32.mrb[0].mxu0
    %v1418 = vadd.f32 %v334, %v1417
    %v1419 = vpop.f32.mrb[0].mxu0
    %1420 = vdwg.mxu0
    %v1421 = vadd.f32 %v1373, %v1415
    %v1422 = vadd.f32 %v1375, %v1418
    %v1423 = vxor.u32 %v1421, 2147483648
    %v1424 = vxor.u32 %v1422, 2147483648
    %v1425 = vmul.f32 %v1423, 1.442695
    %v1426 = vpow.pop %v1425
    %v1427 = vmul.f32 %v1424, 1.442695
    %v1428 = vpow.pop %v1427
    %v1429 = vadd.f32 %v1426, 1.0
    %v1430 = vadd.f32 %v1428, 1.0
    %v1431 = vrcp.pop %v1429
    %v1432 = vmul.f32 1.0, %v1431
    %v1433 = vrcp.pop %v1430
    %v1434 = vmul.f32 1.0, %v1433
    %1437 = vrot.lane.b32.xlu0 %v1415, 96
    %v1438 = vpop.permute.xlu0 %1437
    %1439 = vrot.lane.b32.xlu0 %v1418, 96
    %v1440 = vpop.permute.xlu0 %1439
    %v1443 = vmul.f32 %v1432, %v1438
    %v1444 = vmul.f32 %v1434, %v1440
    %1447 = vrot.lane.b32.xlu0 %v1443, 32
    %v1448 = vpop.permute.xlu0 %1447
    %1449 = vrot.lane.b32.xlu0 %v1444, 32
    %v1450 = vpop.permute.xlu0 %1449
    %v1453 = vadd.f32 %v1373, %v1448
    %v1454 = vadd.f32 %v1375, %v1450
    %v1455 = vtanh.pop %v1453
    %v1456 = vtanh.pop %v1454
    %1459 = vrot.lane.b32.xlu0 %v1369, 112
    %v1460 = vpop.permute.xlu0 %1459
    %1461 = vrot.lane.b32.xlu0 %v1370, 112
    %v1462 = vpop.permute.xlu0 %1461
    %v1465 = vadd.f32 %v1369, %v1460
    %v1466 = vadd.f32 %v1370, %v1462
    %1469 = vrot.lane.b32.xlu0 %v1455, 96
    %v1470 = vpop.permute.xlu0 %1469
    %1471 = vrot.lane.b32.xlu0 %v1456, 96
    %v1472 = vpop.permute.xlu0 %1471
    %v1475 = vsub.f32 %v1465, %v1470
    %v1476 = vsub.f32 %v1466, %v1472
    %1479 = vrot.lane.b32.xlu0 %v1475, 16
    %v1480 = vpop.permute.xlu0 %1479
    %1481 = vrot.lane.b32.xlu0 %v1476, 16
    %v1482 = vpop.permute.xlu0 %1481
    %v1485 = vmul.f32 %v1432, %v1480
    %v1486 = vmul.f32 %v1434, %v1482
    %1489 = vrot.lane.b32.xlu0 %v1485, 16
    %v1490 = vpop.permute.xlu0 %1489
    %1491 = vrot.lane.b32.xlu0 %v1486, 16
    %v1492 = vpop.permute.xlu0 %1491
    %v1495 = vadd.f32 %v1455, %v1490
    %v1496 = vadd.f32 %v1456, %v1492
    %1498 = vrot.lane.b32.xlu0 %v1495, 96
    %v1499 = vpop.permute.xlu0 %1498
    %s1501 = scalar_lea.vmem [#allocation4], 56
    %1502 = vst.msk [vmem:[%s1501] sm:$0xff] %vm459, %v1499
    %1504 = vrot.lane.b32.xlu0 %v1496, 96
    %v1505 = vpop.permute.xlu0 %1504
    %1507 = vst.msk [vmem:[#allocation5] sm:$0xff] %vm459, %v1505
    %v1508 = vld [vmem:[#allocation4] sm:$0xff]
    %v1509 = vld [vmem:[#allocation4 + $0x8] sm:$0xff]
    %v1510 = vld [vmem:[#allocation4 + $0x10] sm:$0xff]
    %v1511 = vld [vmem:[#allocation4 + $0x18] sm:$0xff]
    %v1512 = vld [vmem:[#allocation4 + $0x20] sm:$0xff]
    %v1513 = vld [vmem:[#allocation4 + $0x28] sm:$0xff]
    %v1514 = vld [vmem:[#allocation4 + $0x30] sm:$0xff]
    %v1515 = vld [vmem:[#allocation4 + $0x38] sm:$0xff]
    %v1516 = vpack.c.bf16 %v1509, %v1508
    %v1517 = vpack.c.bf16 %v1511, %v1510
    %v1518 = vpack.c.bf16 %v1513, %v1512
    %v1519 = vpack.c.bf16 %v1515, %v1514
    %v1520 = vld [vmem:[#allocation5] sm:$0xff]
    %v1521 = vld [vmem:[#allocation5 + $0x8] sm:$0xff]
    %v1522 = vld [vmem:[#allocation5 + $0x10] sm:$0xff]
    %v1523 = vld [vmem:[#allocation5 + $0x18] sm:$0xff]
    %v1524 = vld [vmem:[#allocation5 + $0x20] sm:$0xff]
    %v1525 = vld [vmem:[#allocation5 + $0x28] sm:$0xff]
    %v1526 = vld [vmem:[#allocation5 + $0x30] sm:$0xff]
    %v1527 = vld [vmem:[#allocation5 + $0x38] sm:$0xff]
    %v1528 = vpack.c.bf16 %v1521, %v1520
    %v1529 = vpack.c.bf16 %v1523, %v1522
    %v1530 = vpack.c.bf16 %v1525, %v1524
    %v1531 = vpack.c.bf16 %v1527, %v1526
    %v1532 = vld [vmem:[%s3] sm:$0xf]
    %v1533 = vld [vmem:[%s3 + $0x4] sm:$0xf]
    %s1534 = scalar_lea.vmem %s3, 16
    %v1535 = vld [vmem:[%s1534] sm:$0xf]
    %v1536 = vld [vmem:[%s1534 + $0x4] sm:$0xf]
    %v1539 = vunpack.c.l.b16 %v1535
    %v1540 = vunpack.c.l.b16 %v1536
    %v1541 = vpack.c.b16 %v1540, %v1539
    %v1544 = vsel %vm459, %v1528, 0
    %v1547 = vsel %vm459, %v1529, 0
    %v1550 = vsel %vm459, %v1530, 0
    %v1553 = vsel %vm459, %v1531, 0
    %1555 = vmatprep.subr.bf16.mxu0 0
    %1556 = vmatpush1.bf16.msra.mxu0 %v1541
    %1557 = vmatprep.subr.bf16.mxu0 0
    %1558 = vmatpush1.bf16.msra.mxu0 0
    %1559 = vmatprep.subr.bf16.mxu0 0
    %1560 = vmatpush1.bf16.msra.mxu0 0
    %1561 = vmatprep.subr.bf16.mxu0 0
    %1562 = vmatpush1.bf16.msra.mxu0 0
    %1563 = vmatprep.subr.bf16.mxu0 0
    %1564 = vmatpush1.bf16.msra.mxu0 0
    %1565 = vmatprep.subr.bf16.mxu0 0
    %1566 = vmatpush1.bf16.msra.mxu0 0
    %1567 = vmatprep.subr.bf16.mxu0 0
    %1568 = vmatpush1.bf16.msra.mxu0 0
    %1569 = vmatprep.subr.bf16.mxu0 0
    %1570 = vmatpush1.bf16.msra.mxu0 0
    %1571 = vmatprep.subr.bf16.mxu0 0
    %1572 = vmatpush1.bf16.msra.mxu0 0
    %1573 = vmatprep.subr.bf16.mxu0 0
    %1574 = vmatpush1.bf16.msra.mxu0 0
    %1575 = vmatprep.subr.bf16.mxu0 0
    %1576 = vmatpush1.bf16.msra.mxu0 0
    %1577 = vmatprep.subr.bf16.mxu0 0
    %1578 = vmatpush1.bf16.msra.mxu0 0
    %1579 = vmatprep.subr.bf16.mxu0 0
    %1580 = vmatpush1.bf16.msra.mxu0 0
    %1581 = vmatprep.subr.bf16.mxu0 0
    %1582 = vmatpush1.bf16.msra.mxu0 0
    %1583 = vmatprep.subr.bf16.mxu0 0
    %1584 = vmatpush1.bf16.msra.mxu0 0
    %1585 = vmatprep.subr.bf16.mxu0 0
    %1586 = vmatpush1.bf16.msra.mxu0 0
    %1587 = vmatprep.mubr.bf16.mxu0 0
    %1588 = vmatmul.mubr.bf16.gmra.mrb[0].mxu0 %v1544
    %v1589 = vpop.f32.mrb[0].mxu0
    %v1590 = vadd.f32 0.0, %v1589
    %v1591 = vpop.f32.mrb[0].mxu0
    %v1592 = vpop.f32.mrb[0].mxu0
    %v1593 = vadd.f32 0.0, %v1592
    %v1594 = vpop.f32.mrb[0].mxu0
    %1595 = vmatprep.mubr.bf16.mxu0 0
    %1596 = vmatmul.mubr.bf16.gmra.mrb[0].mxu0 %v1547
    %v1597 = vpop.f32.mrb[0].mxu0
    %v1598 = vadd.f32 0.0, %v1597
    %v1599 = vpop.f32.mrb[0].mxu0
    %v1600 = vpop.f32.mrb[0].mxu0
    %v1601 = vadd.f32 0.0, %v1600
    %v1602 = vpop.f32.mrb[0].mxu0
    %1603 = vmatprep.mubr.bf16.mxu0 0
    %1604 = vmatmul.mubr.bf16.gmra.mrb[0].mxu0 %v1550
    %v1605 = vpop.f32.mrb[0].mxu0
    %v1606 = vadd.f32 0.0, %v1605
    %v1607 = vpop.f32.mrb[0].mxu0
    %v1608 = vpop.f32.mrb[0].mxu0
    %v1609 = vadd.f32 0.0, %v1608
    %v1610 = vpop.f32.mrb[0].mxu0
    %1611 = vmatprep.mubr.bf16.mxu0 0
    %1612 = vmatmul.mubr.bf16.gmra.mrb[0].mxu0 %v1553
    %v1613 = vpop.f32.mrb[0].mxu0
    %v1614 = vadd.f32 0.0, %v1613
    %v1615 = vpop.f32.mrb[0].mxu0
    %v1616 = vpop.f32.mrb[0].mxu0
    %v1617 = vadd.f32 0.0, %v1616
    %v1618 = vpop.f32.mrb[0].mxu0
    %1619 = vdwg.mxu0
    %v1622 = vunpack.c.l.b16 %v1532
    %v1623 = vunpack.c.l.b16 %v1533
    %v1624 = vpack.c.b16 %v1623, %v1622
    %v1627 = vsel %vm459, %v1516, 0
    %v1630 = vsel %vm459, %v1517, 0
    %v1633 = vsel %vm459, %v1518, 0
    %v1636 = vsel %vm459, %v1519, 0
    %1638 = vmatprep.subr.bf16.mxu0 0
    %1639 = vmatpush1.bf16.msra.mxu0 %v1624
    %1640 = vmatprep.subr.bf16.mxu0 0
    %1641 = vmatpush1.bf16.msra.mxu0 0
    %1642 = vmatprep.subr.bf16.mxu0 0
    %1643 = vmatpush1.bf16.msra.mxu0 0
    %1644 = vmatprep.subr.bf16.mxu0 0
    %1645 = vmatpush1.bf16.msra.mxu0 0
    %1646 = vmatprep.subr.bf16.mxu0 0
    %1647 = vmatpush1.bf16.msra.mxu0 0
    %1648 = vmatprep.subr.bf16.mxu0 0
    %1649 = vmatpush1.bf16.msra.mxu0 0
    %1650 = vmatprep.subr.bf16.mxu0 0
    %1651 = vmatpush1.bf16.msra.mxu0 0
    %1652 = vmatprep.subr.bf16.mxu0 0
    %1653 = vmatpush1.bf16.msra.mxu0 0
    %1654 = vmatprep.subr.bf16.mxu0 0
    %1655 = vmatpush1.bf16.msra.mxu0 0
    %1656 = vmatprep.subr.bf16.mxu0 0
    %1657 = vmatpush1.bf16.msra.mxu0 0
    %1658 = vmatprep.subr.bf16.mxu0 0
    %1659 = vmatpush1.bf16.msra.mxu0 0
    %1660 = vmatprep.subr.bf16.mxu0 0
    %1661 = vmatpush1.bf16.msra.mxu0 0
    %1662 = vmatprep.subr.bf16.mxu0 0
    %1663 = vmatpush1.bf16.msra.mxu0 0
    %1664 = vmatprep.subr.bf16.mxu0 0
    %1665 = vmatpush1.bf16.msra.mxu0 0
    %1666 = vmatprep.subr.bf16.mxu0 0
    %1667 = vmatpush1.bf16.msra.mxu0 0
    %1668 = vmatprep.subr.bf16.mxu0 0
    %1669 = vmatpush1.bf16.msra.mxu0 0
    %1670 = vmatprep.mubr.bf16.mxu0 0
    %1671 = vmatmul.mubr.bf16.gmra.mrb[0].mxu0 %v1627
    %v1672 = vpop.f32.mrb[0].mxu0
    %v1673 = vadd.f32 %v1590, %v1672
    %v1674 = vpop.f32.mrb[0].mxu0
    %v1675 = vpop.f32.mrb[0].mxu0
    %v1676 = vadd.f32 %v1593, %v1675
    %v1677 = vpop.f32.mrb[0].mxu0
    %1678 = vmatprep.mubr.bf16.mxu0 0
    %1679 = vmatmul.mubr.bf16.gmra.mrb[0].mxu0 %v1630
    %v1680 = vpop.f32.mrb[0].mxu0
    %v1681 = vadd.f32 %v1598, %v1680
    %v1682 = vpop.f32.mrb[0].mxu0
    %v1683 = vpop.f32.mrb[0].mxu0
    %v1684 = vadd.f32 %v1601, %v1683
    %v1685 = vpop.f32.mrb[0].mxu0
    %1686 = vmatprep.mubr.bf16.mxu0 0
    %1687 = vmatmul.mubr.bf16.gmra.mrb[0].mxu0 %v1633
    %v1688 = vpop.f32.mrb[0].mxu0
    %v1689 = vadd.f32 %v1606, %v1688
    %v1690 = vpop.f32.mrb[0].mxu0
    %v1691 = vpop.f32.mrb[0].mxu0
    %v1692 = vadd.f32 %v1609, %v1691
    %v1693 = vpop.f32.mrb[0].mxu0
    %1694 = vmatprep.mubr.bf16.mxu0 0
    %1695 = vmatmul.mubr.bf16.gmra.mrb[0].mxu0 %v1636
    %v1696 = vpop.f32.mrb[0].mxu0
    %v1697 = vadd.f32 %v1614, %v1696
    %v1698 = vpop.f32.mrb[0].mxu0
    %v1699 = vpop.f32.mrb[0].mxu0
    %v1700 = vadd.f32 %v1617, %v1699
    %v1701 = vpop.f32.mrb[0].mxu0
    %1702 = vdwg.mxu0
    %v1703 = vld [vmem:[%s4] sm:$0x1]
    %v1705 = vlaneseq
    %v1706 = vshrl.u32 %v1705, 7
    %v1707 = vsub.s32 0, %v1706
    %v1708 = vrot.slane %v1703, %v1707
    %v1710 = vadd.f32 %v1673, %v1708
    %v1711 = vadd.f32 %v1676, %v1708
    %v1712 = vadd.f32 %v1681, %v1708
    %v1713 = vadd.f32 %v1684, %v1708
    %v1714 = vadd.f32 %v1689, %v1708
    %v1715 = vadd.f32 %v1692, %v1708
    %v1716 = vadd.f32 %v1697, %v1708
    %v1717 = vadd.f32 %v1700, %v1708
    %v1718 = vpack.c.bf16 %v1710, %v1710
    %v1719 = vpack.c.bf16 %v1711, %v1711
    %v1720 = vpack.c.bf16 %v1712, %v1712
    %v1721 = vpack.c.bf16 %v1713, %v1713
    %v1722 = vpack.c.bf16 %v1714, %v1714
    %v1723 = vpack.c.bf16 %v1715, %v1715
    %v1724 = vpack.c.bf16 %v1716, %v1716
    %v1725 = vpack.c.bf16 %v1717, %v1717
    %1726 = vst.msk [vmem:[#allocation2] sm:$0xf] %vm202, %v1718
    %1727 = vst.msk [vmem:[#allocation2 + $0x4] sm:$0xf] %vm202, %v1719
    %1728 = vst.msk [vmem:[#allocation2 + $0x8] sm:$0xf] %vm202, %v1720
    %1729 = vst.msk [vmem:[#allocation2 + $0xc] sm:$0xf] %vm202, %v1721
    %1730 = vst.msk [vmem:[#allocation2 + $0x10] sm:$0xf] %vm202, %v1722
    %1731 = vst.msk [vmem:[#allocation2 + $0x14] sm:$0xf] %vm202, %v1723
    %1732 = vst.msk [vmem:[#allocation2 + $0x18] sm:$0xf] %vm202, %v1724
    %1733 = vst.msk [vmem:[#allocation2 + $0x1c] sm:$0xf] %vm202, %v1725
    %s1734 = scalar_lea.vmem %s3, 8
    %v1735 = vld [vmem:[%s1734] sm:$0xf]
    %v1736 = vld [vmem:[%s1734 + $0x4] sm:$0xf]
    %s1737 = scalar_lea.vmem %s3, 24
    %v1738 = vld [vmem:[%s1737] sm:$0xf]
    %v1739 = vld [vmem:[%s1737 + $0x4] sm:$0xf]
    %v1742 = vunpack.c.l.b16 %v1738
    %v1743 = vunpack.c.l.b16 %v1739
    %v1744 = vpack.c.b16 %v1743, %v1742
    %1746 = vmatprep.subr.bf16.mxu0 0
    %1747 = vmatpush1.bf16.msra.mxu0 %v1744
    %1748 = vmatprep.subr.bf16.mxu0 0
    %1749 = vmatpush1.bf16.msra.mxu0 0
    %1750 = vmatprep.subr.bf16.mxu0 0
    %1751 = vmatpush1.bf16.msra.mxu0 0
    %1752 = vmatprep.subr.bf16.mxu0 0
    %1753 = vmatpush1.bf16.msra.mxu0 0
    %1754 = vmatprep.subr.bf16.mxu0 0
    %1755 = vmatpush1.bf16.msra.mxu0 0
    %1756 = vmatprep.subr.bf16.mxu0 0
    %1757 = vmatpush1.bf16.msra.mxu0 0
    %1758 = vmatprep.subr.bf16.mxu0 0
    %1759 = vmatpush1.bf16.msra.mxu0 0
    %1760 = vmatprep.subr.bf16.mxu0 0
    %1761 = vmatpush1.bf16.msra.mxu0 0
    %1762 = vmatprep.subr.bf16.mxu0 0
    %1763 = vmatpush1.bf16.msra.mxu0 0
    %1764 = vmatprep.subr.bf16.mxu0 0
    %1765 = vmatpush1.bf16.msra.mxu0 0
    %1766 = vmatprep.subr.bf16.mxu0 0
    %1767 = vmatpush1.bf16.msra.mxu0 0
    %1768 = vmatprep.subr.bf16.mxu0 0
    %1769 = vmatpush1.bf16.msra.mxu0 0
    %1770 = vmatprep.subr.bf16.mxu0 0
    %1771 = vmatpush1.bf16.msra.mxu0 0
    %1772 = vmatprep.subr.bf16.mxu0 0
    %1773 = vmatpush1.bf16.msra.mxu0 0
    %1774 = vmatprep.subr.bf16.mxu0 0
    %1775 = vmatpush1.bf16.msra.mxu0 0
    %1776 = vmatprep.subr.bf16.mxu0 0
    %1777 = vmatpush1.bf16.msra.mxu0 0
    %1778 = vmatprep.mubr.bf16.mxu0 0
    %1779 = vmatmul.mubr.bf16.gmra.mrb[0].mxu0 %v1544
    %v1780 = vpop.f32.mrb[0].mxu0
    %v1781 = vadd.f32 0.0, %v1780
    %v1782 = vpop.f32.mrb[0].mxu0
    %v1783 = vpop.f32.mrb[0].mxu0
    %v1784 = vadd.f32 0.0, %v1783
    %v1785 = vpop.f32.mrb[0].mxu0
    %1786 = vmatprep.mubr.bf16.mxu0 0
    %1787 = vmatmul.mubr.bf16.gmra.mrb[0].mxu0 %v1547
    %v1788 = vpop.f32.mrb[0].mxu0
    %v1789 = vadd.f32 0.0, %v1788
    %v1790 = vpop.f32.mrb[0].mxu0
    %v1791 = vpop.f32.mrb[0].mxu0
    %v1792 = vadd.f32 0.0, %v1791
    %v1793 = vpop.f32.mrb[0].mxu0
    %1794 = vmatprep.mubr.bf16.mxu0 0
    %1795 = vmatmul.mubr.bf16.gmra.mrb[0].mxu0 %v1550
    %v1796 = vpop.f32.mrb[0].mxu0
    %v1797 = vadd.f32 0.0, %v1796
    %v1798 = vpop.f32.mrb[0].mxu0
    %v1799 = vpop.f32.mrb[0].mxu0
    %v1800 = vadd.f32 0.0, %v1799
    %v1801 = vpop.f32.mrb[0].mxu0
    %1802 = vmatprep.mubr.bf16.mxu0 0
    %1803 = vmatmul.mubr.bf16.gmra.mrb[0].mxu0 %v1553
    %v1804 = vpop.f32.mrb[0].mxu0
    %v1805 = vadd.f32 0.0, %v1804
    %v1806 = vpop.f32.mrb[0].mxu0
    %v1807 = vpop.f32.mrb[0].mxu0
    %v1808 = vadd.f32 0.0, %v1807
    %v1809 = vpop.f32.mrb[0].mxu0
    %1810 = vdwg.mxu0
    %v1813 = vunpack.c.l.b16 %v1735
    %v1814 = vunpack.c.l.b16 %v1736
    %v1815 = vpack.c.b16 %v1814, %v1813
    %1817 = vmatprep.subr.bf16.mxu0 0
    %1818 = vmatpush1.bf16.msra.mxu0 %v1815
    %1819 = vmatprep.subr.bf16.mxu0 0
    %1820 = vmatpush1.bf16.msra.mxu0 0
    %1821 = vmatprep.subr.bf16.mxu0 0
    %1822 = vmatpush1.bf16.msra.mxu0 0
    %1823 = vmatprep.subr.bf16.mxu0 0
    %1824 = vmatpush1.bf16.msra.mxu0 0
    %1825 = vmatprep.subr.bf16.mxu0 0
    %1826 = vmatpush1.bf16.msra.mxu0 0
    %1827 = vmatprep.subr.bf16.mxu0 0
    %1828 = vmatpush1.bf16.msra.mxu0 0
    %1829 = vmatprep.subr.bf16.mxu0 0
    %1830 = vmatpush1.bf16.msra.mxu0 0
    %1831 = vmatprep.subr.bf16.mxu0 0
    %1832 = vmatpush1.bf16.msra.mxu0 0
    %1833 = vmatprep.subr.bf16.mxu0 0
    %1834 = vmatpush1.bf16.msra.mxu0 0
    %1835 = vmatprep.subr.bf16.mxu0 0
    %1836 = vmatpush1.bf16.msra.mxu0 0
    %1837 = vmatprep.subr.bf16.mxu0 0
    %1838 = vmatpush1.bf16.msra.mxu0 0
    %1839 = vmatprep.subr.bf16.mxu0 0
    %1840 = vmatpush1.bf16.msra.mxu0 0
    %1841 = vmatprep.subr.bf16.mxu0 0
    %1842 = vmatpush1.bf16.msra.mxu0 0
    %1843 = vmatprep.subr.bf16.mxu0 0
    %1844 = vmatpush1.bf16.msra.mxu0 0
    %1845 = vmatprep.subr.bf16.mxu0 0
    %1846 = vmatpush1.bf16.msra.mxu0 0
    %1847 = vmatprep.subr.bf16.mxu0 0
    %1848 = vmatpush1.bf16.msra.mxu0 0
    %1849 = vmatprep.mubr.bf16.mxu0 0
    %1850 = vmatmul.mubr.bf16.gmra.mrb[0].mxu0 %v1627
    %v1851 = vpop.f32.mrb[0].mxu0
    %v1852 = vadd.f32 %v1781, %v1851
    %v1853 = vpop.f32.mrb[0].mxu0
    %v1854 = vpop.f32.mrb[0].mxu0
    %v1855 = vadd.f32 %v1784, %v1854
    %v1856 = vpop.f32.mrb[0].mxu0
    %1857 = vmatprep.mubr.bf16.mxu0 0
    %1858 = vmatmul.mubr.bf16.gmra.mrb[0].mxu0 %v1630
    %v1859 = vpop.f32.mrb[0].mxu0
    %v1860 = vadd.f32 %v1789, %v1859
    %v1861 = vpop.f32.mrb[0].mxu0
    %v1862 = vpop.f32.mrb[0].mxu0
    %v1863 = vadd.f32 %v1792, %v1862
    %v1864 = vpop.f32.mrb[0].mxu0
    %1865 = vmatprep.mubr.bf16.mxu0 0
    %1866 = vmatmul.mubr.bf16.gmra.mrb[0].mxu0 %v1633
    %v1867 = vpop.f32.mrb[0].mxu0
    %v1868 = vadd.f32 %v1797, %v1867
    %v1869 = vpop.f32.mrb[0].mxu0
    %v1870 = vpop.f32.mrb[0].mxu0
    %v1871 = vadd.f32 %v1800, %v1870
    %v1872 = vpop.f32.mrb[0].mxu0
    %1873 = vmatprep.mubr.bf16.mxu0 0
    %1874 = vmatmul.mubr.bf16.gmra.mrb[0].mxu0 %v1636
    %v1875 = vpop.f32.mrb[0].mxu0
    %v1876 = vadd.f32 %v1805, %v1875
    %v1877 = vpop.f32.mrb[0].mxu0
    %v1878 = vpop.f32.mrb[0].mxu0
    %v1879 = vadd.f32 %v1808, %v1878
    %v1880 = vpop.f32.mrb[0].mxu0
    %1881 = vdwg.mxu0
    %s1882 = scalar_lea.vmem %s4, 1
    %v1883 = vld [vmem:[%s1882] sm:$0x1]
    %v1885 = vlaneseq
    %v1886 = vshrl.u32 %v1885, 7
    %v1887 = vsub.s32 0, %v1886
    %v1888 = vrot.slane %v1883, %v1887
    %v1890 = vadd.f32 %v1852, %v1888
    %v1891 = vadd.f32 %v1855, %v1888
    %v1892 = vadd.f32 %v1860, %v1888
    %v1893 = vadd.f32 %v1863, %v1888
    %v1894 = vadd.f32 %v1868, %v1888
    %v1895 = vadd.f32 %v1871, %v1888
    %v1896 = vadd.f32 %v1876, %v1888
    %v1897 = vadd.f32 %v1879, %v1888
    %v1898 = vpack.c.bf16 %v1890, %v1890
    %v1899 = vpack.c.bf16 %v1891, %v1891
    %v1900 = vpack.c.bf16 %v1892, %v1892
    %v1901 = vpack.c.bf16 %v1893, %v1893
    %v1902 = vpack.c.bf16 %v1894, %v1894
    %v1903 = vpack.c.bf16 %v1895, %v1895
    %v1904 = vpack.c.bf16 %v1896, %v1896
    %v1905 = vpack.c.bf16 %v1897, %v1897
    %1906 = vst.msk [vmem:[#allocation3] sm:$0xf] %vm202, %v1898
    %1907 = vst.msk [vmem:[#allocation3 + $0x4] sm:$0xf] %vm202, %v1899
    %1908 = vst.msk [vmem:[#allocation3 + $0x8] sm:$0xf] %vm202, %v1900
    %1909 = vst.msk [vmem:[#allocation3 + $0xc] sm:$0xf] %vm202, %v1901
    %1910 = vst.msk [vmem:[#allocation3 + $0x10] sm:$0xf] %vm202, %v1902
    %1911 = vst.msk [vmem:[#allocation3 + $0x14] sm:$0xf] %vm202, %v1903
    %1912 = vst.msk [vmem:[#allocation3 + $0x18] sm:$0xf] %vm202, %v1904
    %1913 = vst.msk [vmem:[#allocation3 + $0x1c] sm:$0xf] %vm202, %v1905
    %s1914 = scalar_lea.vmem [#allocation7], 16
    %v1915 = vld [vmem:[%s1914] sm:$0xf]
    %v1916 = vld [vmem:[%s1914 + $0x4] sm:$0xf]
    %v1917 = vld [vmem:[%s1914 + $0x8] sm:$0xf]
    %v1918 = vld [vmem:[%s1914 + $0xc] sm:$0xf]
    %s1919 = scalar_lea.vmem %s6, 2
    %v1920 = vld [vmem:[%s1919] sm:$0x1]
    %v1922 = vlaneseq
    %v1923 = vshrl.u32 %v1922, 7
    %v1924 = vsub.s32 0, %v1923
    %v1925 = vrot.slane %v1920, %v1924
    %s1927 = scalar_lea.vmem %s6, 3
    %v1928 = vld [vmem:[%s1927] sm:$0x1]
    %v1930 = vlaneseq
    %v1931 = vshrl.u32 %v1930, 7
    %v1932 = vsub.s32 0, %v1931
    %v1933 = vrot.slane %v1928, %v1932
    %v1935 = vld [vmem:[#allocation2] sm:$0xf]
    %v1936 = vunpack.c.l.bf16 %v1935
    %v1937 = vld [vmem:[%s338] sm:$0xf]
    %v1938 = vunpack.c.l.bf16 %v1937
    %v1943 = vunpack.c.l.b16 %v1915
    %v1944 = vunpack.c.l.b16 %v1916
    %v1945 = vunpack.c.l.b16 %v1917
    %v1946 = vunpack.c.l.b16 %v1918
    %v1947 = vpack.c.b16 %v1944, %v1943
    %v1948 = vpack.c.b16 %v1946, %v1945
    %1951 = vmatprep.subr.bf16.mxu0 0
    %1952 = vmatpush1.bf16.msra.mxu0 %v1947
    %1953 = vmatprep.subr.bf16.mxu0 0
    %1954 = vmatpush1.bf16.msra.mxu0 %v1948
    %1955 = vmatprep.subr.bf16.mxu0 0
    %1956 = vmatpush1.bf16.msra.mxu0 0
    %1957 = vmatprep.subr.bf16.mxu0 0
    %1958 = vmatpush1.bf16.msra.mxu0 0
    %1959 = vmatprep.subr.bf16.mxu0 0
    %1960 = vmatpush1.bf16.msra.mxu0 0
    %1961 = vmatprep.subr.bf16.mxu0 0
    %1962 = vmatpush1.bf16.msra.mxu0 0
    %1963 = vmatprep.subr.bf16.mxu0 0
    %1964 = vmatpush1.bf16.msra.mxu0 0
    %1965 = vmatprep.subr.bf16.mxu0 0
    %1966 = vmatpush1.bf16.msra.mxu0 0
    %1967 = vmatprep.subr.bf16.mxu0 0
    %1968 = vmatpush1.bf16.msra.mxu0 0
    %1969 = vmatprep.subr.bf16.mxu0 0
    %1970 = vmatpush1.bf16.msra.mxu0 0
    %1971 = vmatprep.subr.bf16.mxu0 0
    %1972 = vmatpush1.bf16.msra.mxu0 0
    %1973 = vmatprep.subr.bf16.mxu0 0
    %1974 = vmatpush1.bf16.msra.mxu0 0
    %1975 = vmatprep.subr.bf16.mxu0 0
    %1976 = vmatpush1.bf16.msra.mxu0 0
    %1977 = vmatprep.subr.bf16.mxu0 0
    %1978 = vmatpush1.bf16.msra.mxu0 0
    %1979 = vmatprep.subr.bf16.mxu0 0
    %1980 = vmatpush1.bf16.msra.mxu0 0
    %1981 = vmatprep.subr.bf16.mxu0 0
    %1982 = vmatpush1.bf16.msra.mxu0 0
    %1983 = vmatprep.mubr.bf16.mxu0 0
    %1984 = vmatmul.mubr.bf16.gmra.mrb[0].mxu0 %v354
    %v1985 = vpop.f32.mrb[0].mxu0
    %v1986 = vadd.f32 %v1925, %v1985
    %v1987 = vpop.f32.mrb[0].mxu0
    %v1988 = vpop.f32.mrb[0].mxu0
    %v1989 = vadd.f32 %v1933, %v1988
    %v1990 = vpop.f32.mrb[0].mxu0
    %1991 = vdwg.mxu0
    %v1992 = vadd.f32 %v1936, %v1986
    %v1993 = vadd.f32 %v1938, %v1989
    %v1994 = vxor.u32 %v1992, 2147483648
    %v1995 = vxor.u32 %v1993, 2147483648
    %v1996 = vmul.f32 %v1994, 1.442695
    %v1997 = vpow.pop %v1996
    %v1998 = vmul.f32 %v1995, 1.442695
    %v1999 = vpow.pop %v1998
    %v2000 = vadd.f32 %v1997, 1.0
    %v2001 = vadd.f32 %v1999, 1.0
    %v2002 = vrcp.pop %v2000
    %v2003 = vmul.f32 1.0, %v2002
    %v2004 = vrcp.pop %v2001
    %v2005 = vmul.f32 1.0, %v2004
    %2008 = vrot.lane.b32.xlu0 %v1986, 96
    %v2009 = vpop.permute.xlu0 %2008
    %2010 = vrot.lane.b32.xlu0 %v1989, 96
    %v2011 = vpop.permute.xlu0 %2010
    %v2014 = vmul.f32 %v2003, %v2009
    %v2015 = vmul.f32 %v2005, %v2011
    %2018 = vrot.lane.b32.xlu0 %v2014, 32
    %v2019 = vpop.permute.xlu0 %2018
    %2020 = vrot.lane.b32.xlu0 %v2015, 32
    %v2021 = vpop.permute.xlu0 %2020
    %v2024 = vadd.f32 %v1936, %v2019
    %v2025 = vadd.f32 %v1938, %v2021
    %v2026 = vtanh.pop %v2024
    %v2027 = vtanh.pop %v2025
    %v2028 = vsub.f32 0.0, %v2026
    %v2029 = vsub.f32 0.0, %v2027
    %2032 = vrot.lane.b32.xlu0 %v2028, 112
    %v2033 = vpop.permute.xlu0 %2032
    %2034 = vrot.lane.b32.xlu0 %v2029, 112
    %v2035 = vpop.permute.xlu0 %2034
    %v2038 = vmul.f32 %v2003, %v2033
    %v2039 = vmul.f32 %v2005, %v2035
    %2042 = vrot.lane.b32.xlu0 %v2038, 16
    %v2043 = vpop.permute.xlu0 %2042
    %2044 = vrot.lane.b32.xlu0 %v2039, 16
    %v2045 = vpop.permute.xlu0 %2044
    %v2048 = vadd.f32 %v2026, %v2043
    %v2049 = vadd.f32 %v2027, %v2045
    %2051 = vrot.lane.b32.xlu0 %v2048, 96
    %v2052 = vpop.permute.xlu0 %2051
    %2054 = vst.msk [vmem:[#allocation4] sm:$0xff] %vm459, %v2052
    %2056 = vrot.lane.b32.xlu0 %v2049, 96
    %v2057 = vpop.permute.xlu0 %2056
    %2059 = vst.msk [vmem:[%s465] sm:$0xff] %vm459, %v2057
    %2060 = vrot.lane.b32.xlu0 %v2048, 112
    %v2061 = vpop.permute.xlu0 %2060
    %2062 = vrot.lane.b32.xlu0 %v2049, 112
    %v2063 = vpop.permute.xlu0 %2062
    %v2066 = vsel %vm459, %v2052, %v2061
    %v2067 = vsel %vm459, %v2057, %v2063
    %v2068 = vmul.f32 %v2066, %v63
    %v2069 = vmul.f32 %v2067, %v64
    %v2070 = vld [vmem:[%s477] sm:$0xf]
    %v2071 = vunpack.c.l.bf16 %v2070
    %v2072 = vld [vmem:[%s480] sm:$0xf]
    %v2073 = vunpack.c.l.bf16 %v2072
    %v2074 = vpack.c.bf16 %v2069, %v2068
    %v2076 = vsel %vm116, %v2074, 0
    %2078 = vmatprep.subr.bf16.mxu0 0
    %2079 = vmatpush1.bf16.msra.mxu0 %v1947
    %2080 = vmatprep.subr.bf16.mxu0 0
    %2081 = vmatpush1.bf16.msra.mxu0 %v1948
    %2082 = vmatprep.subr.bf16.mxu0 0
    %2083 = vmatpush1.bf16.msra.mxu0 0
    %2084 = vmatprep.subr.bf16.mxu0 0
    %2085 = vmatpush1.bf16.msra.mxu0 0
    %2086 = vmatprep.subr.bf16.mxu0 0
    %2087 = vmatpush1.bf16.msra.mxu0 0
    %2088 = vmatprep.subr.bf16.mxu0 0
    %2089 = vmatpush1.bf16.msra.mxu0 0
    %2090 = vmatprep.subr.bf16.mxu0 0
    %2091 = vmatpush1.bf16.msra.mxu0 0
    %2092 = vmatprep.subr.bf16.mxu0 0
    %2093 = vmatpush1.bf16.msra.mxu0 0
    %2094 = vmatprep.subr.bf16.mxu0 0
    %2095 = vmatpush1.bf16.msra.mxu0 0
    %2096 = vmatprep.subr.bf16.mxu0 0
    %2097 = vmatpush1.bf16.msra.mxu0 0
    %2098 = vmatprep.subr.bf16.mxu0 0
    %2099 = vmatpush1.bf16.msra.mxu0 0
    %2100 = vmatprep.subr.bf16.mxu0 0
    %2101 = vmatpush1.bf16.msra.mxu0 0
    %2102 = vmatprep.subr.bf16.mxu0 0
    %2103 = vmatpush1.bf16.msra.mxu0 0
    %2104 = vmatprep.subr.bf16.mxu0 0
    %2105 = vmatpush1.bf16.msra.mxu0 0
    %2106 = vmatprep.subr.bf16.mxu0 0
    %2107 = vmatpush1.bf16.msra.mxu0 0
    %2108 = vmatprep.subr.bf16.mxu0 0
    %2109 = vmatpush1.bf16.msra.mxu0 0
    %2110 = vmatprep.mubr.bf16.mxu0 0
    %2111 = vmatmul.mubr.bf16.gmra.mrb[0].mxu0 %v2076
    %v2112 = vpop.f32.mrb[0].mxu0
    %v2113 = vadd.f32 %v1925, %v2112
    %v2114 = vpop.f32.mrb[0].mxu0
    %v2115 = vpop.f32.mrb[0].mxu0
    %v2116 = vadd.f32 %v1933, %v2115
    %v2117 = vpop.f32.mrb[0].mxu0
    %2118 = vdwg.mxu0
    %v2119 = vadd.f32 %v2071, %v2113
    %v2120 = vadd.f32 %v2073, %v2116
    %v2121 = vxor.u32 %v2119, 2147483648
    %v2122 = vxor.u32 %v2120, 2147483648
    %v2123 = vmul.f32 %v2121, 1.442695
    %v2124 = vpow.pop %v2123
    %v2125 = vmul.f32 %v2122, 1.442695
    %v2126 = vpow.pop %v2125
    %v2127 = vadd.f32 %v2124, 1.0
    %v2128 = vadd.f32 %v2126, 1.0
    %v2129 = vrcp.pop %v2127
    %v2130 = vmul.f32 1.0, %v2129
    %v2131 = vrcp.pop %v2128
    %v2132 = vmul.f32 1.0, %v2131
    %2135 = vrot.lane.b32.xlu0 %v2113, 96
    %v2136 = vpop.permute.xlu0 %2135
    %2137 = vrot.lane.b32.xlu0 %v2116, 96
    %v2138 = vpop.permute.xlu0 %2137
    %v2141 = vmul.f32 %v2130, %v2136
    %v2142 = vmul.f32 %v2132, %v2138
    %2145 = vrot.lane.b32.xlu0 %v2141, 32
    %v2146 = vpop.permute.xlu0 %2145
    %2147 = vrot.lane.b32.xlu0 %v2142, 32
    %v2148 = vpop.permute.xlu0 %2147
    %v2151 = vadd.f32 %v2071, %v2146
    %v2152 = vadd.f32 %v2073, %v2148
    %v2153 = vtanh.pop %v2151
    %v2154 = vtanh.pop %v2152
    %2157 = vrot.lane.b32.xlu0 %v2068, 112
    %v2158 = vpop.permute.xlu0 %2157
    %2159 = vrot.lane.b32.xlu0 %v2069, 112
    %v2160 = vpop.permute.xlu0 %2159
    %v2163 = vadd.f32 %v2068, %v2158
    %v2164 = vadd.f32 %v2069, %v2160
    %2167 = vrot.lane.b32.xlu0 %v2153, 96
    %v2168 = vpop.permute.xlu0 %2167
    %2169 = vrot.lane.b32.xlu0 %v2154, 96
    %v2170 = vpop.permute.xlu0 %2169
    %v2173 = vsub.f32 %v2163, %v2168
    %v2174 = vsub.f32 %v2164, %v2170
    %2177 = vrot.lane.b32.xlu0 %v2173, 16
    %v2178 = vpop.permute.xlu0 %2177
    %2179 = vrot.lane.b32.xlu0 %v2174, 16
    %v2180 = vpop.permute.xlu0 %2179
    %v2183 = vmul.f32 %v2130, %v2178
    %v2184 = vmul.f32 %v2132, %v2180
    %2187 = vrot.lane.b32.xlu0 %v2183, 16
    %v2188 = vpop.permute.xlu0 %2187
    %2189 = vrot.lane.b32.xlu0 %v2184, 16
    %v2190 = vpop.permute.xlu0 %2189
    %v2193 = vadd.f32 %v2153, %v2188
    %v2194 = vadd.f32 %v2154, %v2190
    %2196 = vrot.lane.b32.xlu0 %v2193, 96
    %v2197 = vpop.permute.xlu0 %2196
    %2199 = vst.msk [vmem:[%s608] sm:$0xff] %vm459, %v2197
    %2201 = vrot.lane.b32.xlu0 %v2194, 96
    %v2202 = vpop.permute.xlu0 %2201
    %2204 = vst.msk [vmem:[%s614] sm:$0xff] %vm459, %v2202
    %2205 = vrot.lane.b32.xlu0 %v2193, 112
    %v2206 = vpop.permute.xlu0 %2205
    %2207 = vrot.lane.b32.xlu0 %v2194, 112
    %v2208 = vpop.permute.xlu0 %2207
    %v2211 = vsel %vm459, %v2197, %v2206
    %v2212 = vsel %vm459, %v2202, %v2208
    %v2213 = vmul.f32 %v2211, %v63
    %v2214 = vmul.f32 %v2212, %v64
    %v2215 = vld [vmem:[%s626] sm:$0xf]
    %v2216 = vunpack.c.l.bf16 %v2215
    %v2217 = vld [vmem:[%s629] sm:$0xf]
    %v2218 = vunpack.c.l.bf16 %v2217
    %v2219 = vpack.c.bf16 %v2214, %v2213
    %v2221 = vsel %vm116, %v2219, 0
    %2223 = vmatprep.subr.bf16.mxu0 0
    %2224 = vmatpush1.bf16.msra.mxu0 %v1947
    %2225 = vmatprep.subr.bf16.mxu0 0
    %2226 = vmatpush1.bf16.msra.mxu0 %v1948
    %2227 = vmatprep.subr.bf16.mxu0 0
    %2228 = vmatpush1.bf16.msra.mxu0 0
    %2229 = vmatprep.subr.bf16.mxu0 0
    %2230 = vmatpush1.bf16.msra.mxu0 0
    %2231 = vmatprep.subr.bf16.mxu0 0
    %2232 = vmatpush1.bf16.msra.mxu0 0
    %2233 = vmatprep.subr.bf16.mxu0 0
    %2234 = vmatpush1.bf16.msra.mxu0 0
    %2235 = vmatprep.subr.bf16.mxu0 0
    %2236 = vmatpush1.bf16.msra.mxu0 0
    %2237 = vmatprep.subr.bf16.mxu0 0
    %2238 = vmatpush1.bf16.msra.mxu0 0
    %2239 = vmatprep.subr.bf16.mxu0 0
    %2240 = vmatpush1.bf16.msra.mxu0 0
    %2241 = vmatprep.subr.bf16.mxu0 0
    %2242 = vmatpush1.bf16.msra.mxu0 0
    %2243 = vmatprep.subr.bf16.mxu0 0
    %2244 = vmatpush1.bf16.msra.mxu0 0
    %2245 = vmatprep.subr.bf16.mxu0 0
    %2246 = vmatpush1.bf16.msra.mxu0 0
    %2247 = vmatprep.subr.bf16.mxu0 0
    %2248 = vmatpush1.bf16.msra.mxu0 0
    %2249 = vmatprep.subr.bf16.mxu0 0
    %2250 = vmatpush1.bf16.msra.mxu0 0
    %2251 = vmatprep.subr.bf16.mxu0 0
    %2252 = vmatpush1.bf16.msra.mxu0 0
    %2253 = vmatprep.subr.bf16.mxu0 0
    %2254 = vmatpush1.bf16.msra.mxu0 0
    %2255 = vmatprep.mubr.bf16.mxu0 0
    %2256 = vmatmul.mubr.bf16.gmra.mrb[0].mxu0 %v2221
    %v2257 = vpop.f32.mrb[0].mxu0
    %v2258 = vadd.f32 %v1925, %v2257
    %v2259 = vpop.f32.mrb[0].mxu0
    %v2260 = vpop.f32.mrb[0].mxu0
    %v2261 = vadd.f32 %v1933, %v2260
    %v2262 = vpop.f32.mrb[0].mxu0
    %2263 = vdwg.mxu0
    %v2264 = vadd.f32 %v2216, %v2258
    %v2265 = vadd.f32 %v2218, %v2261
    %v2266 = vxor.u32 %v2264, 2147483648
    %v2267 = vxor.u32 %v2265, 2147483648
    %v2268 = vmul.f32 %v2266, 1.442695
    %v2269 = vpow.pop %v2268
    %v2270 = vmul.f32 %v2267, 1.442695
    %v2271 = vpow.pop %v2270
    %v2272 = vadd.f32 %v2269, 1.0
    %v2273 = vadd.f32 %v2271, 1.0
    %v2274 = vrcp.pop %v2272
    %v2275 = vmul.f32 1.0, %v2274
    %v2276 = vrcp.pop %v2273
    %v2277 = vmul.f32 1.0, %v2276
    %2280 = vrot.lane.b32.xlu0 %v2258, 96
    %v2281 = vpop.permute.xlu0 %2280
    %2282 = vrot.lane.b32.xlu0 %v2261, 96
    %v2283 = vpop.permute.xlu0 %2282
    %v2286 = vmul.f32 %v2275, %v2281
    %v2287 = vmul.f32 %v2277, %v2283
    %2290 = vrot.lane.b32.xlu0 %v2286, 32
    %v2291 = vpop.permute.xlu0 %2290
    %2292 = vrot.lane.b32.xlu0 %v2287, 32
    %v2293 = vpop.permute.xlu0 %2292
    %v2296 = vadd.f32 %v2216, %v2291
    %v2297 = vadd.f32 %v2218, %v2293
    %v2298 = vtanh.pop %v2296
    %v2299 = vtanh.pop %v2297
    %2302 = vrot.lane.b32.xlu0 %v2213, 112
    %v2303 = vpop.permute.xlu0 %2302
    %2304 = vrot.lane.b32.xlu0 %v2214, 112
    %v2305 = vpop.permute.xlu0 %2304
    %v2308 = vadd.f32 %v2213, %v2303
    %v2309 = vadd.f32 %v2214, %v2305
    %2312 = vrot.lane.b32.xlu0 %v2298, 96
    %v2313 = vpop.permute.xlu0 %2312
    %2314 = vrot.lane.b32.xlu0 %v2299, 96
    %v2315 = vpop.permute.xlu0 %2314
    %v2318 = vsub.f32 %v2308, %v2313
    %v2319 = vsub.f32 %v2309, %v2315
    %2322 = vrot.lane.b32.xlu0 %v2318, 16
    %v2323 = vpop.permute.xlu0 %2322
    %2324 = vrot.lane.b32.xlu0 %v2319, 16
    %v2325 = vpop.permute.xlu0 %2324
    %v2328 = vmul.f32 %v2275, %v2323
    %v2329 = vmul.f32 %v2277, %v2325
    %2332 = vrot.lane.b32.xlu0 %v2328, 16
    %v2333 = vpop.permute.xlu0 %2332
    %2334 = vrot.lane.b32.xlu0 %v2329, 16
    %v2335 = vpop.permute.xlu0 %2334
    %v2338 = vadd.f32 %v2298, %v2333
    %v2339 = vadd.f32 %v2299, %v2335
    %2341 = vrot.lane.b32.xlu0 %v2338, 96
    %v2342 = vpop.permute.xlu0 %2341
    %2344 = vst.msk [vmem:[%s757] sm:$0xff] %vm459, %v2342
    %2346 = vrot.lane.b32.xlu0 %v2339, 96
    %v2347 = vpop.permute.xlu0 %2346
    %2349 = vst.msk [vmem:[%s763] sm:$0xff] %vm459, %v2347
    %2350 = vrot.lane.b32.xlu0 %v2338, 112
    %v2351 = vpop.permute.xlu0 %2350
    %2352 = vrot.lane.b32.xlu0 %v2339, 112
    %v2353 = vpop.permute.xlu0 %2352
    %v2356 = vsel %vm459, %v2342, %v2351
    %v2357 = vsel %vm459, %v2347, %v2353
    %v2358 = vmul.f32 %v2356, %v63
    %v2359 = vmul.f32 %v2357, %v64
    %v2360 = vld [vmem:[%s775] sm:$0xf]
    %v2361 = vunpack.c.l.bf16 %v2360
    %v2362 = vld [vmem:[%s778] sm:$0xf]
    %v2363 = vunpack.c.l.bf16 %v2362
    %v2364 = vpack.c.bf16 %v2359, %v2358
    %v2366 = vsel %vm116, %v2364, 0
    %2368 = vmatprep.subr.bf16.mxu0 0
    %2369 = vmatpush1.bf16.msra.mxu0 %v1947
    %2370 = vmatprep.subr.bf16.mxu0 0
    %2371 = vmatpush1.bf16.msra.mxu0 %v1948
    %2372 = vmatprep.subr.bf16.mxu0 0
    %2373 = vmatpush1.bf16.msra.mxu0 0
    %2374 = vmatprep.subr.bf16.mxu0 0
    %2375 = vmatpush1.bf16.msra.mxu0 0
    %2376 = vmatprep.subr.bf16.mxu0 0
    %2377 = vmatpush1.bf16.msra.mxu0 0
    %2378 = vmatprep.subr.bf16.mxu0 0
    %2379 = vmatpush1.bf16.msra.mxu0 0
    %2380 = vmatprep.subr.bf16.mxu0 0
    %2381 = vmatpush1.bf16.msra.mxu0 0
    %2382 = vmatprep.subr.bf16.mxu0 0
    %2383 = vmatpush1.bf16.msra.mxu0 0
    %2384 = vmatprep.subr.bf16.mxu0 0
    %2385 = vmatpush1.bf16.msra.mxu0 0
    %2386 = vmatprep.subr.bf16.mxu0 0
    %2387 = vmatpush1.bf16.msra.mxu0 0
    %2388 = vmatprep.subr.bf16.mxu0 0
    %2389 = vmatpush1.bf16.msra.mxu0 0
    %2390 = vmatprep.subr.bf16.mxu0 0
    %2391 = vmatpush1.bf16.msra.mxu0 0
    %2392 = vmatprep.subr.bf16.mxu0 0
    %2393 = vmatpush1.bf16.msra.mxu0 0
    %2394 = vmatprep.subr.bf16.mxu0 0
    %2395 = vmatpush1.bf16.msra.mxu0 0
    %2396 = vmatprep.subr.bf16.mxu0 0
    %2397 = vmatpush1.bf16.msra.mxu0 0
    %2398 = vmatprep.subr.bf16.mxu0 0
    %2399 = vmatpush1.bf16.msra.mxu0 0
    %2400 = vmatprep.mubr.bf16.mxu0 0
    %2401 = vmatmul.mubr.bf16.gmra.mrb[0].mxu0 %v2366
    %v2402 = vpop.f32.mrb[0].mxu0
    %v2403 = vadd.f32 %v1925, %v2402
    %v2404 = vpop.f32.mrb[0].mxu0
    %v2405 = vpop.f32.mrb[0].mxu0
    %v2406 = vadd.f32 %v1933, %v2405
    %v2407 = vpop.f32.mrb[0].mxu0
    %2408 = vdwg.mxu0
    %v2409 = vadd.f32 %v2361, %v2403
    %v2410 = vadd.f32 %v2363, %v2406
    %v2411 = vxor.u32 %v2409, 2147483648
    %v2412 = vxor.u32 %v2410, 2147483648
    %v2413 = vmul.f32 %v2411, 1.442695
    %v2414 = vpow.pop %v2413
    %v2415 = vmul.f32 %v2412, 1.442695
    %v2416 = vpow.pop %v2415
    %v2417 = vadd.f32 %v2414, 1.0
    %v2418 = vadd.f32 %v2416, 1.0
    %v2419 = vrcp.pop %v2417
    %v2420 = vmul.f32 1.0, %v2419
    %v2421 = vrcp.pop %v2418
    %v2422 = vmul.f32 1.0, %v2421
    %2425 = vrot.lane.b32.xlu0 %v2403, 96
    %v2426 = vpop.permute.xlu0 %2425
    %2427 = vrot.lane.b32.xlu0 %v2406, 96
    %v2428 = vpop.permute.xlu0 %2427
    %v2431 = vmul.f32 %v2420, %v2426
    %v2432 = vmul.f32 %v2422, %v2428
    %2435 = vrot.lane.b32.xlu0 %v2431, 32
    %v2436 = vpop.permute.xlu0 %2435
    %2437 = vrot.lane.b32.xlu0 %v2432, 32
    %v2438 = vpop.permute.xlu0 %2437
    %v2441 = vadd.f32 %v2361, %v2436
    %v2442 = vadd.f32 %v2363, %v2438
    %v2443 = vtanh.pop %v2441
    %v2444 = vtanh.pop %v2442
    %2447 = vrot.lane.b32.xlu0 %v2358, 112
    %v2448 = vpop.permute.xlu0 %2447
    %2449 = vrot.lane.b32.xlu0 %v2359, 112
    %v2450 = vpop.permute.xlu0 %2449
    %v2453 = vadd.f32 %v2358, %v2448
    %v2454 = vadd.f32 %v2359, %v2450
    %2457 = vrot.lane.b32.xlu0 %v2443, 96
    %v2458 = vpop.permute.xlu0 %2457
    %2459 = vrot.lane.b32.xlu0 %v2444, 96
    %v2460 = vpop.permute.xlu0 %2459
    %v2463 = vsub.f32 %v2453, %v2458
    %v2464 = vsub.f32 %v2454, %v2460
    %2467 = vrot.lane.b32.xlu0 %v2463, 16
    %v2468 = vpop.permute.xlu0 %2467
    %2469 = vrot.lane.b32.xlu0 %v2464, 16
    %v2470 = vpop.permute.xlu0 %2469
    %v2473 = vmul.f32 %v2420, %v2468
    %v2474 = vmul.f32 %v2422, %v2470
    %2477 = vrot.lane.b32.xlu0 %v2473, 16
    %v2478 = vpop.permute.xlu0 %2477
    %2479 = vrot.lane.b32.xlu0 %v2474, 16
    %v2480 = vpop.permute.xlu0 %2479
    %v2483 = vadd.f32 %v2443, %v2478
    %v2484 = vadd.f32 %v2444, %v2480
    %2486 = vrot.lane.b32.xlu0 %v2483, 96
    %v2487 = vpop.permute.xlu0 %2486
    %2489 = vst.msk [vmem:[%s906] sm:$0xff] %vm459, %v2487
    %2491 = vrot.lane.b32.xlu0 %v2484, 96
    %v2492 = vpop.permute.xlu0 %2491
    %2494 = vst.msk [vmem:[%s912] sm:$0xff] %vm459, %v2492
    %2495 = vrot.lane.b32.xlu0 %v2483, 112
    %v2496 = vpop.permute.xlu0 %2495
    %2497 = vrot.lane.b32.xlu0 %v2484, 112
    %v2498 = vpop.permute.xlu0 %2497
    %v2501 = vsel %vm459, %v2487, %v2496
    %v2502 = vsel %vm459, %v2492, %v2498
    %v2503 = vmul.f32 %v2501, %v63
    %v2504 = vmul.f32 %v2502, %v64
    %v2505 = vld [vmem:[%s924] sm:$0xf]
    %v2506 = vunpack.c.l.bf16 %v2505
    %v2507 = vld [vmem:[%s927] sm:$0xf]
    %v2508 = vunpack.c.l.bf16 %v2507
    %v2509 = vpack.c.bf16 %v2504, %v2503
    %v2511 = vsel %vm116, %v2509, 0
    %2513 = vmatprep.subr.bf16.mxu0 0
    %2514 = vmatpush1.bf16.msra.mxu0 %v1947
    %2515 = vmatprep.subr.bf16.mxu0 0
    %2516 = vmatpush1.bf16.msra.mxu0 %v1948
    %2517 = vmatprep.subr.bf16.mxu0 0
    %2518 = vmatpush1.bf16.msra.mxu0 0
    %2519 = vmatprep.subr.bf16.mxu0 0
    %2520 = vmatpush1.bf16.msra.mxu0 0
    %2521 = vmatprep.subr.bf16.mxu0 0
    %2522 = vmatpush1.bf16.msra.mxu0 0
    %2523 = vmatprep.subr.bf16.mxu0 0
    %2524 = vmatpush1.bf16.msra.mxu0 0
    %2525 = vmatprep.subr.bf16.mxu0 0
    %2526 = vmatpush1.bf16.msra.mxu0 0
    %2527 = vmatprep.subr.bf16.mxu0 0
    %2528 = vmatpush1.bf16.msra.mxu0 0
    %2529 = vmatprep.subr.bf16.mxu0 0
    %2530 = vmatpush1.bf16.msra.mxu0 0
    %2531 = vmatprep.subr.bf16.mxu0 0
    %2532 = vmatpush1.bf16.msra.mxu0 0
    %2533 = vmatprep.subr.bf16.mxu0 0
    %2534 = vmatpush1.bf16.msra.mxu0 0
    %2535 = vmatprep.subr.bf16.mxu0 0
    %2536 = vmatpush1.bf16.msra.mxu0 0
    %2537 = vmatprep.subr.bf16.mxu0 0
    %2538 = vmatpush1.bf16.msra.mxu0 0
    %2539 = vmatprep.subr.bf16.mxu0 0
    %2540 = vmatpush1.bf16.msra.mxu0 0
    %2541 = vmatprep.subr.bf16.mxu0 0
    %2542 = vmatpush1.bf16.msra.mxu0 0
    %2543 = vmatprep.subr.bf16.mxu0 0
    %2544 = vmatpush1.bf16.msra.mxu0 0
    %2545 = vmatprep.mubr.bf16.mxu0 0
    %2546 = vmatmul.mubr.bf16.gmra.mrb[0].mxu0 %v2511
    %v2547 = vpop.f32.mrb[0].mxu0
    %v2548 = vadd.f32 %v1925, %v2547
    %v2549 = vpop.f32.mrb[0].mxu0
    %v2550 = vpop.f32.mrb[0].mxu0
    %v2551 = vadd.f32 %v1933, %v2550
    %v2552 = vpop.f32.mrb[0].mxu0
    %2553 = vdwg.mxu0
    %v2554 = vadd.f32 %v2506, %v2548
    %v2555 = vadd.f32 %v2508, %v2551
    %v2556 = vxor.u32 %v2554, 2147483648
    %v2557 = vxor.u32 %v2555, 2147483648
    %v2558 = vmul.f32 %v2556, 1.442695
    %v2559 = vpow.pop %v2558
    %v2560 = vmul.f32 %v2557, 1.442695
    %v2561 = vpow.pop %v2560
    %v2562 = vadd.f32 %v2559, 1.0
    %v2563 = vadd.f32 %v2561, 1.0
    %v2564 = vrcp.pop %v2562
    %v2565 = vmul.f32 1.0, %v2564
    %v2566 = vrcp.pop %v2563
    %v2567 = vmul.f32 1.0, %v2566
    %2570 = vrot.lane.b32.xlu0 %v2548, 96
    %v2571 = vpop.permute.xlu0 %2570
    %2572 = vrot.lane.b32.xlu0 %v2551, 96
    %v2573 = vpop.permute.xlu0 %2572
    %v2576 = vmul.f32 %v2565, %v2571
    %v2577 = vmul.f32 %v2567, %v2573
    %2580 = vrot.lane.b32.xlu0 %v2576, 32
    %v2581 = vpop.permute.xlu0 %2580
    %2582 = vrot.lane.b32.xlu0 %v2577, 32
    %v2583 = vpop.permute.xlu0 %2582
    %v2586 = vadd.f32 %v2506, %v2581
    %v2587 = vadd.f32 %v2508, %v2583
    %v2588 = vtanh.pop %v2586
    %v2589 = vtanh.pop %v2587
    %2592 = vrot.lane.b32.xlu0 %v2503, 112
    %v2593 = vpop.permute.xlu0 %2592
    %2594 = vrot.lane.b32.xlu0 %v2504, 112
    %v2595 = vpop.permute.xlu0 %2594
    %v2598 = vadd.f32 %v2503, %v2593
    %v2599 = vadd.f32 %v2504, %v2595
    %2602 = vrot.lane.b32.xlu0 %v2588, 96
    %v2603 = vpop.permute.xlu0 %2602
    %2604 = vrot.lane.b32.xlu0 %v2589, 96
    %v2605 = vpop.permute.xlu0 %2604
    %v2608 = vsub.f32 %v2598, %v2603
    %v2609 = vsub.f32 %v2599, %v2605
    %2612 = vrot.lane.b32.xlu0 %v2608, 16
    %v2613 = vpop.permute.xlu0 %2612
    %2614 = vrot.lane.b32.xlu0 %v2609, 16
    %v2615 = vpop.permute.xlu0 %2614
    %v2618 = vmul.f32 %v2565, %v2613
    %v2619 = vmul.f32 %v2567, %v2615
    %2622 = vrot.lane.b32.xlu0 %v2618, 16
    %v2623 = vpop.permute.xlu0 %2622
    %2624 = vrot.lane.b32.xlu0 %v2619, 16
    %v2625 = vpop.permute.xlu0 %2624
    %v2628 = vadd.f32 %v2588, %v2623
    %v2629 = vadd.f32 %v2589, %v2625
    %2631 = vrot.lane.b32.xlu0 %v2628, 96
    %v2632 = vpop.permute.xlu0 %2631
    %2634 = vst.msk [vmem:[%s1055] sm:$0xff] %vm459, %v2632
    %2636 = vrot.lane.b32.xlu0 %v2629, 96
    %v2637 = vpop.permute.xlu0 %2636
    %2639 = vst.msk [vmem:[%s1061] sm:$0xff] %vm459, %v2637
    %2640 = vrot.lane.b32.xlu0 %v2628, 112
    %v2641 = vpop.permute.xlu0 %2640
    %2642 = vrot.lane.b32.xlu0 %v2629, 112
    %v2643 = vpop.permute.xlu0 %2642
    %v2646 = vsel %vm459, %v2632, %v2641
    %v2647 = vsel %vm459, %v2637, %v2643
    %v2648 = vmul.f32 %v2646, %v63
    %v2649 = vmul.f32 %v2647, %v64
    %v2650 = vld [vmem:[%s1073] sm:$0xf]
    %v2651 = vunpack.c.l.bf16 %v2650
    %v2652 = vld [vmem:[%s1076] sm:$0xf]
    %v2653 = vunpack.c.l.bf16 %v2652
    %v2654 = vpack.c.bf16 %v2649, %v2648
    %v2656 = vsel %vm116, %v2654, 0
    %2658 = vmatprep.subr.bf16.mxu0 0
    %2659 = vmatpush1.bf16.msra.mxu0 %v1947
    %2660 = vmatprep.subr.bf16.mxu0 0
    %2661 = vmatpush1.bf16.msra.mxu0 %v1948
    %2662 = vmatprep.subr.bf16.mxu0 0
    %2663 = vmatpush1.bf16.msra.mxu0 0
    %2664 = vmatprep.subr.bf16.mxu0 0
    %2665 = vmatpush1.bf16.msra.mxu0 0
    %2666 = vmatprep.subr.bf16.mxu0 0
    %2667 = vmatpush1.bf16.msra.mxu0 0
    %2668 = vmatprep.subr.bf16.mxu0 0
    %2669 = vmatpush1.bf16.msra.mxu0 0
    %2670 = vmatprep.subr.bf16.mxu0 0
    %2671 = vmatpush1.bf16.msra.mxu0 0
    %2672 = vmatprep.subr.bf16.mxu0 0
    %2673 = vmatpush1.bf16.msra.mxu0 0
    %2674 = vmatprep.subr.bf16.mxu0 0
    %2675 = vmatpush1.bf16.msra.mxu0 0
    %2676 = vmatprep.subr.bf16.mxu0 0
    %2677 = vmatpush1.bf16.msra.mxu0 0
    %2678 = vmatprep.subr.bf16.mxu0 0
    %2679 = vmatpush1.bf16.msra.mxu0 0
    %2680 = vmatprep.subr.bf16.mxu0 0
    %2681 = vmatpush1.bf16.msra.mxu0 0
    %2682 = vmatprep.subr.bf16.mxu0 0
    %2683 = vmatpush1.bf16.msra.mxu0 0
    %2684 = vmatprep.subr.bf16.mxu0 0
    %2685 = vmatpush1.bf16.msra.mxu0 0
    %2686 = vmatprep.subr.bf16.mxu0 0
    %2687 = vmatpush1.bf16.msra.mxu0 0
    %2688 = vmatprep.subr.bf16.mxu0 0
    %2689 = vmatpush1.bf16.msra.mxu0 0
    %2690 = vmatprep.mubr.bf16.mxu0 0
    %2691 = vmatmul.mubr.bf16.gmra.mrb[0].mxu0 %v2656
    %v2692 = vpop.f32.mrb[0].mxu0
    %v2693 = vadd.f32 %v1925, %v2692
    %v2694 = vpop.f32.mrb[0].mxu0
    %v2695 = vpop.f32.mrb[0].mxu0
    %v2696 = vadd.f32 %v1933, %v2695
    %v2697 = vpop.f32.mrb[0].mxu0
    %2698 = vdwg.mxu0
    %v2699 = vadd.f32 %v2651, %v2693
    %v2700 = vadd.f32 %v2653, %v2696
    %v2701 = vxor.u32 %v2699, 2147483648
    %v2702 = vxor.u32 %v2700, 2147483648
    %v2703 = vmul.f32 %v2701, 1.442695
    %v2704 = vpow.pop %v2703
    %v2705 = vmul.f32 %v2702, 1.442695
    %v2706 = vpow.pop %v2705
    %v2707 = vadd.f32 %v2704, 1.0
    %v2708 = vadd.f32 %v2706, 1.0
    %v2709 = vrcp.pop %v2707
    %v2710 = vmul.f32 1.0, %v2709
    %v2711 = vrcp.pop %v2708
    %v2712 = vmul.f32 1.0, %v2711
    %2715 = vrot.lane.b32.xlu0 %v2693, 96
    %v2716 = vpop.permute.xlu0 %2715
    %2717 = vrot.lane.b32.xlu0 %v2696, 96
    %v2718 = vpop.permute.xlu0 %2717
    %v2721 = vmul.f32 %v2710, %v2716
    %v2722 = vmul.f32 %v2712, %v2718
    %2725 = vrot.lane.b32.xlu0 %v2721, 32
    %v2726 = vpop.permute.xlu0 %2725
    %2727 = vrot.lane.b32.xlu0 %v2722, 32
    %v2728 = vpop.permute.xlu0 %2727
    %v2731 = vadd.f32 %v2651, %v2726
    %v2732 = vadd.f32 %v2653, %v2728
    %v2733 = vtanh.pop %v2731
    %v2734 = vtanh.pop %v2732
    %2737 = vrot.lane.b32.xlu0 %v2648, 112
    %v2738 = vpop.permute.xlu0 %2737
    %2739 = vrot.lane.b32.xlu0 %v2649, 112
    %v2740 = vpop.permute.xlu0 %2739
    %v2743 = vadd.f32 %v2648, %v2738
    %v2744 = vadd.f32 %v2649, %v2740
    %2747 = vrot.lane.b32.xlu0 %v2733, 96
    %v2748 = vpop.permute.xlu0 %2747
    %2749 = vrot.lane.b32.xlu0 %v2734, 96
    %v2750 = vpop.permute.xlu0 %2749
    %v2753 = vsub.f32 %v2743, %v2748
    %v2754 = vsub.f32 %v2744, %v2750
    %2757 = vrot.lane.b32.xlu0 %v2753, 16
    %v2758 = vpop.permute.xlu0 %2757
    %2759 = vrot.lane.b32.xlu0 %v2754, 16
    %v2760 = vpop.permute.xlu0 %2759
    %v2763 = vmul.f32 %v2710, %v2758
    %v2764 = vmul.f32 %v2712, %v2760
    %2767 = vrot.lane.b32.xlu0 %v2763, 16
    %v2768 = vpop.permute.xlu0 %2767
    %2769 = vrot.lane.b32.xlu0 %v2764, 16
    %v2770 = vpop.permute.xlu0 %2769
    %v2773 = vadd.f32 %v2733, %v2768
    %v2774 = vadd.f32 %v2734, %v2770
    %2776 = vrot.lane.b32.xlu0 %v2773, 96
    %v2777 = vpop.permute.xlu0 %2776
    %2779 = vst.msk [vmem:[%s1204] sm:$0xff] %vm459, %v2777
    %2781 = vrot.lane.b32.xlu0 %v2774, 96
    %v2782 = vpop.permute.xlu0 %2781
    %2784 = vst.msk [vmem:[%s1210] sm:$0xff] %vm459, %v2782
    %2785 = vrot.lane.b32.xlu0 %v2773, 112
    %v2786 = vpop.permute.xlu0 %2785
    %2787 = vrot.lane.b32.xlu0 %v2774, 112
    %v2788 = vpop.permute.xlu0 %2787
    %v2791 = vsel %vm459, %v2777, %v2786
    %v2792 = vsel %vm459, %v2782, %v2788
    %v2793 = vmul.f32 %v2791, %v63
    %v2794 = vmul.f32 %v2792, %v64
    %v2795 = vld [vmem:[%s1222] sm:$0xf]
    %v2796 = vunpack.c.l.bf16 %v2795
    %v2797 = vld [vmem:[%s1225] sm:$0xf]
    %v2798 = vunpack.c.l.bf16 %v2797
    %v2799 = vpack.c.bf16 %v2794, %v2793
    %v2801 = vsel %vm116, %v2799, 0
    %2803 = vmatprep.subr.bf16.mxu0 0
    %2804 = vmatpush1.bf16.msra.mxu0 %v1947
    %2805 = vmatprep.subr.bf16.mxu0 0
    %2806 = vmatpush1.bf16.msra.mxu0 %v1948
    %2807 = vmatprep.subr.bf16.mxu0 0
    %2808 = vmatpush1.bf16.msra.mxu0 0
    %2809 = vmatprep.subr.bf16.mxu0 0
    %2810 = vmatpush1.bf16.msra.mxu0 0
    %2811 = vmatprep.subr.bf16.mxu0 0
    %2812 = vmatpush1.bf16.msra.mxu0 0
    %2813 = vmatprep.subr.bf16.mxu0 0
    %2814 = vmatpush1.bf16.msra.mxu0 0
    %2815 = vmatprep.subr.bf16.mxu0 0
    %2816 = vmatpush1.bf16.msra.mxu0 0
    %2817 = vmatprep.subr.bf16.mxu0 0
    %2818 = vmatpush1.bf16.msra.mxu0 0
    %2819 = vmatprep.subr.bf16.mxu0 0
    %2820 = vmatpush1.bf16.msra.mxu0 0
    %2821 = vmatprep.subr.bf16.mxu0 0
    %2822 = vmatpush1.bf16.msra.mxu0 0
    %2823 = vmatprep.subr.bf16.mxu0 0
    %2824 = vmatpush1.bf16.msra.mxu0 0
    %2825 = vmatprep.subr.bf16.mxu0 0
    %2826 = vmatpush1.bf16.msra.mxu0 0
    %2827 = vmatprep.subr.bf16.mxu0 0
    %2828 = vmatpush1.bf16.msra.mxu0 0
    %2829 = vmatprep.subr.bf16.mxu0 0
    %2830 = vmatpush1.bf16.msra.mxu0 0
    %2831 = vmatprep.subr.bf16.mxu0 0
    %2832 = vmatpush1.bf16.msra.mxu0 0
    %2833 = vmatprep.subr.bf16.mxu0 0
    %2834 = vmatpush1.bf16.msra.mxu0 0
    %2835 = vmatprep.mubr.bf16.mxu0 0
    %2836 = vmatmul.mubr.bf16.gmra.mrb[0].mxu0 %v2801
    %v2837 = vpop.f32.mrb[0].mxu0
    %v2838 = vadd.f32 %v1925, %v2837
    %v2839 = vpop.f32.mrb[0].mxu0
    %v2840 = vpop.f32.mrb[0].mxu0
    %v2841 = vadd.f32 %v1933, %v2840
    %v2842 = vpop.f32.mrb[0].mxu0
    %2843 = vdwg.mxu0
    %v2844 = vadd.f32 %v2796, %v2838
    %v2845 = vadd.f32 %v2798, %v2841
    %v2846 = vxor.u32 %v2844, 2147483648
    %v2847 = vxor.u32 %v2845, 2147483648
    %v2848 = vmul.f32 %v2846, 1.442695
    %v2849 = vpow.pop %v2848
    %v2850 = vmul.f32 %v2847, 1.442695
    %v2851 = vpow.pop %v2850
    %v2852 = vadd.f32 %v2849, 1.0
    %v2853 = vadd.f32 %v2851, 1.0
    %v2854 = vrcp.pop %v2852
    %v2855 = vmul.f32 1.0, %v2854
    %v2856 = vrcp.pop %v2853
    %v2857 = vmul.f32 1.0, %v2856
    %2860 = vrot.lane.b32.xlu0 %v2838, 96
    %v2861 = vpop.permute.xlu0 %2860
    %2862 = vrot.lane.b32.xlu0 %v2841, 96
    %v2863 = vpop.permute.xlu0 %2862
    %v2866 = vmul.f32 %v2855, %v2861
    %v2867 = vmul.f32 %v2857, %v2863
    %2870 = vrot.lane.b32.xlu0 %v2866, 32
    %v2871 = vpop.permute.xlu0 %2870
    %2872 = vrot.lane.b32.xlu0 %v2867, 32
    %v2873 = vpop.permute.xlu0 %2872
    %v2876 = vadd.f32 %v2796, %v2871
    %v2877 = vadd.f32 %v2798, %v2873
    %v2878 = vtanh.pop %v2876
    %v2879 = vtanh.pop %v2877
    %2882 = vrot.lane.b32.xlu0 %v2793, 112
    %v2883 = vpop.permute.xlu0 %2882
    %2884 = vrot.lane.b32.xlu0 %v2794, 112
    %v2885 = vpop.permute.xlu0 %2884
    %v2888 = vadd.f32 %v2793, %v2883
    %v2889 = vadd.f32 %v2794, %v2885
    %2892 = vrot.lane.b32.xlu0 %v2878, 96
    %v2893 = vpop.permute.xlu0 %2892
    %2894 = vrot.lane.b32.xlu0 %v2879, 96
    %v2895 = vpop.permute.xlu0 %2894
    %v2898 = vsub.f32 %v2888, %v2893
    %v2899 = vsub.f32 %v2889, %v2895
    %2902 = vrot.lane.b32.xlu0 %v2898, 16
    %v2903 = vpop.permute.xlu0 %2902
    %2904 = vrot.lane.b32.xlu0 %v2899, 16
    %v2905 = vpop.permute.xlu0 %2904
    %v2908 = vmul.f32 %v2855, %v2903
    %v2909 = vmul.f32 %v2857, %v2905
    %2912 = vrot.lane.b32.xlu0 %v2908, 16
    %v2913 = vpop.permute.xlu0 %2912
    %2914 = vrot.lane.b32.xlu0 %v2909, 16
    %v2915 = vpop.permute.xlu0 %2914
    %v2918 = vadd.f32 %v2878, %v2913
    %v2919 = vadd.f32 %v2879, %v2915
    %2921 = vrot.lane.b32.xlu0 %v2918, 96
    %v2922 = vpop.permute.xlu0 %2921
    %2924 = vst.msk [vmem:[%s1353] sm:$0xff] %vm459, %v2922
    %2926 = vrot.lane.b32.xlu0 %v2919, 96
    %v2927 = vpop.permute.xlu0 %2926
    %2929 = vst.msk [vmem:[%s1359] sm:$0xff] %vm459, %v2927
    %2930 = vrot.lane.b32.xlu0 %v2918, 112
    %v2931 = vpop.permute.xlu0 %2930
    %2932 = vrot.lane.b32.xlu0 %v2919, 112
    %v2933 = vpop.permute.xlu0 %2932
    %v2936 = vsel %vm459, %v2922, %v2931
    %v2937 = vsel %vm459, %v2927, %v2933
    %v2938 = vmul.f32 %v2936, %v63
    %v2939 = vmul.f32 %v2937, %v64
    %v2940 = vld [vmem:[%s1371] sm:$0xf]
    %v2941 = vunpack.c.l.bf16 %v2940
    %v2942 = vld [vmem:[#allocation3] sm:$0xf]
    %v2943 = vunpack.c.l.bf16 %v2942
    %v2944 = vpack.c.bf16 %v2939, %v2938
    %v2946 = vsel %vm116, %v2944, 0
    %2948 = vmatprep.subr.bf16.mxu0 0
    %2949 = vmatpush1.bf16.msra.mxu0 %v1947
    %2950 = vmatprep.subr.bf16.mxu0 0
    %2951 = vmatpush1.bf16.msra.mxu0 %v1948
    %2952 = vmatprep.subr.bf16.mxu0 0
    %2953 = vmatpush1.bf16.msra.mxu0 0
    %2954 = vmatprep.subr.bf16.mxu0 0
    %2955 = vmatpush1.bf16.msra.mxu0 0
    %2956 = vmatprep.subr.bf16.mxu0 0
    %2957 = vmatpush1.bf16.msra.mxu0 0
    %2958 = vmatprep.subr.bf16.mxu0 0
    %2959 = vmatpush1.bf16.msra.mxu0 0
    %2960 = vmatprep.subr.bf16.mxu0 0
    %2961 = vmatpush1.bf16.msra.mxu0 0
    %2962 = vmatprep.subr.bf16.mxu0 0
    %2963 = vmatpush1.bf16.msra.mxu0 0
    %2964 = vmatprep.subr.bf16.mxu0 0
    %2965 = vmatpush1.bf16.msra.mxu0 0
    %2966 = vmatprep.subr.bf16.mxu0 0
    %2967 = vmatpush1.bf16.msra.mxu0 0
    %2968 = vmatprep.subr.bf16.mxu0 0
    %2969 = vmatpush1.bf16.msra.mxu0 0
    %2970 = vmatprep.subr.bf16.mxu0 0
    %2971 = vmatpush1.bf16.msra.mxu0 0
    %2972 = vmatprep.subr.bf16.mxu0 0
    %2973 = vmatpush1.bf16.msra.mxu0 0
    %2974 = vmatprep.subr.bf16.mxu0 0
    %2975 = vmatpush1.bf16.msra.mxu0 0
    %2976 = vmatprep.subr.bf16.mxu0 0
    %2977 = vmatpush1.bf16.msra.mxu0 0
    %2978 = vmatprep.subr.bf16.mxu0 0
    %2979 = vmatpush1.bf16.msra.mxu0 0
    %2980 = vmatprep.mubr.bf16.mxu0 0
    %2981 = vmatmul.mubr.bf16.gmra.mrb[0].mxu0 %v2946
    %v2982 = vpop.f32.mrb[0].mxu0
    %v2983 = vadd.f32 %v1925, %v2982
    %v2984 = vpop.f32.mrb[0].mxu0
    %v2985 = vpop.f32.mrb[0].mxu0
    %v2986 = vadd.f32 %v1933, %v2985
    %v2987 = vpop.f32.mrb[0].mxu0
    %2988 = vdwg.mxu0
    %v2989 = vadd.f32 %v2941, %v2983
    %v2990 = vadd.f32 %v2943, %v2986
    %v2991 = vxor.u32 %v2989, 2147483648
    %v2992 = vxor.u32 %v2990, 2147483648
    %v2993 = vmul.f32 %v2991, 1.442695
    %v2994 = vpow.pop %v2993
    %v2995 = vmul.f32 %v2992, 1.442695
    %v2996 = vpow.pop %v2995
    %v2997 = vadd.f32 %v2994, 1.0
    %v2998 = vadd.f32 %v2996, 1.0
    %v2999 = vrcp.pop %v2997
    %v3000 = vmul.f32 1.0, %v2999
    %v3001 = vrcp.pop %v2998
    %v3002 = vmul.f32 1.0, %v3001
    %3005 = vrot.lane.b32.xlu0 %v2983, 96
    %v3006 = vpop.permute.xlu0 %3005
    %3007 = vrot.lane.b32.xlu0 %v2986, 96
    %v3008 = vpop.permute.xlu0 %3007
    %v3011 = vmul.f32 %v3000, %v3006
    %v3012 = vmul.f32 %v3002, %v3008
    %3015 = vrot.lane.b32.xlu0 %v3011, 32
    %v3016 = vpop.permute.xlu0 %3015
    %3017 = vrot.lane.b32.xlu0 %v3012, 32
    %v3018 = vpop.permute.xlu0 %3017
    %v3021 = vadd.f32 %v2941, %v3016
    %v3022 = vadd.f32 %v2943, %v3018
    %v3023 = vtanh.pop %v3021
    %v3024 = vtanh.pop %v3022
    %3027 = vrot.lane.b32.xlu0 %v2938, 112
    %v3028 = vpop.permute.xlu0 %3027
    %3029 = vrot.lane.b32.xlu0 %v2939, 112
    %v3030 = vpop.permute.xlu0 %3029
    %v3033 = vadd.f32 %v2938, %v3028
    %v3034 = vadd.f32 %v2939, %v3030
    %3037 = vrot.lane.b32.xlu0 %v3023, 96
    %v3038 = vpop.permute.xlu0 %3037
    %3039 = vrot.lane.b32.xlu0 %v3024, 96
    %v3040 = vpop.permute.xlu0 %3039
    %v3043 = vsub.f32 %v3033, %v3038
    %v3044 = vsub.f32 %v3034, %v3040
    %3047 = vrot.lane.b32.xlu0 %v3043, 16
    %v3048 = vpop.permute.xlu0 %3047
    %3049 = vrot.lane.b32.xlu0 %v3044, 16
    %v3050 = vpop.permute.xlu0 %3049
    %v3053 = vmul.f32 %v3000, %v3048
    %v3054 = vmul.f32 %v3002, %v3050
    %3057 = vrot.lane.b32.xlu0 %v3053, 16
    %v3058 = vpop.permute.xlu0 %3057
    %3059 = vrot.lane.b32.xlu0 %v3054, 16
    %v3060 = vpop.permute.xlu0 %3059
    %v3063 = vadd.f32 %v3023, %v3058
    %v3064 = vadd.f32 %v3024, %v3060
    %3066 = vrot.lane.b32.xlu0 %v3063, 96
    %v3067 = vpop.permute.xlu0 %3066
    %3069 = vst.msk [vmem:[%s1501] sm:$0xff] %vm459, %v3067
    %3071 = vrot.lane.b32.xlu0 %v3064, 96
    %v3072 = vpop.permute.xlu0 %3071
    %3074 = vst.msk [vmem:[#allocation5] sm:$0xff] %vm459, %v3072
    %v3075 = vld [vmem:[#allocation4] sm:$0xff]
    %v3076 = vld [vmem:[#allocation4 + $0x8] sm:$0xff]
    %v3077 = vld [vmem:[#allocation4 + $0x10] sm:$0xff]
    %v3078 = vld [vmem:[#allocation4 + $0x18] sm:$0xff]
    %v3079 = vld [vmem:[#allocation4 + $0x20] sm:$0xff]
    %v3080 = vld [vmem:[#allocation4 + $0x28] sm:$0xff]
    %v3081 = vld [vmem:[#allocation4 + $0x30] sm:$0xff]
    %v3082 = vld [vmem:[#allocation4 + $0x38] sm:$0xff]
    %v3083 = vld [vmem:[%s7] sm:$0x1]
    %v3085 = vlaneseq
    %v3086 = vshrl.u32 %v3085, 7
    %v3087 = vsub.s32 0, %v3086
    %v3088 = vrot.slane %v3083, %v3087
    %v3090 = vmul.f32 %v3075, %v3088
    %v3091 = vmul.f32 %v3076, %v3088
    %v3092 = vmul.f32 %v3077, %v3088
    %v3093 = vmul.f32 %v3078, %v3088
    %v3094 = vmul.f32 %v3079, %v3088
    %v3095 = vmul.f32 %v3080, %v3088
    %v3096 = vmul.f32 %v3081, %v3088
    %v3097 = vmul.f32 %v3082, %v3088
    %v3098 = vsel %vm459, %v3090, 0.0
    %3099 = vadd.xlane.f32.xlu0 %v3098
    %v3100 = vpop.xlane.xlu0 %3099
    %v3101 = vsel %vm459, %v3091, 0.0
    %3102 = vadd.xlane.f32.xlu0 %v3101
    %v3103 = vpop.xlane.xlu0 %3102
    %v3104 = vsel %vm459, %v3092, 0.0
    %3105 = vadd.xlane.f32.xlu0 %v3104
    %v3106 = vpop.xlane.xlu0 %3105
    %v3107 = vsel %vm459, %v3093, 0.0
    %3108 = vadd.xlane.f32.xlu0 %v3107
    %v3109 = vpop.xlane.xlu0 %3108
    %v3110 = vsel %vm459, %v3094, 0.0
    %3111 = vadd.xlane.f32.xlu0 %v3110
    %v3112 = vpop.xlane.xlu0 %3111
    %v3113 = vsel %vm459, %v3095, 0.0
    %3114 = vadd.xlane.f32.xlu0 %v3113
    %v3115 = vpop.xlane.xlu0 %3114
    %v3116 = vsel %vm459, %v3096, 0.0
    %3117 = vadd.xlane.f32.xlu0 %v3116
    %v3118 = vpop.xlane.xlu0 %3117
    %v3119 = vsel %vm459, %v3097, 0.0
    %3120 = vadd.xlane.f32.xlu0 %v3119
    %v3121 = vpop.xlane.xlu0 %3120
    %v3122 = vld [vmem:[#allocation5] sm:$0xff]
    %v3123 = vld [vmem:[#allocation5 + $0x8] sm:$0xff]
    %v3124 = vld [vmem:[#allocation5 + $0x10] sm:$0xff]
    %v3125 = vld [vmem:[#allocation5 + $0x18] sm:$0xff]
    %v3126 = vld [vmem:[#allocation5 + $0x20] sm:$0xff]
    %v3127 = vld [vmem:[#allocation5 + $0x28] sm:$0xff]
    %v3128 = vld [vmem:[#allocation5 + $0x30] sm:$0xff]
    %v3129 = vld [vmem:[#allocation5 + $0x38] sm:$0xff]
    %s3130 = scalar_lea.vmem %s7, 1
    %v3131 = vld [vmem:[%s3130] sm:$0x1]
    %v3133 = vlaneseq
    %v3134 = vshrl.u32 %v3133, 7
    %v3135 = vsub.s32 0, %v3134
    %v3136 = vrot.slane %v3131, %v3135
    %v3138 = vmul.f32 %v3122, %v3136
    %v3139 = vmul.f32 %v3123, %v3136
    %v3140 = vmul.f32 %v3124, %v3136
    %v3141 = vmul.f32 %v3125, %v3136
    %v3142 = vmul.f32 %v3126, %v3136
    %v3143 = vmul.f32 %v3127, %v3136
    %v3144 = vmul.f32 %v3128, %v3136
    %v3145 = vmul.f32 %v3129, %v3136
    %v3146 = vsel %vm459, %v3138, 0.0
    %3147 = vadd.xlane.f32.xlu0 %v3146
    %v3148 = vpop.xlane.xlu0 %3147
    %v3149 = vsel %vm459, %v3139, 0.0
    %3150 = vadd.xlane.f32.xlu0 %v3149
    %v3151 = vpop.xlane.xlu0 %3150
    %v3152 = vsel %vm459, %v3140, 0.0
    %3153 = vadd.xlane.f32.xlu0 %v3152
    %v3154 = vpop.xlane.xlu0 %3153
    %v3155 = vsel %vm459, %v3141, 0.0
    %3156 = vadd.xlane.f32.xlu0 %v3155
    %v3157 = vpop.xlane.xlu0 %3156
    %v3158 = vsel %vm459, %v3142, 0.0
    %3159 = vadd.xlane.f32.xlu0 %v3158
    %v3160 = vpop.xlane.xlu0 %3159
    %v3161 = vsel %vm459, %v3143, 0.0
    %3162 = vadd.xlane.f32.xlu0 %v3161
    %v3163 = vpop.xlane.xlu0 %3162
    %v3164 = vsel %vm459, %v3144, 0.0
    %3165 = vadd.xlane.f32.xlu0 %v3164
    %v3166 = vpop.xlane.xlu0 %3165
    %v3167 = vsel %vm459, %v3145, 0.0
    %3168 = vadd.xlane.f32.xlu0 %v3167
    %v3169 = vpop.xlane.xlu0 %3168
    %v3170 = vadd.f32 %v3100, %v3148
    %v3171 = vadd.f32 %v3103, %v3151
    %v3172 = vadd.f32 %v3106, %v3154
    %v3173 = vadd.f32 %v3109, %v3157
    %v3174 = vadd.f32 %v3112, %v3160
    %v3175 = vadd.f32 %v3115, %v3163
    %v3176 = vadd.f32 %v3118, %v3166
    %v3177 = vadd.f32 %v3121, %v3169
    %v3178 = vld [vmem:[#allocation6] sm:$0x1]
    %v3180 = vlaneseq
    %v3181 = vshrl.u32 %v3180, 7
    %v3182 = vsub.s32 0, %v3181
    %v3183 = vrot.slane %v3178, %v3182
    %3184 = vset.pattern.permute.xlu0 0
    %3185 = vperm.xlu0 %3184, %v3183
    %v3186 = vpop.permute.xlu0 %3185
    %v3188 = vadd.f32 %v3170, %v3186
    %v3189 = vadd.f32 %v3171, %v3186
    %v3190 = vadd.f32 %v3172, %v3186
    %v3191 = vadd.f32 %v3173, %v3186
    %v3192 = vadd.f32 %v3174, %v3186
    %v3193 = vadd.f32 %v3175, %v3186
    %v3194 = vadd.f32 %v3176, %v3186
    %v3195 = vadd.f32 %v3177, %v3186
    %v3196 = vxor.u32 %v3188, 2147483648
    %v3197 = vxor.u32 %v3189, 2147483648
    %v3198 = vxor.u32 %v3190, 2147483648
    %v3199 = vxor.u32 %v3191, 2147483648
    %v3200 = vxor.u32 %v3192, 2147483648
    %v3201 = vxor.u32 %v3193, 2147483648
    %v3202 = vxor.u32 %v3194, 2147483648
    %v3203 = vxor.u32 %v3195, 2147483648
    %v3204 = vmul.f32 %v3196, 1.442695
    %v3205 = vpow.pop %v3204
    %v3206 = vmul.f32 %v3197, 1.442695
    %v3207 = vpow.pop %v3206
    %v3208 = vmul.f32 %v3198, 1.442695
    %v3209 = vpow.pop %v3208
    %v3210 = vmul.f32 %v3199, 1.442695
    %v3211 = vpow.pop %v3210
    %v3212 = vmul.f32 %v3200, 1.442695
    %v3213 = vpow.pop %v3212
    %v3214 = vmul.f32 %v3201, 1.442695
    %v3215 = vpow.pop %v3214
    %v3216 = vmul.f32 %v3202, 1.442695
    %v3217 = vpow.pop %v3216
    %v3218 = vmul.f32 %v3203, 1.442695
    %v3219 = vpow.pop %v3218
    %v3220 = vadd.f32 %v3205, 1.0
    %v3221 = vadd.f32 %v3207, 1.0
    %v3222 = vadd.f32 %v3209, 1.0
    %v3223 = vadd.f32 %v3211, 1.0
    %v3224 = vadd.f32 %v3213, 1.0
    %v3225 = vadd.f32 %v3215, 1.0
    %v3226 = vadd.f32 %v3217, 1.0
    %v3227 = vadd.f32 %v3219, 1.0
    %v3228 = vrcp.pop %v3220
    %v3229 = vmul.f32 1.0, %v3228
    %v3230 = vrcp.pop %v3221
    %v3231 = vmul.f32 1.0, %v3230
    %v3232 = vrcp.pop %v3222
    %v3233 = vmul.f32 1.0, %v3232
    %v3234 = vrcp.pop %v3223
    %v3235 = vmul.f32 1.0, %v3234
    %v3236 = vrcp.pop %v3224
    %v3237 = vmul.f32 1.0, %v3236
    %v3238 = vrcp.pop %v3225
    %v3239 = vmul.f32 1.0, %v3238
    %v3240 = vrcp.pop %v3226
    %v3241 = vmul.f32 1.0, %v3240
    %v3242 = vrcp.pop %v3227
    %v3243 = vmul.f32 1.0, %v3242
    %v3252 = vlaneseq
    %v3253 = vshrl.u32 %v3252, 7
    %v3254 = vsub.s32 %v53, %v3253
    %v3255 = vrot.slane %v3229, %v3254
    %v3256 = vlaneseq
    %v3257 = vshrl.u32 %v3256, 7
    %v3258 = vsub.s32 %v53, %v3257
    %v3259 = vrot.slane %v3231, %v3258
    %v3260 = vlaneseq
    %v3261 = vshrl.u32 %v3260, 7
    %v3262 = vsub.s32 %v53, %v3261
    %v3263 = vrot.slane %v3233, %v3262
    %v3264 = vlaneseq
    %v3265 = vshrl.u32 %v3264, 7
    %v3266 = vsub.s32 %v53, %v3265
    %v3267 = vrot.slane %v3235, %v3266
    %v3268 = vlaneseq
    %v3269 = vshrl.u32 %v3268, 7
    %v3270 = vsub.s32 %v53, %v3269
    %v3271 = vrot.slane %v3237, %v3270
    %v3272 = vlaneseq
    %v3273 = vshrl.u32 %v3272, 7
    %v3274 = vsub.s32 %v53, %v3273
    %v3275 = vrot.slane %v3239, %v3274
    %v3276 = vlaneseq
    %v3277 = vshrl.u32 %v3276, 7
    %v3278 = vsub.s32 %v53, %v3277
    %v3279 = vrot.slane %v3241, %v3278
    %v3280 = vlaneseq
    %v3281 = vshrl.u32 %v3280, 7
    %v3282 = vsub.s32 %v53, %v3281
    %v3283 = vrot.slane %v3243, %v3282
    %vm3284 = vcmask 1041409
    %v3285 = vsel %vm3284, %v3259, %v3255
    %vm3286 = vcmask 1042434
    %v3287 = vsel %vm3286, %v3263, %v3285
    %vm3288 = vcmask 1043459
    %v3289 = vsel %vm3288, %v3267, %v3287
    %vm3290 = vcmask 1044484
    %v3291 = vsel %vm3290, %v3271, %v3289
    %vm3292 = vcmask 1045509
    %v3293 = vsel %vm3292, %v3275, %v3291
    %vm3294 = vcmask 1046534
    %v3295 = vsel %vm3294, %v3279, %v3293
    %vm3296 = vcmask 1047559
    %v3297 = vsel %vm3296, %v3283, %v3295
    %3299 = vxpose.xlu0.b32.start [1/16] %v3297, 128
    %3300 = vxpose.xlu0.b32.cont [2/16] 0.0, 128
    %3301 = vxpose.xlu0.b32.cont [3/16] 0.0, 128
    %3302 = vxpose.xlu0.b32.cont [4/16] 0.0, 128
    %3303 = vxpose.xlu0.b32.cont [5/16] 0.0, 128
    %3304 = vxpose.xlu0.b32.cont [6/16] 0.0, 128
    %3305 = vxpose.xlu0.b32.cont [7/16] 0.0, 128
    %3306 = vxpose.xlu0.b32.cont [8/16] 0.0, 128
    %3307 = vxpose.xlu0.b32.cont [9/16] 0.0, 128
    %3308 = vxpose.xlu0.b32.cont [10/16] 0.0, 128
    %3309 = vxpose.xlu0.b32.cont [11/16] 0.0, 128
    %3310 = vxpose.xlu0.b32.cont [12/16] 0.0, 128
    %3311 = vxpose.xlu0.b32.cont [13/16] 0.0, 128
    %3312 = vxpose.xlu0.b32.cont [14/16] 0.0, 128
    %3313 = vxpose.xlu0.b32.cont [15/16] 0.0, 128
    %3314 = vxpose.xlu0.b32.end [16/16] 0.0, 128
    %v3315 = vpop.trf.xlu0
    %v3316 = vpop.trf.xlu0
    %v3317 = vpop.trf.xlu0
    %v3318 = vpop.trf.xlu0
    %v3319 = vpop.trf.xlu0
    %v3320 = vpop.trf.xlu0
    %v3321 = vpop.trf.xlu0
    %v3322 = vpop.trf.xlu0
    %v3323 = vpop.trf.xlu0
    %v3324 = vpop.trf.xlu0
    %v3325 = vpop.trf.xlu0
    %v3326 = vpop.trf.xlu0
    %v3327 = vpop.trf.xlu0
    %v3328 = vpop.trf.xlu0
    %v3329 = vpop.trf.xlu0
    %v3330 = vpop.trf.xlu0
    %vm3331 = vcmask 64512
    %3332 = vst.msk [vmem:[%s9] sm:$0xff] %vm3331, %v3315
    // Predicated region
    $region42: #{_detection_forward.1} parent=1 // pred_check
      _
    $region43: #{_detection_forward.1} parent=1 // pred_check_branch
      %3334 = sbr.rel (0) target = $region45
    $region44: #{_detection_forward.1} parent=1 // pred_region
      _
    $region45: #{_detection_forward.1} parent=1 // pred_fallthru
      _
    // Predicated region
    $region46: #{_detection_forward.1} parent=1 // pred_check
      _
    $region47: #{_detection_forward.1} parent=1 // pred_check_branch
      %3336 = sbr.rel (0) target = $region49
    $region48: #{_detection_forward.1} parent=1 // pred_region
      _
    $region49: #{_detection_forward.1} parent=1 // pred_fallthru
      _
    %3337 = vsyncpa [#allocation8], 1

</llo_original>
